<compile_context>
chip_gen: v6e
topology: v6e:2x2x1
jax: 0.10.0
libtpu: 0.0.40
codegen_flags: <defaults>
</compile_context>

<pallas_src>
import functools

import jax
import jax.numpy as jnp
from jax.experimental import pallas as pl
from jax.experimental.pallas import tpu as pltpu

FEAT_DIM = 400        # I3D logits dim used by FVD
FEAT_PAD = 512        # lane-dense padded feature dim (multiple of 128)
STEM_C = 64           # synthetic stem output channels
KT = KH = KW = 3      # synthetic 3x3x3 stem conv, valid padding, stride 1
K_TAPS = KT * KH * KW # 27 taps
P_TILE_TARGET = 2048  # spatial positions per grid tile (fits VMEM easily)


def _round_up(x, m):
    return (x + m - 1) // m * m


def _fvd_stem_kernel(patches_ref, w1_ref, b1_ref, w2_ref, b2_ref, o_ref,
                     pool_acc, *, bn, p_tile, k_dim, p_valid, p_pad):
    # patches_ref: (BN, P_TILE, K)     bf16 im2col patches (K = 27*Cin)
    # w1_ref     : (K, STEM_C)         bf16 stem conv weights (im2col layout)
    # b1_ref     : (1, STEM_C)         f32  stem conv bias
    # w2_ref     : (STEM_C, FEAT_PAD)  f32  final projection (lane padded)
    # b2_ref     : (1, FEAT_PAD)       f32  projection bias  (lane padded)
    # o_ref      : (BN, FEAT_PAD)      f32  FVD features (written on last tile)
    # pool_acc   : (BN, STEM_C)        f32  running pooled sum (VMEM scratch)
    p = pl.program_id(1)

    @pl.when(p == 0)
    def _():
        pool_acc[...] = jnp.zeros_like(pool_acc)

    # One MXU matmul for the whole batch-block x P-tile (bf16 in, f32 acc),
    # fused bias + ReLU, then a per-video pooled-sum update.
    x = patches_ref[...].reshape(bn * p_tile, k_dim)
    conv = jnp.dot(x, w1_ref[...], preferred_element_type=jnp.float32)
    conv = jnp.maximum(conv + b1_ref[...], 0.0)
    pool_acc[...] += jnp.sum(conv.reshape(bn, p_tile, STEM_C), axis=1)

    @pl.when(p == pl.num_programs(1) - 1)
    def _():
        pooled = pool_acc[...]
        if p_pad != p_valid:
            # Zero-padded patch rows contribute exactly relu(b1) each; remove
            # that constant once instead of masking every tile.
            pooled = pooled - float(p_pad - p_valid) * jnp.maximum(
                b1_ref[...], 0.0)
        pooled = pooled * (1.0 / float(p_valid))      # global average pool
        o_ref[...] = (jnp.dot(pooled, w2_ref[...],
                              preferred_element_type=jnp.float32)
                      + b2_ref[...])                  # (BN, FEAT_PAD)


def _im2col(x):
    """x: (N, T, H, W, C) -> patches (N, P, 27*C), valid 3x3x3 stride-1."""
    N, T, H, W, C = x.shape
    tout, hout, wout = T - KT + 1, H - KH + 1, W - KW + 1
    taps = []
    for kt in range(KT):
        for kh in range(KH):
            for kw in range(KW):
                taps.append(x[:, kt:kt + tout, kh:kh + hout, kw:kw + wout, :])
    patches = jnp.stack(taps, axis=-2)            # (N,tout,hout,wout,27,C)
    p_valid = tout * hout * wout
    return patches.reshape(N, p_valid, K_TAPS * C), p_valid


def fvd_feature_extractor(x, params):
    """x: (N, T, C, H, W) float array (PyTorch convention). Returns (N, 400)."""
    w1, b1, w2, b2 = params
    N, T, C, H, W = x.shape
    if C == 1:
        x = jnp.repeat(x, 3, axis=2)              # matches x.repeat(1,1,3,1,1)
        C = 3
    assert C == 3, "I3D expects 3-channel input"
    assert T >= KT and H >= KH and W >= KW

    # Wrapper-side glue: channels-last, bf16 cast (halves HBM/DMA traffic),
    # lane-dense im2col packing.
    xcl = jnp.transpose(x, (0, 1, 3, 4, 2)).astype(jnp.bfloat16)
    patches, p_valid = _im2col(xcl)
    K = K_TAPS * C

    # --- tiling ------------------------------------------------------------
    bn = min(8, N)                                # videos per grid step
    n_pad = _round_up(N, bn)
    num_p_tiles = max(1, -(-p_valid // P_TILE_TARGET))
    p_tile = _round_up(-(-p_valid // num_p_tiles), 32)
    p_pad = p_tile * num_p_tiles

    patches = jnp.pad(patches,
                      ((0, n_pad - N), (0, p_pad - p_valid), (0, 0)))

    w1_mat = w1.reshape(K, STEM_C).astype(jnp.bfloat16)   # im2col weight layout
    b1_r = b1.reshape(1, STEM_C).astype(jnp.float32)
    w2_p = jnp.pad(w2.astype(jnp.float32),
                   ((0, 0), (0, FEAT_PAD - FEAT_DIM)))
    b2_p = jnp.pad(b2.reshape(1, FEAT_DIM).astype(jnp.float32),
                   ((0, 0), (0, FEAT_PAD - FEAT_DIM)))

    kernel = functools.partial(_fvd_stem_kernel, bn=bn, p_tile=p_tile,
                               k_dim=K, p_valid=p_valid, p_pad=p_pad)

    flops = int(2 * n_pad * p_pad * K * STEM_C
                + 2 * n_pad * STEM_C * FEAT_PAD)
    bytes_accessed = int(patches.size * 2 + w1_mat.size * 2
                         + (b1_r.size + w2_p.size + b2_p.size) * 4
                         + n_pad * FEAT_PAD * 4)

    out = pl.pallas_call(
        kernel,
        out_shape=jax.ShapeDtypeStruct((n_pad, FEAT_PAD), jnp.float32),
        grid_spec=pltpu.PrefetchScalarGridSpec(
            num_scalar_prefetch=0,
            grid=(n_pad // bn, num_p_tiles),
            in_specs=[
                pl.BlockSpec((bn, p_tile, K), lambda n, p: (n, p, 0)),
                pl.BlockSpec((K, STEM_C), lambda n, p: (0, 0)),
                pl.BlockSpec((1, STEM_C), lambda n, p: (0, 0)),
                pl.BlockSpec((STEM_C, FEAT_PAD), lambda n, p: (0, 0)),
                pl.BlockSpec((1, FEAT_PAD), lambda n, p: (0, 0)),
            ],
            out_specs=pl.BlockSpec((bn, FEAT_PAD), lambda n, p: (n, 0)),
            scratch_shapes=[pltpu.VMEM((bn, STEM_C), jnp.float32)],
        ),
        compiler_params=pltpu.CompilerParams(
            dimension_semantics=("parallel", "arbitrary")),
        cost_estimate=pl.CostEstimate(flops=flops, transcendentals=0,
                                      bytes_accessed=bytes_accessed),
    )(patches, w1_mat, b1_r, w2_p, b2_p)

    return out[:N, :FEAT_DIM]


def fvd_feature_extractor_reference(x, params):
    """Pure-JAX reference of the same synthetic stem (matches kernel precision)."""
    w1, b1, w2, b2 = params
    N, T, C, H, W = x.shape
    if C == 1:
        x = jnp.repeat(x, 3, axis=2)
    xcl = jnp.transpose(x, (0, 1, 3, 4, 2)).astype(jnp.bfloat16)
    patches, _ = _im2col(xcl)
    patches = patches.astype(jnp.float32)
    w1m = w1.reshape(-1, STEM_C).astype(jnp.bfloat16).astype(jnp.float32)
    conv = jnp.einsum('npk,kc->npc', patches, w1m) + b1.reshape(1, 1, STEM_C)
    conv = jnp.maximum(conv, 0.0)
    pooled = jnp.mean(conv, axis=1)
    return pooled @ w2.astype(jnp.float32) + b2.reshape(1, FEAT_DIM)


def init_params(key):
    k1, k2, k3, k4 = jax.random.split(key, 4)
    w1 = 0.1 * jax.random.normal(k1, (KT, KH, KW, 3, STEM_C), jnp.float32)
    b1 = 0.01 * jax.random.normal(k2, (1, STEM_C), jnp.float32)
    w2 = 0.1 * jax.random.normal(k3, (STEM_C, FEAT_DIM), jnp.float32)
    b2 = 0.01 * jax.random.normal(k4, (1, FEAT_DIM), jnp.float32)
    return w1, b1, w2, b2


if __name__ == "__main__":
    key = jax.random.PRNGKey(0)
    kx, kp = jax.random.split(key)

    # (N, T, C, H, W) video batch, PyTorch convention.
    N, T, C, H, W = 2, 8, 3, 16, 16
    x = jax.random.normal(kx, (N, T, C, H, W), jnp.float32)
    params = init_params(kp)

    feats = fvd_feature_extractor(x, params)
    feats = jax.block_until_ready(feats)
    assert feats.shape == (N, FEAT_DIM), feats.shape
    assert bool(jnp.all(jnp.isfinite(feats)))

    # Correctness against a pure-JAX reference of the same synthetic stem.
    ref = jax.block_until_ready(fvd_feature_extractor_reference(x, params))
    assert bool(jnp.allclose(feats, ref, rtol=1e-2, atol=1e-2)), (
        float(jnp.max(jnp.abs(feats - ref))))

    # Also exercise the C == 1 -> repeat-to-3 path from forward().
    x1 = jax.random.normal(kx, (N, T, 1, H, W), jnp.float32)
    feats1 = jax.block_until_ready(fvd_feature_extractor(x1, params))
    assert feats1.shape == (N, FEAT_DIM)
    assert bool(jnp.all(jnp.isfinite(feats1)))

    print("KERNEL_OK")
</pallas_src>

<mosaic_0001>
module attributes {stable_mosaic.version = 11 : i64} {
  func.func @_fvd_stem_kernel(%arg0: i32, %arg1: i32, %arg2: memref<2x1184x81xbf16, #tpu.memory_space<vmem>>, %arg3: memref<81x64xbf16, #tpu.memory_space<vmem>>, %arg4: memref<1x64xf32, #tpu.memory_space<vmem>>, %arg5: memref<64x512xf32, #tpu.memory_space<vmem>>, %arg6: memref<1x512xf32, #tpu.memory_space<vmem>>, %arg7: memref<2x512xf32, #tpu.memory_space<vmem>>, %arg8: memref<2x64xf32, #tpu.memory_space<vmem>>) attributes {dimension_semantics = [#tpu.dimension_semantics<parallel>, #tpu.dimension_semantics<arbitrary>], iteration_bounds = array<i64: 1, 1>, scalar_prefetch = 0 : i64, scratch_operands = 1 : i64, tpu.core_type = #tpu.core_type<tc>, window_params = [{transform_indices = @transform_0, window_bounds = array<i64: 2, 1184, 81>}, {pipeline_mode = #tpu.pipeline_mode<synchronous>, transform_indices = @transform_1, window_bounds = array<i64: 81, 64>}, {pipeline_mode = #tpu.pipeline_mode<synchronous>, transform_indices = @transform_2, window_bounds = array<i64: 1, 64>}, {pipeline_mode = #tpu.pipeline_mode<synchronous>, transform_indices = @transform_3, window_bounds = array<i64: 64, 512>}, {pipeline_mode = #tpu.pipeline_mode<synchronous>, transform_indices = @transform_4, window_bounds = array<i64: 1, 512>}, {transform_indices = @transform_5, window_bounds = array<i64: 2, 512>}]} {
    %c0_i32 = arith.constant 0 : i32
    %0 = arith.cmpi eq, %arg1, %c0_i32 : i32
    %1 = arith.extui %0 : i1 to i32
    %c0_i32_0 = arith.constant 0 : i32
    %2 = arith.cmpi ne, %1, %c0_i32_0 : i32
    scf.if %2 {
      %cst_15 = arith.constant 0.000000e+00 : f32
      %20 = vector.broadcast %cst_15 : f32 to vector<2x64xf32>
      %c0_16 = arith.constant 0 : index
      %c0_17 = arith.constant 0 : index
      %21 = vector.load %arg8[%c0_16, %c0_17] : memref<2x64xf32, #tpu.memory_space<vmem>>, vector<2x64xf32>
      tpu.vector_store %arg8[%c0_16, %c0_17], %20 {strides = array<i32>} : memref<2x64xf32, #tpu.memory_space<vmem>>, vector<2x64xf32>,
    } else {
    }
    %c0 = arith.constant 0 : index
    %c0_1 = arith.constant 0 : index
    %c0_2 = arith.constant 0 : index
    %3 = vector.load %arg2[%c0, %c0_1, %c0_2] : memref<2x1184x81xbf16, #tpu.memory_space<vmem>>, vector<2x1184x81xbf16>
    %4 = vector.shape_cast %3 : vector<2x1184x81xbf16> to vector<2368x81xbf16>
    %c0_3 = arith.constant 0 : index
    %c0_4 = arith.constant 0 : index
    %5 = vector.load %arg3[%c0_3, %c0_4] : memref<81x64xbf16, #tpu.memory_space<vmem>>, vector<81x64xbf16>
    %cst = arith.constant dense<0.000000e+00> : vector<2368x64xf32>
    %6 = tpu.matmul %4, %5, %cst {dimension_numbers = #tpu.dot_dimension_numbers<[1], [0], [0], [1], [0, 0, 1, 1], [], []>} : vector<2368x81xbf16>, vector<81x64xbf16>, vector<2368x64xf32> -> vector<2368x64xf32>
    %c0_5 = arith.constant 0 : index
    %c0_6 = arith.constant 0 : index
    %7 = vector.load %arg4[%c0_5, %c0_6] : memref<1x64xf32, #tpu.memory_space<vmem>>, vector<1x64xf32>
    %8 = vector.broadcast %7 : vector<1x64xf32> to vector<2368x64xf32>
    %9 = arith.addf %6, %8 : vector<2368x64xf32>
    %cst_7 = arith.constant 0.000000e+00 : f32
    %10 = vector.broadcast %cst_7 : f32 to vector<2368x64xf32>
    %11 = arith.maximumf %9, %10 : vector<2368x64xf32>
    %c0_8 = arith.constant 0 : index
    %c0_9 = arith.constant 0 : index
    %12 = vector.load %arg8[%c0_8, %c0_9] : memref<2x64xf32, #tpu.memory_space<vmem>>, vector<2x64xf32>
    %13 = vector.shape_cast %11 : vector<2368x64xf32> to vector<2x1184x64xf32>
    %cst_10 = arith.constant dense<0.000000e+00> : vector<2x64xf32>
    %14 = vector.multi_reduction <add>, %13, %cst_10 [1] : vector<2x1184x64xf32> to vector<2x64xf32>
    %15 = arith.addf %12, %14 : vector<2x64xf32>
    %c0_11 = arith.constant 0 : index
    %c0_12 = arith.constant 0 : index
    %16 = vector.load %arg8[%c0_11, %c0_12] : memref<2x64xf32, #tpu.memory_space<vmem>>, vector<2x64xf32>
    tpu.vector_store %arg8[%c0_11, %c0_12], %15 {strides = array<i32>} : memref<2x64xf32, #tpu.memory_space<vmem>>, vector<2x64xf32>,
    %c0_i32_13 = arith.constant 0 : i32
    %17 = arith.cmpi eq, %arg1, %c0_i32_13 : i32
    %18 = arith.extui %17 : i1 to i32
    %c0_i32_14 = arith.constant 0 : i32
    %19 = arith.cmpi ne, %18, %c0_i32_14 : i32
    scf.if %19 {
      %c0_15 = arith.constant 0 : index
      %c0_16 = arith.constant 0 : index
      %20 = vector.load %arg8[%c0_15, %c0_16] : memref<2x64xf32, #tpu.memory_space<vmem>>, vector<2x64xf32>
      %c0_17 = arith.constant 0 : index
      %c0_18 = arith.constant 0 : index
      %21 = vector.load %arg4[%c0_17, %c0_18] : memref<1x64xf32, #tpu.memory_space<vmem>>, vector<1x64xf32>
      %cst_19 = arith.constant 0.000000e+00 : f32
      %22 = vector.broadcast %cst_19 : f32 to vector<1x64xf32>
      %23 = arith.maximumf %21, %22 : vector<1x64xf32>
      %cst_20 = arith.constant 8.000000e+00 : f32
      %24 = vector.broadcast %cst_20 : f32 to vector<1x64xf32>
      %25 = arith.mulf %24, %23 : vector<1x64xf32>
      %26 = vector.broadcast %25 : vector<1x64xf32> to vector<2x64xf32>
      %27 = arith.subf %20, %26 : vector<2x64xf32>
      %cst_21 = arith.constant 8.50340118E-4 : f32
      %28 = vector.broadcast %cst_21 : f32 to vector<2x64xf32>
      %29 = arith.mulf %27, %28 : vector<2x64xf32>
      %c0_22 = arith.constant 0 : index
      %c0_23 = arith.constant 0 : index
      %30 = vector.load %arg5[%c0_22, %c0_23] : memref<64x512xf32, #tpu.memory_space<vmem>>, vector<64x512xf32>
      %cst_24 = arith.constant dense<0.000000e+00> : vector<2x512xf32>
      %31 = tpu.matmul %29, %30, %cst_24 {dimension_numbers = #tpu.dot_dimension_numbers<[1], [0], [0], [1], [0, 0, 1, 1], [], []>} : vector<2x64xf32>, vector<64x512xf32>, vector<2x512xf32> -> vector<2x512xf32>
      %c0_25 = arith.constant 0 : index
      %c0_26 = arith.constant 0 : index
      %32 = vector.load %arg6[%c0_25, %c0_26] : memref<1x512xf32, #tpu.memory_space<vmem>>, vector<1x512xf32>
      %33 = vector.broadcast %32 : vector<1x512xf32> to vector<2x512xf32>
      %34 = arith.addf %31, %33 : vector<2x512xf32>
      %c0_27 = arith.constant 0 : index
      %c0_28 = arith.constant 0 : index
      %35 = vector.load %arg7[%c0_27, %c0_28] : memref<2x512xf32, #tpu.memory_space<vmem>>, vector<2x512xf32>
      tpu.vector_store %arg7[%c0_27, %c0_28], %34 {strides = array<i32>} : memref<2x512xf32, #tpu.memory_space<vmem>>, vector<2x512xf32>,
    } else {
    }
    return
  }
  func.func @transform_0(%arg0: i32, %arg1: i32) -> (i32, i32, i32) {
    %c0_i32 = arith.constant 0 : i32
    %c0_i32_0 = arith.constant 0 : i32
    return %arg0, %arg1, %c0_i32 : i32, i32, i32
  }
  func.func @transform_1(%arg0: i32, %arg1: i32) -> (i32, i32) {
    %c0_i32 = arith.constant 0 : i32
    %c0_i32_0 = arith.constant 0 : i32
    %c0_i32_1 = arith.constant 0 : i32
    return %c0_i32, %c0_i32_0 : i32, i32
  }
  func.func @transform_2(%arg0: i32, %arg1: i32) -> (i32, i32) {
    %c0_i32 = arith.constant 0 : i32
    %c0_i32_0 = arith.constant 0 : i32
    %c0_i32_1 = arith.constant 0 : i32
    return %c0_i32, %c0_i32_0 : i32, i32
  }
  func.func @transform_3(%arg0: i32, %arg1: i32) -> (i32, i32) {
    %c0_i32 = arith.constant 0 : i32
    %c0_i32_0 = arith.constant 0 : i32
    %c0_i32_1 = arith.constant 0 : i32
    return %c0_i32, %c0_i32_0 : i32, i32
  }
  func.func @transform_4(%arg0: i32, %arg1: i32) -> (i32, i32) {
    %c0_i32 = arith.constant 0 : i32
    %c0_i32_0 = arith.constant 0 : i32
    %c0_i32_1 = arith.constant 0 : i32
    return %c0_i32, %c0_i32_0 : i32, i32
  }
  func.func @transform_5(%arg0: i32, %arg1: i32) -> (i32, i32) {
    %c0_i32 = arith.constant 0 : i32
    %c0_i32_0 = arith.constant 0 : i32
    return %arg0, %c0_i32 : i32, i32
  }
}

</mosaic_0001>

<llo_original>
// kernel: tpu_custom_call.1
$region0: #{tpu_custom_call.1}
  #allocation0 [shape = 'u32[]', space=smem, size = 0x4, offset = 0x4, fixed_abs, tag = 'smem constant byte address 0x4 - core index']
  #allocation1 [shape = 'u32[144,128]{1,0:T(1,128)}', space=vmem, size = 0x12000, scoped, tag = 'internal scratch']
  #allocation2 [shape = 'f32[2,64]{1,0:T(2,128)}', space=vmem, size = 0x400, scoped, tag = 'scratch operand']
  %s0 = inlined_call_operand.vmem [shape: bf16[2,1184,81], index: 0, kind: input, shape index: {}]
  %s1 = inlined_call_operand.vmem [shape: bf16[81,64], index: 1, kind: input, shape index: {}]
  %s2 = inlined_call_operand.vmem [shape: f32[1,64], index: 2, kind: input, shape index: {}]
  %s3 = inlined_call_operand.vmem [shape: f32[64,512], index: 3, kind: input, shape index: {}]
  %s4 = inlined_call_operand.vmem [shape: f32[1,512], index: 4, kind: input, shape index: {}]
  %s5 = inlined_call_operand.hbm [shape: f32[2,512], index: 5, kind: output, shape index: {}]
  %s6 = sld [smem:[#allocation0]]
  $region38: #{tpu_custom_call.1} parent=0
    _
  %s8 = ssub.s32 1, %s6
  %s9 = scalar_select 0, %s8, %s6
  $region1: #{tpu_custom_call.1} parent=0
    #allocation3 [shape = 'u8[4096]{0}', space=vmem, size = 0x1000, scoped, tag = 'output window, operand 0, single buffered']
    #allocation4 [shape = 's32[1]{0}', space=sflag, size = 0x4, scoped, tag = 'scoped memory for tpu_custom_call.1']
    %10 = vsyncpa [#allocation4], 0
    // Predicated region
    $region2: #{tpu_custom_call.1} parent=1 // pred_check
      _
    $region3: #{tpu_custom_call.1} parent=1 // pred_check_branch
      %12 = sbr.rel (0) target = $region5
    $region4: #{tpu_custom_call.1} parent=1 // pred_region
      _
    $region5: #{tpu_custom_call.1} parent=1 // pred_fallthru
      _
    // Predicated region
    $region6: #{tpu_custom_call.1} parent=1 // pred_check
      _
    $region7: #{tpu_custom_call.1} parent=1 // pred_check_branch
      %14 = sbr.rel (0) target = $region9
    $region8: #{tpu_custom_call.1} parent=1 // pred_region
      _
    $region9: #{tpu_custom_call.1} parent=1 // pred_fallthru
      _
    // Predicated region
    $region10: #{tpu_custom_call.1} parent=1 // pred_check
      _
    $region11: #{tpu_custom_call.1} parent=1 // pred_check_branch
      %16 = sbr.rel (0) target = $region13
    $region12: #{tpu_custom_call.1} parent=1 // pred_region
      _
    $region13: #{tpu_custom_call.1} parent=1 // pred_fallthru
      _
    // Predicated region
    $region14: #{tpu_custom_call.1} parent=1 // pred_check
      _
    $region15: #{tpu_custom_call.1} parent=1 // pred_check_branch
      %18 = sbr.rel (0) target = $region17
    $region16: #{tpu_custom_call.1} parent=1 // pred_region
      _
    $region17: #{tpu_custom_call.1} parent=1 // pred_fallthru
      _
    // Predicated region
    $region18: #{tpu_custom_call.1} parent=1 // pred_check
      _
    $region19: #{tpu_custom_call.1} parent=1 // pred_check_branch
      %20 = sbr.rel (0) target = $region21
    $region20: #{tpu_custom_call.1} parent=1 // pred_region
      _
    $region21: #{tpu_custom_call.1} parent=1 // pred_fallthru
      _
    %p22 = scmp.eq.s32.totalorder 0, 0
    // Predicated region
    $region22: #{tpu_custom_call.1} parent=1 // pred_check
      %p23 = pneg %p22
    $region23: #{tpu_custom_call.1} parent=1 // pred_check_branch
      %25 = sbr.rel (%p23) target = $region25
    $region24: #{tpu_custom_call.1} parent=1 // pred_region
      %vm26 = vcmask 517120
      %27 = vst.msk [vmem:[#allocation2] sm:$0x3] %vm26, 0.0
    $region25: #{tpu_custom_call.1} parent=1 // pred_fallthru
      _
    %v28 = vld [vmem:[%s0] sm:$0xf]
    %v29 = vld [vmem:[%s0 + $0x4] sm:$0xf]
    %v30 = vld [vmem:[%s0 + $0x8] sm:$0xf]
    %v31 = vld [vmem:[%s0 + $0xc] sm:$0xf]
    %v32 = vld [vmem:[%s0 + $0x10] sm:$0xf]
    %v33 = vld [vmem:[%s0 + $0x14] sm:$0xf]
    %v34 = vld [vmem:[%s0 + $0x18] sm:$0xf]
    %v35 = vld [vmem:[%s0 + $0x1c] sm:$0xf]
    %v36 = vld [vmem:[%s0 + $0x20] sm:$0xf]
    %v37 = vld [vmem:[%s0 + $0x24] sm:$0xf]
    %v38 = vld [vmem:[%s0 + $0x28] sm:$0xf]
    %v39 = vld [vmem:[%s0 + $0x2c] sm:$0xf]
    %v40 = vld [vmem:[%s0 + $0x30] sm:$0xf]
    %v41 = vld [vmem:[%s0 + $0x34] sm:$0xf]
    %v42 = vld [vmem:[%s0 + $0x38] sm:$0xf]
    %v43 = vld [vmem:[%s0 + $0x3c] sm:$0xf]
    %v44 = vld [vmem:[%s0 + $0x40] sm:$0xf]
    %v45 = vld [vmem:[%s0 + $0x44] sm:$0xf]
    %v46 = vld [vmem:[%s0 + $0x48] sm:$0xf]
    %v47 = vld [vmem:[%s0 + $0x4c] sm:$0xf]
    %v48 = vld [vmem:[%s0 + $0x50] sm:$0xf]
    %v49 = vld [vmem:[%s0 + $0x54] sm:$0xf]
    %v50 = vld [vmem:[%s0 + $0x58] sm:$0xf]
    %v51 = vld [vmem:[%s0 + $0x5c] sm:$0xf]
    %v52 = vld [vmem:[%s0 + $0x60] sm:$0xf]
    %v53 = vld [vmem:[%s0 + $0x64] sm:$0xf]
    %v54 = vld [vmem:[%s0 + $0x68] sm:$0xf]
    %v55 = vld [vmem:[%s0 + $0x6c] sm:$0xf]
    %v56 = vld [vmem:[%s0 + $0x70] sm:$0xf]
    %v57 = vld [vmem:[%s0 + $0x74] sm:$0xf]
    %v58 = vld [vmem:[%s0 + $0x78] sm:$0xf]
    %v59 = vld [vmem:[%s0 + $0x7c] sm:$0xf]
    %v60 = vld [vmem:[%s0 + $0x80] sm:$0xf]
    %v61 = vld [vmem:[%s0 + $0x84] sm:$0xf]
    %v62 = vld [vmem:[%s0 + $0x88] sm:$0xf]
    %v63 = vld [vmem:[%s0 + $0x8c] sm:$0xf]
    %v64 = vld [vmem:[%s0 + $0x90] sm:$0xf]
    %v65 = vld [vmem:[%s0 + $0x94] sm:$0xf]
    %v66 = vld [vmem:[%s0 + $0x98] sm:$0xf]
    %v67 = vld [vmem:[%s0 + $0x9c] sm:$0xf]
    %v68 = vld [vmem:[%s0 + $0xa0] sm:$0xf]
    %v69 = vld [vmem:[%s0 + $0xa4] sm:$0xf]
    %v70 = vld [vmem:[%s0 + $0xa8] sm:$0xf]
    %v71 = vld [vmem:[%s0 + $0xac] sm:$0xf]
    %v72 = vld [vmem:[%s0 + $0xb0] sm:$0xf]
    %v73 = vld [vmem:[%s0 + $0xb4] sm:$0xf]
    %v74 = vld [vmem:[%s0 + $0xb8] sm:$0xf]
    %v75 = vld [vmem:[%s0 + $0xbc] sm:$0xf]
    %v76 = vld [vmem:[%s0 + $0xc0] sm:$0xf]
    %v77 = vld [vmem:[%s0 + $0xc4] sm:$0xf]
    %v78 = vld [vmem:[%s0 + $0xc8] sm:$0xf]
    %v79 = vld [vmem:[%s0 + $0xcc] sm:$0xf]
    %v80 = vld [vmem:[%s0 + $0xd0] sm:$0xf]
    %v81 = vld [vmem:[%s0 + $0xd4] sm:$0xf]
    %v82 = vld [vmem:[%s0 + $0xd8] sm:$0xf]
    %v83 = vld [vmem:[%s0 + $0xdc] sm:$0xf]
    %v84 = vld [vmem:[%s0 + $0xe0] sm:$0xf]
    %v85 = vld [vmem:[%s0 + $0xe4] sm:$0xf]
    %v86 = vld [vmem:[%s0 + $0xe8] sm:$0xf]
    %v87 = vld [vmem:[%s0 + $0xec] sm:$0xf]
    %v88 = vld [vmem:[%s0 + $0xf0] sm:$0xf]
    %v89 = vld [vmem:[%s0 + $0xf4] sm:$0xf]
    %v90 = vld [vmem:[%s0 + $0xf8] sm:$0xf]
    %v91 = vld [vmem:[%s0 + $0xfc] sm:$0xf]
    %v92 = vld [vmem:[%s0 + $0x100] sm:$0xf]
    %v93 = vld [vmem:[%s0 + $0x104] sm:$0xf]
    %v94 = vld [vmem:[%s0 + $0x108] sm:$0xf]
    %v95 = vld [vmem:[%s0 + $0x10c] sm:$0xf]
    %v96 = vld [vmem:[%s0 + $0x110] sm:$0xf]
    %v97 = vld [vmem:[%s0 + $0x114] sm:$0xf]
    %v98 = vld [vmem:[%s0 + $0x118] sm:$0xf]
    %v99 = vld [vmem:[%s0 + $0x11c] sm:$0xf]
    %v100 = vld [vmem:[%s0 + $0x120] sm:$0xf]
    %v101 = vld [vmem:[%s0 + $0x124] sm:$0xf]
    %v102 = vld [vmem:[%s0 + $0x128] sm:$0xf]
    %v103 = vld [vmem:[%s0 + $0x12c] sm:$0xf]
    %v104 = vld [vmem:[%s0 + $0x130] sm:$0xf]
    %v105 = vld [vmem:[%s0 + $0x134] sm:$0xf]
    %v106 = vld [vmem:[%s0 + $0x138] sm:$0xf]
    %v107 = vld [vmem:[%s0 + $0x13c] sm:$0xf]
    %v108 = vld [vmem:[%s0 + $0x140] sm:$0xf]
    %v109 = vld [vmem:[%s0 + $0x144] sm:$0xf]
    %v110 = vld [vmem:[%s0 + $0x148] sm:$0xf]
    %v111 = vld [vmem:[%s0 + $0x14c] sm:$0xf]
    %v112 = vld [vmem:[%s0 + $0x150] sm:$0xf]
    %v113 = vld [vmem:[%s0 + $0x154] sm:$0xf]
    %v114 = vld [vmem:[%s0 + $0x158] sm:$0xf]
    %v115 = vld [vmem:[%s0 + $0x15c] sm:$0xf]
    %v116 = vld [vmem:[%s0 + $0x160] sm:$0xf]
    %v117 = vld [vmem:[%s0 + $0x164] sm:$0xf]
    %v118 = vld [vmem:[%s0 + $0x168] sm:$0xf]
    %v119 = vld [vmem:[%s0 + $0x16c] sm:$0xf]
    %v120 = vld [vmem:[%s0 + $0x170] sm:$0xf]
    %v121 = vld [vmem:[%s0 + $0x174] sm:$0xf]
    %v122 = vld [vmem:[%s0 + $0x178] sm:$0xf]
    %v123 = vld [vmem:[%s0 + $0x17c] sm:$0xf]
    %v124 = vld [vmem:[%s0 + $0x180] sm:$0xf]
    %v125 = vld [vmem:[%s0 + $0x184] sm:$0xf]
    %v126 = vld [vmem:[%s0 + $0x188] sm:$0xf]
    %v127 = vld [vmem:[%s0 + $0x18c] sm:$0xf]
    %v128 = vld [vmem:[%s0 + $0x190] sm:$0xf]
    %v129 = vld [vmem:[%s0 + $0x194] sm:$0xf]
    %v130 = vld [vmem:[%s0 + $0x198] sm:$0xf]
    %v131 = vld [vmem:[%s0 + $0x19c] sm:$0xf]
    %v132 = vld [vmem:[%s0 + $0x1a0] sm:$0xf]
    %v133 = vld [vmem:[%s0 + $0x1a4] sm:$0xf]
    %v134 = vld [vmem:[%s0 + $0x1a8] sm:$0xf]
    %v135 = vld [vmem:[%s0 + $0x1ac] sm:$0xf]
    %v136 = vld [vmem:[%s0 + $0x1b0] sm:$0xf]
    %v137 = vld [vmem:[%s0 + $0x1b4] sm:$0xf]
    %v138 = vld [vmem:[%s0 + $0x1b8] sm:$0xf]
    %v139 = vld [vmem:[%s0 + $0x1bc] sm:$0xf]
    %v140 = vld [vmem:[%s0 + $0x1c0] sm:$0xf]
    %v141 = vld [vmem:[%s0 + $0x1c4] sm:$0xf]
    %v142 = vld [vmem:[%s0 + $0x1c8] sm:$0xf]
    %v143 = vld [vmem:[%s0 + $0x1cc] sm:$0xf]
    %v144 = vld [vmem:[%s0 + $0x1d0] sm:$0xf]
    %v145 = vld [vmem:[%s0 + $0x1d4] sm:$0xf]
    %v146 = vld [vmem:[%s0 + $0x1d8] sm:$0xf]
    %v147 = vld [vmem:[%s0 + $0x1dc] sm:$0xf]
    %v148 = vld [vmem:[%s0 + $0x1e0] sm:$0xf]
    %v149 = vld [vmem:[%s0 + $0x1e4] sm:$0xf]
    %v150 = vld [vmem:[%s0 + $0x1e8] sm:$0xf]
    %v151 = vld [vmem:[%s0 + $0x1ec] sm:$0xf]
    %v152 = vld [vmem:[%s0 + $0x1f0] sm:$0xf]
    %v153 = vld [vmem:[%s0 + $0x1f4] sm:$0xf]
    %v154 = vld [vmem:[%s0 + $0x1f8] sm:$0xf]
    %v155 = vld [vmem:[%s0 + $0x1fc] sm:$0xf]
    %v156 = vld [vmem:[%s0 + $0x200] sm:$0xf]
    %v157 = vld [vmem:[%s0 + $0x204] sm:$0xf]
    %v158 = vld [vmem:[%s0 + $0x208] sm:$0xf]
    %v159 = vld [vmem:[%s0 + $0x20c] sm:$0xf]
    %v160 = vld [vmem:[%s0 + $0x210] sm:$0xf]
    %v161 = vld [vmem:[%s0 + $0x214] sm:$0xf]
    %v162 = vld [vmem:[%s0 + $0x218] sm:$0xf]
    %v163 = vld [vmem:[%s0 + $0x21c] sm:$0xf]
    %v164 = vld [vmem:[%s0 + $0x220] sm:$0xf]
    %v165 = vld [vmem:[%s0 + $0x224] sm:$0xf]
    %v166 = vld [vmem:[%s0 + $0x228] sm:$0xf]
    %v167 = vld [vmem:[%s0 + $0x22c] sm:$0xf]
    %v168 = vld [vmem:[%s0 + $0x230] sm:$0xf]
    %v169 = vld [vmem:[%s0 + $0x234] sm:$0xf]
    %v170 = vld [vmem:[%s0 + $0x238] sm:$0xf]
    %v171 = vld [vmem:[%s0 + $0x23c] sm:$0xf]
    %v172 = vld [vmem:[%s0 + $0x240] sm:$0xf]
    %v173 = vld [vmem:[%s0 + $0x244] sm:$0xf]
    %v174 = vld [vmem:[%s0 + $0x248] sm:$0xf]
    %v175 = vld [vmem:[%s0 + $0x24c] sm:$0xf]
    %v176 = vld [vmem:[%s0 + $0x250] sm:$0xf]
    %v177 = vld [vmem:[%s0 + $0x254] sm:$0xf]
    %v178 = vld [vmem:[%s0 + $0x258] sm:$0xf]
    %v179 = vld [vmem:[%s0 + $0x25c] sm:$0xf]
    %v180 = vld [vmem:[%s0 + $0x260] sm:$0xf]
    %v181 = vld [vmem:[%s0 + $0x264] sm:$0xf]
    %v182 = vld [vmem:[%s0 + $0x268] sm:$0xf]
    %v183 = vld [vmem:[%s0 + $0x26c] sm:$0xf]
    %v184 = vld [vmem:[%s0 + $0x270] sm:$0xf]
    %v185 = vld [vmem:[%s0 + $0x274] sm:$0xf]
    %v186 = vld [vmem:[%s0 + $0x278] sm:$0xf]
    %v187 = vld [vmem:[%s0 + $0x27c] sm:$0xf]
    %v188 = vld [vmem:[%s0 + $0x280] sm:$0xf]
    %v189 = vld [vmem:[%s0 + $0x284] sm:$0xf]
    %v190 = vld [vmem:[%s0 + $0x288] sm:$0xf]
    %v191 = vld [vmem:[%s0 + $0x28c] sm:$0xf]
    %v192 = vld [vmem:[%s0 + $0x290] sm:$0xf]
    %v193 = vld [vmem:[%s0 + $0x294] sm:$0xf]
    %v194 = vld [vmem:[%s0 + $0x298] sm:$0xf]
    %v195 = vld [vmem:[%s0 + $0x29c] sm:$0xf]
    %v196 = vld [vmem:[%s0 + $0x2a0] sm:$0xf]
    %v197 = vld [vmem:[%s0 + $0x2a4] sm:$0xf]
    %v198 = vld [vmem:[%s0 + $0x2a8] sm:$0xf]
    %v199 = vld [vmem:[%s0 + $0x2ac] sm:$0xf]
    %v200 = vld [vmem:[%s0 + $0x2b0] sm:$0xf]
    %v201 = vld [vmem:[%s0 + $0x2b4] sm:$0xf]
    %v202 = vld [vmem:[%s0 + $0x2b8] sm:$0xf]
    %v203 = vld [vmem:[%s0 + $0x2bc] sm:$0xf]
    %v204 = vld [vmem:[%s0 + $0x2c0] sm:$0xf]
    %v205 = vld [vmem:[%s0 + $0x2c4] sm:$0xf]
    %v206 = vld [vmem:[%s0 + $0x2c8] sm:$0xf]
    %v207 = vld [vmem:[%s0 + $0x2cc] sm:$0xf]
    %v208 = vld [vmem:[%s0 + $0x2d0] sm:$0xf]
    %v209 = vld [vmem:[%s0 + $0x2d4] sm:$0xf]
    %v210 = vld [vmem:[%s0 + $0x2d8] sm:$0xf]
    %v211 = vld [vmem:[%s0 + $0x2dc] sm:$0xf]
    %v212 = vld [vmem:[%s0 + $0x2e0] sm:$0xf]
    %v213 = vld [vmem:[%s0 + $0x2e4] sm:$0xf]
    %v214 = vld [vmem:[%s0 + $0x2e8] sm:$0xf]
    %v215 = vld [vmem:[%s0 + $0x2ec] sm:$0xf]
    %v216 = vld [vmem:[%s0 + $0x2f0] sm:$0xf]
    %v217 = vld [vmem:[%s0 + $0x2f4] sm:$0xf]
    %v218 = vld [vmem:[%s0 + $0x2f8] sm:$0xf]
    %v219 = vld [vmem:[%s0 + $0x2fc] sm:$0xf]
    %v220 = vld [vmem:[%s0 + $0x300] sm:$0xf]
    %v221 = vld [vmem:[%s0 + $0x304] sm:$0xf]
    %v222 = vld [vmem:[%s0 + $0x308] sm:$0xf]
    %v223 = vld [vmem:[%s0 + $0x30c] sm:$0xf]
    %v224 = vld [vmem:[%s0 + $0x310] sm:$0xf]
    %v225 = vld [vmem:[%s0 + $0x314] sm:$0xf]
    %v226 = vld [vmem:[%s0 + $0x318] sm:$0xf]
    %v227 = vld [vmem:[%s0 + $0x31c] sm:$0xf]
    %v228 = vld [vmem:[%s0 + $0x320] sm:$0xf]
    %v229 = vld [vmem:[%s0 + $0x324] sm:$0xf]
    %v230 = vld [vmem:[%s0 + $0x328] sm:$0xf]
    %v231 = vld [vmem:[%s0 + $0x32c] sm:$0xf]
    %v232 = vld [vmem:[%s0 + $0x330] sm:$0xf]
    %v233 = vld [vmem:[%s0 + $0x334] sm:$0xf]
    %v234 = vld [vmem:[%s0 + $0x338] sm:$0xf]
    %v235 = vld [vmem:[%s0 + $0x33c] sm:$0xf]
    %v236 = vld [vmem:[%s0 + $0x340] sm:$0xf]
    %v237 = vld [vmem:[%s0 + $0x344] sm:$0xf]
    %v238 = vld [vmem:[%s0 + $0x348] sm:$0xf]
    %v239 = vld [vmem:[%s0 + $0x34c] sm:$0xf]
    %v240 = vld [vmem:[%s0 + $0x350] sm:$0xf]
    %v241 = vld [vmem:[%s0 + $0x354] sm:$0xf]
    %v242 = vld [vmem:[%s0 + $0x358] sm:$0xf]
    %v243 = vld [vmem:[%s0 + $0x35c] sm:$0xf]
    %v244 = vld [vmem:[%s0 + $0x360] sm:$0xf]
    %v245 = vld [vmem:[%s0 + $0x364] sm:$0xf]
    %v246 = vld [vmem:[%s0 + $0x368] sm:$0xf]
    %v247 = vld [vmem:[%s0 + $0x36c] sm:$0xf]
    %v248 = vld [vmem:[%s0 + $0x370] sm:$0xf]
    %v249 = vld [vmem:[%s0 + $0x374] sm:$0xf]
    %v250 = vld [vmem:[%s0 + $0x378] sm:$0xf]
    %v251 = vld [vmem:[%s0 + $0x37c] sm:$0xf]
    %v252 = vld [vmem:[%s0 + $0x380] sm:$0xf]
    %v253 = vld [vmem:[%s0 + $0x384] sm:$0xf]
    %v254 = vld [vmem:[%s0 + $0x388] sm:$0xf]
    %v255 = vld [vmem:[%s0 + $0x38c] sm:$0xf]
    %v256 = vld [vmem:[%s0 + $0x390] sm:$0xf]
    %v257 = vld [vmem:[%s0 + $0x394] sm:$0xf]
    %v258 = vld [vmem:[%s0 + $0x398] sm:$0xf]
    %v259 = vld [vmem:[%s0 + $0x39c] sm:$0xf]
    %v260 = vld [vmem:[%s0 + $0x3a0] sm:$0xf]
    %v261 = vld [vmem:[%s0 + $0x3a4] sm:$0xf]
    %v262 = vld [vmem:[%s0 + $0x3a8] sm:$0xf]
    %v263 = vld [vmem:[%s0 + $0x3ac] sm:$0xf]
    %v264 = vld [vmem:[%s0 + $0x3b0] sm:$0xf]
    %v265 = vld [vmem:[%s0 + $0x3b4] sm:$0xf]
    %v266 = vld [vmem:[%s0 + $0x3b8] sm:$0xf]
    %v267 = vld [vmem:[%s0 + $0x3bc] sm:$0xf]
    %v268 = vld [vmem:[%s0 + $0x3c0] sm:$0xf]
    %v269 = vld [vmem:[%s0 + $0x3c4] sm:$0xf]
    %v270 = vld [vmem:[%s0 + $0x3c8] sm:$0xf]
    %v271 = vld [vmem:[%s0 + $0x3cc] sm:$0xf]
    %v272 = vld [vmem:[%s0 + $0x3d0] sm:$0xf]
    %v273 = vld [vmem:[%s0 + $0x3d4] sm:$0xf]
    %v274 = vld [vmem:[%s0 + $0x3d8] sm:$0xf]
    %v275 = vld [vmem:[%s0 + $0x3dc] sm:$0xf]
    %v276 = vld [vmem:[%s0 + $0x3e0] sm:$0xf]
    %v277 = vld [vmem:[%s0 + $0x3e4] sm:$0xf]
    %v278 = vld [vmem:[%s0 + $0x3e8] sm:$0xf]
    %v279 = vld [vmem:[%s0 + $0x3ec] sm:$0xf]
    %v280 = vld [vmem:[%s0 + $0x3f0] sm:$0xf]
    %v281 = vld [vmem:[%s0 + $0x3f4] sm:$0xf]
    %v282 = vld [vmem:[%s0 + $0x3f8] sm:$0xf]
    %v283 = vld [vmem:[%s0 + $0x3fc] sm:$0xf]
    %v284 = vld [vmem:[%s0 + $0x400] sm:$0xf]
    %v285 = vld [vmem:[%s0 + $0x404] sm:$0xf]
    %v286 = vld [vmem:[%s0 + $0x408] sm:$0xf]
    %v287 = vld [vmem:[%s0 + $0x40c] sm:$0xf]
    %v288 = vld [vmem:[%s0 + $0x410] sm:$0xf]
    %v289 = vld [vmem:[%s0 + $0x414] sm:$0xf]
    %v290 = vld [vmem:[%s0 + $0x418] sm:$0xf]
    %v291 = vld [vmem:[%s0 + $0x41c] sm:$0xf]
    %v292 = vld [vmem:[%s0 + $0x420] sm:$0xf]
    %v293 = vld [vmem:[%s0 + $0x424] sm:$0xf]
    %v294 = vld [vmem:[%s0 + $0x428] sm:$0xf]
    %v295 = vld [vmem:[%s0 + $0x42c] sm:$0xf]
    %v296 = vld [vmem:[%s0 + $0x430] sm:$0xf]
    %v297 = vld [vmem:[%s0 + $0x434] sm:$0xf]
    %v298 = vld [vmem:[%s0 + $0x438] sm:$0xf]
    %v299 = vld [vmem:[%s0 + $0x43c] sm:$0xf]
    %v300 = vld [vmem:[%s0 + $0x440] sm:$0xf]
    %v301 = vld [vmem:[%s0 + $0x444] sm:$0xf]
    %v302 = vld [vmem:[%s0 + $0x448] sm:$0xf]
    %v303 = vld [vmem:[%s0 + $0x44c] sm:$0xf]
    %v304 = vld [vmem:[%s0 + $0x450] sm:$0xf]
    %v305 = vld [vmem:[%s0 + $0x454] sm:$0xf]
    %v306 = vld [vmem:[%s0 + $0x458] sm:$0xf]
    %v307 = vld [vmem:[%s0 + $0x45c] sm:$0xf]
    %v308 = vld [vmem:[%s0 + $0x460] sm:$0xf]
    %v309 = vld [vmem:[%s0 + $0x464] sm:$0xf]
    %v310 = vld [vmem:[%s0 + $0x468] sm:$0xf]
    %v311 = vld [vmem:[%s0 + $0x46c] sm:$0xf]
    %v312 = vld [vmem:[%s0 + $0x470] sm:$0xf]
    %v313 = vld [vmem:[%s0 + $0x474] sm:$0xf]
    %v314 = vld [vmem:[%s0 + $0x478] sm:$0xf]
    %v315 = vld [vmem:[%s0 + $0x47c] sm:$0xf]
    %v316 = vld [vmem:[%s0 + $0x480] sm:$0xf]
    %v317 = vld [vmem:[%s0 + $0x484] sm:$0xf]
    %v318 = vld [vmem:[%s0 + $0x488] sm:$0xf]
    %v319 = vld [vmem:[%s0 + $0x48c] sm:$0xf]
    %v320 = vld [vmem:[%s0 + $0x490] sm:$0xf]
    %v321 = vld [vmem:[%s0 + $0x494] sm:$0xf]
    %v322 = vld [vmem:[%s0 + $0x498] sm:$0xf]
    %v323 = vld [vmem:[%s0 + $0x49c] sm:$0xf]
    %v324 = vld [vmem:[%s1] sm:$0xf]
    %v325 = vld [vmem:[%s1 + $0x4] sm:$0xf]
    %v326 = vld [vmem:[%s1 + $0x8] sm:$0xf]
    %v327 = vld [vmem:[%s1 + $0xc] sm:$0xf]
    %v328 = vld [vmem:[%s1 + $0x10] sm:$0xf]
    %v329 = vld [vmem:[%s1 + $0x14] sm:$0xf]
    %v330 = vld [vmem:[%s1 + $0x18] sm:$0xf]
    %v331 = vld [vmem:[%s1 + $0x1c] sm:$0xf]
    %v332 = vld [vmem:[%s1 + $0x20] sm:$0xf]
    %v333 = vld [vmem:[%s1 + $0x24] sm:$0xf]
    %v334 = vld [vmem:[%s1 + $0x28] sm:$0x1]
    %v335 = vld [vmem:[%s2] sm:$0x1]
    %v337 = vlaneseq
    %v338 = vshrl.u32 %v337, 7
    %v339 = vsub.s32 0, %v338
    %v340 = vrot.slane %v335, %v339
    %v638 = vunpack.c.l.b16 %v28
    %v639 = vunpack.c.l.b16 %v29
    %v640 = vunpack.c.l.b16 %v30
    %v641 = vunpack.c.l.b16 %v31
    %v642 = vunpack.c.l.b16 %v32
    %v643 = vunpack.c.l.b16 %v33
    %v644 = vunpack.c.l.b16 %v34
    %v645 = vunpack.c.l.b16 %v35
    %v646 = vunpack.c.l.b16 %v36
    %v647 = vunpack.c.l.b16 %v37
    %v648 = vunpack.c.l.b16 %v38
    %v649 = vunpack.c.l.b16 %v39
    %v650 = vunpack.c.l.b16 %v40
    %v651 = vunpack.c.l.b16 %v41
    %v652 = vunpack.c.l.b16 %v42
    %v653 = vunpack.c.l.b16 %v43
    %v654 = vunpack.c.l.b16 %v44
    %v655 = vunpack.c.l.b16 %v45
    %v656 = vunpack.c.l.b16 %v46
    %v657 = vunpack.c.l.b16 %v47
    %v658 = vunpack.c.l.b16 %v48
    %v659 = vunpack.c.l.b16 %v49
    %v660 = vunpack.c.l.b16 %v50
    %v661 = vunpack.c.l.b16 %v51
    %v662 = vunpack.c.l.b16 %v52
    %v663 = vunpack.c.l.b16 %v53
    %v664 = vunpack.c.l.b16 %v54
    %v665 = vunpack.c.l.b16 %v55
    %v666 = vunpack.c.l.b16 %v56
    %v667 = vunpack.c.l.b16 %v57
    %v668 = vunpack.c.l.b16 %v58
    %v669 = vunpack.c.l.b16 %v59
    %v670 = vunpack.c.l.b16 %v60
    %v671 = vunpack.c.l.b16 %v61
    %v672 = vunpack.c.l.b16 %v62
    %v673 = vunpack.c.l.b16 %v63
    %v674 = vunpack.c.l.b16 %v64
    %v675 = vunpack.c.l.b16 %v65
    %v676 = vunpack.c.l.b16 %v66
    %v677 = vunpack.c.l.b16 %v67
    %v678 = vunpack.c.l.b16 %v68
    %v679 = vunpack.c.l.b16 %v69
    %v680 = vunpack.c.l.b16 %v70
    %v681 = vunpack.c.l.b16 %v71
    %v682 = vunpack.c.l.b16 %v72
    %v683 = vunpack.c.l.b16 %v73
    %v684 = vunpack.c.l.b16 %v74
    %v685 = vunpack.c.l.b16 %v75
    %v686 = vunpack.c.l.b16 %v76
    %v687 = vunpack.c.l.b16 %v77
    %v688 = vunpack.c.l.b16 %v78
    %v689 = vunpack.c.l.b16 %v79
    %v690 = vunpack.c.l.b16 %v80
    %v691 = vunpack.c.l.b16 %v81
    %v692 = vunpack.c.l.b16 %v82
    %v693 = vunpack.c.l.b16 %v83
    %v694 = vunpack.c.l.b16 %v84
    %v695 = vunpack.c.l.b16 %v85
    %v696 = vunpack.c.l.b16 %v86
    %v697 = vunpack.c.l.b16 %v87
    %v698 = vunpack.c.l.b16 %v88
    %v699 = vunpack.c.l.b16 %v89
    %v700 = vunpack.c.l.b16 %v90
    %v701 = vunpack.c.l.b16 %v91
    %v702 = vunpack.c.l.b16 %v92
    %v703 = vunpack.c.l.b16 %v93
    %v704 = vunpack.c.l.b16 %v94
    %v705 = vunpack.c.l.b16 %v95
    %v706 = vunpack.c.l.b16 %v96
    %v707 = vunpack.c.l.b16 %v97
    %v708 = vunpack.c.l.b16 %v98
    %v709 = vunpack.c.l.b16 %v99
    %v710 = vunpack.c.l.b16 %v100
    %v711 = vunpack.c.l.b16 %v101
    %v712 = vunpack.c.l.b16 %v102
    %v713 = vunpack.c.l.b16 %v103
    %v714 = vunpack.c.l.b16 %v104
    %v715 = vunpack.c.l.b16 %v105
    %v716 = vunpack.c.l.b16 %v106
    %v717 = vunpack.c.l.b16 %v107
    %v718 = vunpack.c.l.b16 %v108
    %v719 = vunpack.c.l.b16 %v109
    %v720 = vunpack.c.l.b16 %v110
    %v721 = vunpack.c.l.b16 %v111
    %v722 = vunpack.c.l.b16 %v112
    %v723 = vunpack.c.l.b16 %v113
    %v724 = vunpack.c.l.b16 %v114
    %v725 = vunpack.c.l.b16 %v115
    %v726 = vunpack.c.l.b16 %v116
    %v727 = vunpack.c.l.b16 %v117
    %v728 = vunpack.c.l.b16 %v118
    %v729 = vunpack.c.l.b16 %v119
    %v730 = vunpack.c.l.b16 %v120
    %v731 = vunpack.c.l.b16 %v121
    %v732 = vunpack.c.l.b16 %v122
    %v733 = vunpack.c.l.b16 %v123
    %v734 = vunpack.c.l.b16 %v124
    %v735 = vunpack.c.l.b16 %v125
    %v736 = vunpack.c.l.b16 %v126
    %v737 = vunpack.c.l.b16 %v127
    %v738 = vunpack.c.l.b16 %v128
    %v739 = vunpack.c.l.b16 %v129
    %v740 = vunpack.c.l.b16 %v130
    %v741 = vunpack.c.l.b16 %v131
    %v742 = vunpack.c.l.b16 %v132
    %v743 = vunpack.c.l.b16 %v133
    %v744 = vunpack.c.l.b16 %v134
    %v745 = vunpack.c.l.b16 %v135
    %v746 = vunpack.c.l.b16 %v136
    %v747 = vunpack.c.l.b16 %v137
    %v748 = vunpack.c.l.b16 %v138
    %v749 = vunpack.c.l.b16 %v139
    %v750 = vunpack.c.l.b16 %v140
    %v751 = vunpack.c.l.b16 %v141
    %v752 = vunpack.c.l.b16 %v142
    %v753 = vunpack.c.l.b16 %v143
    %v754 = vunpack.c.l.b16 %v144
    %v755 = vunpack.c.l.b16 %v145
    %v756 = vunpack.c.l.b16 %v146
    %v757 = vunpack.c.l.b16 %v147
    %v758 = vunpack.c.l.b16 %v148
    %v759 = vunpack.c.l.b16 %v149
    %v760 = vunpack.c.l.b16 %v150
    %v761 = vunpack.c.l.b16 %v151
    %v762 = vunpack.c.l.b16 %v152
    %v763 = vunpack.c.l.b16 %v153
    %v764 = vunpack.c.l.b16 %v154
    %v765 = vunpack.c.l.b16 %v155
    %v766 = vunpack.c.l.b16 %v156
    %v767 = vunpack.c.l.b16 %v157
    %v768 = vunpack.c.l.b16 %v158
    %v769 = vunpack.c.l.b16 %v159
    %v770 = vunpack.c.l.b16 %v160
    %v771 = vunpack.c.l.b16 %v161
    %v772 = vunpack.c.l.b16 %v162
    %v773 = vunpack.c.l.b16 %v163
    %v774 = vunpack.c.l.b16 %v164
    %v775 = vunpack.c.l.b16 %v165
    %v776 = vunpack.c.l.b16 %v166
    %v777 = vunpack.c.l.b16 %v167
    %v778 = vunpack.c.l.b16 %v168
    %v779 = vunpack.c.l.b16 %v169
    %v780 = vunpack.c.l.b16 %v170
    %v781 = vunpack.c.l.b16 %v171
    %v782 = vunpack.c.l.b16 %v172
    %v783 = vunpack.c.l.b16 %v173
    %v784 = vunpack.c.l.b16 %v174
    %v785 = vunpack.c.l.b16 %v175
    %v786 = vunpack.c.l.b16 %v176
    %v787 = vunpack.c.l.b16 %v177
    %v788 = vunpack.c.l.b16 %v178
    %v789 = vunpack.c.l.b16 %v179
    %v790 = vunpack.c.l.b16 %v180
    %v791 = vunpack.c.l.b16 %v181
    %v792 = vunpack.c.l.b16 %v182
    %v793 = vunpack.c.l.b16 %v183
    %v794 = vunpack.c.l.b16 %v184
    %v795 = vunpack.c.l.b16 %v185
    %v796 = vunpack.c.l.b16 %v186
    %v797 = vunpack.c.l.b16 %v187
    %v798 = vunpack.c.l.b16 %v188
    %v799 = vunpack.c.l.b16 %v189
    %v800 = vunpack.c.l.b16 %v190
    %v801 = vunpack.c.l.b16 %v191
    %v802 = vunpack.c.l.b16 %v192
    %v803 = vunpack.c.l.b16 %v193
    %v804 = vunpack.c.l.b16 %v194
    %v805 = vunpack.c.l.b16 %v195
    %v806 = vunpack.c.l.b16 %v196
    %v807 = vunpack.c.l.b16 %v197
    %v808 = vunpack.c.l.b16 %v198
    %v809 = vunpack.c.l.b16 %v199
    %v810 = vunpack.c.l.b16 %v200
    %v811 = vunpack.c.l.b16 %v201
    %v812 = vunpack.c.l.b16 %v202
    %v813 = vunpack.c.l.b16 %v203
    %v814 = vunpack.c.l.b16 %v204
    %v815 = vunpack.c.l.b16 %v205
    %v816 = vunpack.c.l.b16 %v206
    %v817 = vunpack.c.l.b16 %v207
    %v818 = vunpack.c.l.b16 %v208
    %v819 = vunpack.c.l.b16 %v209
    %v820 = vunpack.c.l.b16 %v210
    %v821 = vunpack.c.l.b16 %v211
    %v822 = vunpack.c.l.b16 %v212
    %v823 = vunpack.c.l.b16 %v213
    %v824 = vunpack.c.l.b16 %v214
    %v825 = vunpack.c.l.b16 %v215
    %v826 = vunpack.c.l.b16 %v216
    %v827 = vunpack.c.l.b16 %v217
    %v828 = vunpack.c.l.b16 %v218
    %v829 = vunpack.c.l.b16 %v219
    %v830 = vunpack.c.l.b16 %v220
    %v831 = vunpack.c.l.b16 %v221
    %v832 = vunpack.c.l.b16 %v222
    %v833 = vunpack.c.l.b16 %v223
    %v834 = vunpack.c.l.b16 %v224
    %v835 = vunpack.c.l.b16 %v225
    %v836 = vunpack.c.l.b16 %v226
    %v837 = vunpack.c.l.b16 %v227
    %v838 = vunpack.c.l.b16 %v228
    %v839 = vunpack.c.l.b16 %v229
    %v840 = vunpack.c.l.b16 %v230
    %v841 = vunpack.c.l.b16 %v231
    %v842 = vunpack.c.l.b16 %v232
    %v843 = vunpack.c.l.b16 %v233
    %v844 = vunpack.c.l.b16 %v234
    %v845 = vunpack.c.l.b16 %v235
    %v846 = vunpack.c.l.b16 %v236
    %v847 = vunpack.c.l.b16 %v237
    %v848 = vunpack.c.l.b16 %v238
    %v849 = vunpack.c.l.b16 %v239
    %v850 = vunpack.c.l.b16 %v240
    %v851 = vunpack.c.l.b16 %v241
    %v852 = vunpack.c.l.b16 %v242
    %v853 = vunpack.c.l.b16 %v243
    %v854 = vunpack.c.l.b16 %v244
    %v855 = vunpack.c.l.b16 %v245
    %v856 = vunpack.c.l.b16 %v246
    %v857 = vunpack.c.l.b16 %v247
    %v858 = vunpack.c.l.b16 %v248
    %v859 = vunpack.c.l.b16 %v249
    %v860 = vunpack.c.l.b16 %v250
    %v861 = vunpack.c.l.b16 %v251
    %v862 = vunpack.c.l.b16 %v252
    %v863 = vunpack.c.l.b16 %v253
    %v864 = vunpack.c.l.b16 %v254
    %v865 = vunpack.c.l.b16 %v255
    %v866 = vunpack.c.l.b16 %v256
    %v867 = vunpack.c.l.b16 %v257
    %v868 = vunpack.c.l.b16 %v258
    %v869 = vunpack.c.l.b16 %v259
    %v870 = vunpack.c.l.b16 %v260
    %v871 = vunpack.c.l.b16 %v261
    %v872 = vunpack.c.l.b16 %v262
    %v873 = vunpack.c.l.b16 %v263
    %v874 = vunpack.c.l.b16 %v264
    %v875 = vunpack.c.l.b16 %v265
    %v876 = vunpack.c.l.b16 %v266
    %v877 = vunpack.c.l.b16 %v267
    %v878 = vunpack.c.l.b16 %v268
    %v879 = vunpack.c.l.b16 %v269
    %v880 = vunpack.c.l.b16 %v270
    %v881 = vunpack.c.l.b16 %v271
    %v882 = vunpack.c.l.b16 %v272
    %v883 = vunpack.c.l.b16 %v273
    %v884 = vunpack.c.l.b16 %v274
    %v885 = vunpack.c.l.b16 %v275
    %v886 = vunpack.c.l.b16 %v276
    %v887 = vunpack.c.l.b16 %v277
    %v888 = vunpack.c.l.b16 %v278
    %v889 = vunpack.c.l.b16 %v279
    %v890 = vunpack.c.l.b16 %v280
    %v891 = vunpack.c.l.b16 %v281
    %v892 = vunpack.c.l.b16 %v282
    %v893 = vunpack.c.l.b16 %v283
    %v894 = vunpack.c.l.b16 %v284
    %v895 = vunpack.c.l.b16 %v285
    %v896 = vunpack.c.l.b16 %v286
    %v897 = vunpack.c.l.b16 %v287
    %v898 = vunpack.c.l.b16 %v288
    %v899 = vunpack.c.l.b16 %v289
    %v900 = vunpack.c.l.b16 %v290
    %v901 = vunpack.c.l.b16 %v291
    %v902 = vunpack.c.l.b16 %v292
    %v903 = vunpack.c.l.b16 %v293
    %v904 = vunpack.c.l.b16 %v294
    %v905 = vunpack.c.l.b16 %v295
    %v906 = vunpack.c.l.b16 %v296
    %v907 = vunpack.c.l.b16 %v297
    %v908 = vunpack.c.l.b16 %v298
    %v909 = vunpack.c.l.b16 %v299
    %v910 = vunpack.c.l.b16 %v300
    %v911 = vunpack.c.l.b16 %v301
    %v912 = vunpack.c.l.b16 %v302
    %v913 = vunpack.c.l.b16 %v303
    %v914 = vunpack.c.l.b16 %v304
    %v915 = vunpack.c.l.b16 %v305
    %v916 = vunpack.c.l.b16 %v306
    %v917 = vunpack.c.l.b16 %v307
    %v918 = vunpack.c.l.b16 %v308
    %v919 = vunpack.c.l.b16 %v309
    %v920 = vunpack.c.l.b16 %v310
    %v921 = vunpack.c.l.b16 %v311
    %v922 = vunpack.c.l.b16 %v312
    %v923 = vunpack.c.l.b16 %v313
    %v924 = vunpack.c.l.b16 %v314
    %v925 = vunpack.c.l.b16 %v315
    %v926 = vunpack.c.l.b16 %v316
    %v927 = vunpack.c.l.b16 %v317
    %v928 = vunpack.c.l.b16 %v318
    %v929 = vunpack.c.l.b16 %v319
    %v930 = vunpack.c.l.b16 %v320
    %v931 = vunpack.c.l.b16 %v321
    %v932 = vunpack.c.l.b16 %v322
    %v933 = vunpack.c.l.b16 %v323
    %v934 = vpack.c.b16 %v639, %v638
    %v935 = vpack.c.b16 %v641, %v640
    %v936 = vpack.c.b16 %v643, %v642
    %v937 = vpack.c.b16 %v645, %v644
    %v938 = vpack.c.b16 %v647, %v646
    %v939 = vpack.c.b16 %v649, %v648
    %v940 = vpack.c.b16 %v651, %v650
    %v941 = vpack.c.b16 %v653, %v652
    %v942 = vpack.c.b16 %v655, %v654
    %v943 = vpack.c.b16 %v657, %v656
    %v944 = vpack.c.b16 %v659, %v658
    %v945 = vpack.c.b16 %v661, %v660
    %v946 = vpack.c.b16 %v663, %v662
    %v947 = vpack.c.b16 %v665, %v664
    %v948 = vpack.c.b16 %v667, %v666
    %v949 = vpack.c.b16 %v669, %v668
    %v950 = vpack.c.b16 %v671, %v670
    %v951 = vpack.c.b16 %v673, %v672
    %v952 = vpack.c.b16 %v675, %v674
    %v953 = vpack.c.b16 %v677, %v676
    %v954 = vpack.c.b16 %v679, %v678
    %v955 = vpack.c.b16 %v681, %v680
    %v956 = vpack.c.b16 %v683, %v682
    %v957 = vpack.c.b16 %v685, %v684
    %v958 = vpack.c.b16 %v687, %v686
    %v959 = vpack.c.b16 %v689, %v688
    %v960 = vpack.c.b16 %v691, %v690
    %v961 = vpack.c.b16 %v693, %v692
    %v962 = vpack.c.b16 %v695, %v694
    %v963 = vpack.c.b16 %v697, %v696
    %v964 = vpack.c.b16 %v699, %v698
    %v965 = vpack.c.b16 %v701, %v700
    %v966 = vpack.c.b16 %v703, %v702
    %v967 = vpack.c.b16 %v705, %v704
    %v968 = vpack.c.b16 %v707, %v706
    %v969 = vpack.c.b16 %v709, %v708
    %v970 = vpack.c.b16 %v711, %v710
    %v971 = vpack.c.b16 %v713, %v712
    %v972 = vpack.c.b16 %v715, %v714
    %v973 = vpack.c.b16 %v717, %v716
    %v974 = vpack.c.b16 %v719, %v718
    %v975 = vpack.c.b16 %v721, %v720
    %v976 = vpack.c.b16 %v723, %v722
    %v977 = vpack.c.b16 %v725, %v724
    %v978 = vpack.c.b16 %v727, %v726
    %v979 = vpack.c.b16 %v729, %v728
    %v980 = vpack.c.b16 %v731, %v730
    %v981 = vpack.c.b16 %v733, %v732
    %v982 = vpack.c.b16 %v735, %v734
    %v983 = vpack.c.b16 %v737, %v736
    %v984 = vpack.c.b16 %v739, %v738
    %v985 = vpack.c.b16 %v741, %v740
    %v986 = vpack.c.b16 %v743, %v742
    %v987 = vpack.c.b16 %v745, %v744
    %v988 = vpack.c.b16 %v747, %v746
    %v989 = vpack.c.b16 %v749, %v748
    %v990 = vpack.c.b16 %v751, %v750
    %v991 = vpack.c.b16 %v753, %v752
    %v992 = vpack.c.b16 %v755, %v754
    %v993 = vpack.c.b16 %v757, %v756
    %v994 = vpack.c.b16 %v759, %v758
    %v995 = vpack.c.b16 %v761, %v760
    %v996 = vpack.c.b16 %v763, %v762
    %v997 = vpack.c.b16 %v765, %v764
    %v998 = vpack.c.b16 %v767, %v766
    %v999 = vpack.c.b16 %v769, %v768
    %v1000 = vpack.c.b16 %v771, %v770
    %v1001 = vpack.c.b16 %v773, %v772
    %v1002 = vpack.c.b16 %v775, %v774
    %v1003 = vpack.c.b16 %v777, %v776
    %v1004 = vpack.c.b16 %v779, %v778
    %v1005 = vpack.c.b16 %v781, %v780
    %v1006 = vpack.c.b16 %v783, %v782
    %v1007 = vpack.c.b16 %v785, %v784
    %v1008 = vpack.c.b16 %v787, %v786
    %v1009 = vpack.c.b16 %v789, %v788
    %v1010 = vpack.c.b16 %v791, %v790
    %v1011 = vpack.c.b16 %v793, %v792
    %v1012 = vpack.c.b16 %v795, %v794
    %v1013 = vpack.c.b16 %v797, %v796
    %v1014 = vpack.c.b16 %v799, %v798
    %v1015 = vpack.c.b16 %v801, %v800
    %v1016 = vpack.c.b16 %v803, %v802
    %v1017 = vpack.c.b16 %v805, %v804
    %v1018 = vpack.c.b16 %v807, %v806
    %v1019 = vpack.c.b16 %v809, %v808
    %v1020 = vpack.c.b16 %v811, %v810
    %v1021 = vpack.c.b16 %v813, %v812
    %v1022 = vpack.c.b16 %v815, %v814
    %v1023 = vpack.c.b16 %v817, %v816
    %v1024 = vpack.c.b16 %v819, %v818
    %v1025 = vpack.c.b16 %v821, %v820
    %v1026 = vpack.c.b16 %v823, %v822
    %v1027 = vpack.c.b16 %v825, %v824
    %v1028 = vpack.c.b16 %v827, %v826
    %v1029 = vpack.c.b16 %v829, %v828
    %v1030 = vpack.c.b16 %v831, %v830
    %v1031 = vpack.c.b16 %v833, %v832
    %v1032 = vpack.c.b16 %v835, %v834
    %v1033 = vpack.c.b16 %v837, %v836
    %v1034 = vpack.c.b16 %v839, %v838
    %v1035 = vpack.c.b16 %v841, %v840
    %v1036 = vpack.c.b16 %v843, %v842
    %v1037 = vpack.c.b16 %v845, %v844
    %v1038 = vpack.c.b16 %v847, %v846
    %v1039 = vpack.c.b16 %v849, %v848
    %v1040 = vpack.c.b16 %v851, %v850
    %v1041 = vpack.c.b16 %v853, %v852
    %v1042 = vpack.c.b16 %v855, %v854
    %v1043 = vpack.c.b16 %v857, %v856
    %v1044 = vpack.c.b16 %v859, %v858
    %v1045 = vpack.c.b16 %v861, %v860
    %v1046 = vpack.c.b16 %v863, %v862
    %v1047 = vpack.c.b16 %v865, %v864
    %v1048 = vpack.c.b16 %v867, %v866
    %v1049 = vpack.c.b16 %v869, %v868
    %v1050 = vpack.c.b16 %v871, %v870
    %v1051 = vpack.c.b16 %v873, %v872
    %v1052 = vpack.c.b16 %v875, %v874
    %v1053 = vpack.c.b16 %v877, %v876
    %v1054 = vpack.c.b16 %v879, %v878
    %v1055 = vpack.c.b16 %v881, %v880
    %v1056 = vpack.c.b16 %v883, %v882
    %v1057 = vpack.c.b16 %v885, %v884
    %v1058 = vpack.c.b16 %v887, %v886
    %v1059 = vpack.c.b16 %v889, %v888
    %v1060 = vpack.c.b16 %v891, %v890
    %v1061 = vpack.c.b16 %v893, %v892
    %v1062 = vpack.c.b16 %v895, %v894
    %v1063 = vpack.c.b16 %v897, %v896
    %v1064 = vpack.c.b16 %v899, %v898
    %v1065 = vpack.c.b16 %v901, %v900
    %v1066 = vpack.c.b16 %v903, %v902
    %v1067 = vpack.c.b16 %v905, %v904
    %v1068 = vpack.c.b16 %v907, %v906
    %v1069 = vpack.c.b16 %v909, %v908
    %v1070 = vpack.c.b16 %v911, %v910
    %v1071 = vpack.c.b16 %v913, %v912
    %v1072 = vpack.c.b16 %v915, %v914
    %v1073 = vpack.c.b16 %v917, %v916
    %v1074 = vpack.c.b16 %v919, %v918
    %v1075 = vpack.c.b16 %v921, %v920
    %v1076 = vpack.c.b16 %v923, %v922
    %v1077 = vpack.c.b16 %v925, %v924
    %v1078 = vpack.c.b16 %v927, %v926
    %v1079 = vpack.c.b16 %v929, %v928
    %v1080 = vpack.c.b16 %v931, %v930
    %v1081 = vpack.c.b16 %v933, %v932
    %v1093 = vunpack.c.l.b16 %v324
    %v1094 = vunpack.c.l.b16 %v325
    %v1095 = vunpack.c.l.b16 %v326
    %v1096 = vunpack.c.l.b16 %v327
    %v1097 = vunpack.c.l.b16 %v328
    %v1098 = vunpack.c.l.b16 %v329
    %v1099 = vunpack.c.l.b16 %v330
    %v1100 = vunpack.c.l.b16 %v331
    %v1101 = vunpack.c.l.b16 %v332
    %v1102 = vunpack.c.l.b16 %v333
    %v1103 = vunpack.c.l.b16 %v334
    %v1104 = vpack.c.b16 %v1094, %v1093
    %v1105 = vpack.c.b16 %v1096, %v1095
    %v1106 = vpack.c.b16 %v1098, %v1097
    %v1107 = vpack.c.b16 %v1100, %v1099
    %v1108 = vpack.c.b16 %v1102, %v1101
    %v1109 = vpack.c.b16 %v1103, %v1103
    %vm1115 = vcmask 662528
    %v1117 = vsel %vm1115, %v934, 0
    %v1120 = vsel %vm1115, %v935, 0
    %v1123 = vsel %vm1115, %v936, 0
    %v1126 = vsel %vm1115, %v937, 0
    %v1129 = vsel %vm1115, %v938, 0
    %v1132 = vsel %vm1115, %v939, 0
    %v1135 = vsel %vm1115, %v940, 0
    %v1138 = vsel %vm1115, %v941, 0
    %v1141 = vsel %vm1115, %v942, 0
    %v1144 = vsel %vm1115, %v943, 0
    %v1147 = vsel %vm1115, %v944, 0
    %v1150 = vsel %vm1115, %v945, 0
    %v1153 = vsel %vm1115, %v946, 0
    %v1156 = vsel %vm1115, %v947, 0
    %v1159 = vsel %vm1115, %v948, 0
    %v1162 = vsel %vm1115, %v949, 0
    %v1165 = vsel %vm1115, %v950, 0
    %v1168 = vsel %vm1115, %v951, 0
    %v1171 = vsel %vm1115, %v952, 0
    %v1174 = vsel %vm1115, %v953, 0
    %v1177 = vsel %vm1115, %v954, 0
    %v1180 = vsel %vm1115, %v955, 0
    %v1183 = vsel %vm1115, %v956, 0
    %v1186 = vsel %vm1115, %v957, 0
    %v1189 = vsel %vm1115, %v958, 0
    %v1192 = vsel %vm1115, %v959, 0
    %v1195 = vsel %vm1115, %v960, 0
    %v1198 = vsel %vm1115, %v961, 0
    %v1201 = vsel %vm1115, %v962, 0
    %v1204 = vsel %vm1115, %v963, 0
    %v1207 = vsel %vm1115, %v964, 0
    %v1210 = vsel %vm1115, %v965, 0
    %v1213 = vsel %vm1115, %v966, 0
    %v1216 = vsel %vm1115, %v967, 0
    %v1219 = vsel %vm1115, %v968, 0
    %v1222 = vsel %vm1115, %v969, 0
    %v1225 = vsel %vm1115, %v970, 0
    %v1228 = vsel %vm1115, %v971, 0
    %v1231 = vsel %vm1115, %v972, 0
    %v1234 = vsel %vm1115, %v973, 0
    %v1237 = vsel %vm1115, %v974, 0
    %v1240 = vsel %vm1115, %v975, 0
    %v1243 = vsel %vm1115, %v976, 0
    %v1246 = vsel %vm1115, %v977, 0
    %v1249 = vsel %vm1115, %v978, 0
    %v1252 = vsel %vm1115, %v979, 0
    %v1255 = vsel %vm1115, %v980, 0
    %v1258 = vsel %vm1115, %v981, 0
    %v1261 = vsel %vm1115, %v982, 0
    %v1264 = vsel %vm1115, %v983, 0
    %v1267 = vsel %vm1115, %v984, 0
    %v1270 = vsel %vm1115, %v985, 0
    %v1273 = vsel %vm1115, %v986, 0
    %v1276 = vsel %vm1115, %v987, 0
    %v1279 = vsel %vm1115, %v988, 0
    %v1282 = vsel %vm1115, %v989, 0
    %v1285 = vsel %vm1115, %v990, 0
    %v1288 = vsel %vm1115, %v991, 0
    %v1291 = vsel %vm1115, %v992, 0
    %v1294 = vsel %vm1115, %v993, 0
    %v1297 = vsel %vm1115, %v994, 0
    %v1300 = vsel %vm1115, %v995, 0
    %v1303 = vsel %vm1115, %v996, 0
    %v1306 = vsel %vm1115, %v997, 0
    %v1309 = vsel %vm1115, %v998, 0
    %v1312 = vsel %vm1115, %v999, 0
    %v1315 = vsel %vm1115, %v1000, 0
    %v1318 = vsel %vm1115, %v1001, 0
    %v1321 = vsel %vm1115, %v1002, 0
    %v1324 = vsel %vm1115, %v1003, 0
    %v1327 = vsel %vm1115, %v1004, 0
    %v1330 = vsel %vm1115, %v1005, 0
    %v1333 = vsel %vm1115, %v1006, 0
    %v1336 = vsel %vm1115, %v1007, 0
    %v1339 = vsel %vm1115, %v1008, 0
    %v1342 = vsel %vm1115, %v1009, 0
    %v1345 = vsel %vm1115, %v1010, 0
    %v1348 = vsel %vm1115, %v1011, 0
    %v1351 = vsel %vm1115, %v1012, 0
    %v1354 = vsel %vm1115, %v1013, 0
    %v1357 = vsel %vm1115, %v1014, 0
    %v1360 = vsel %vm1115, %v1015, 0
    %v1363 = vsel %vm1115, %v1016, 0
    %v1366 = vsel %vm1115, %v1017, 0
    %v1369 = vsel %vm1115, %v1018, 0
    %v1372 = vsel %vm1115, %v1019, 0
    %v1375 = vsel %vm1115, %v1020, 0
    %v1378 = vsel %vm1115, %v1021, 0
    %v1381 = vsel %vm1115, %v1022, 0
    %v1384 = vsel %vm1115, %v1023, 0
    %v1387 = vsel %vm1115, %v1024, 0
    %v1390 = vsel %vm1115, %v1025, 0
    %v1393 = vsel %vm1115, %v1026, 0
    %v1396 = vsel %vm1115, %v1027, 0
    %v1399 = vsel %vm1115, %v1028, 0
    %v1402 = vsel %vm1115, %v1029, 0
    %v1405 = vsel %vm1115, %v1030, 0
    %v1408 = vsel %vm1115, %v1031, 0
    %v1411 = vsel %vm1115, %v1032, 0
    %v1414 = vsel %vm1115, %v1033, 0
    %v1417 = vsel %vm1115, %v1034, 0
    %v1420 = vsel %vm1115, %v1035, 0
    %v1423 = vsel %vm1115, %v1036, 0
    %v1426 = vsel %vm1115, %v1037, 0
    %v1429 = vsel %vm1115, %v1038, 0
    %v1432 = vsel %vm1115, %v1039, 0
    %v1435 = vsel %vm1115, %v1040, 0
    %v1438 = vsel %vm1115, %v1041, 0
    %v1441 = vsel %vm1115, %v1042, 0
    %v1444 = vsel %vm1115, %v1043, 0
    %v1447 = vsel %vm1115, %v1044, 0
    %v1450 = vsel %vm1115, %v1045, 0
    %v1453 = vsel %vm1115, %v1046, 0
    %v1456 = vsel %vm1115, %v1047, 0
    %v1459 = vsel %vm1115, %v1048, 0
    %v1462 = vsel %vm1115, %v1049, 0
    %v1465 = vsel %vm1115, %v1050, 0
    %v1468 = vsel %vm1115, %v1051, 0
    %v1471 = vsel %vm1115, %v1052, 0
    %v1474 = vsel %vm1115, %v1053, 0
    %v1477 = vsel %vm1115, %v1054, 0
    %v1480 = vsel %vm1115, %v1055, 0
    %v1483 = vsel %vm1115, %v1056, 0
    %v1486 = vsel %vm1115, %v1057, 0
    %v1489 = vsel %vm1115, %v1058, 0
    %v1492 = vsel %vm1115, %v1059, 0
    %v1495 = vsel %vm1115, %v1060, 0
    %v1498 = vsel %vm1115, %v1061, 0
    %v1501 = vsel %vm1115, %v1062, 0
    %v1504 = vsel %vm1115, %v1063, 0
    %v1507 = vsel %vm1115, %v1064, 0
    %v1510 = vsel %vm1115, %v1065, 0
    %v1513 = vsel %vm1115, %v1066, 0
    %v1516 = vsel %vm1115, %v1067, 0
    %v1519 = vsel %vm1115, %v1068, 0
    %v1522 = vsel %vm1115, %v1069, 0
    %v1525 = vsel %vm1115, %v1070, 0
    %v1528 = vsel %vm1115, %v1071, 0
    %v1531 = vsel %vm1115, %v1072, 0
    %v1534 = vsel %vm1115, %v1073, 0
    %v1537 = vsel %vm1115, %v1074, 0
    %v1540 = vsel %vm1115, %v1075, 0
    %v1543 = vsel %vm1115, %v1076, 0
    %v1546 = vsel %vm1115, %v1077, 0
    %v1549 = vsel %vm1115, %v1078, 0
    %v1552 = vsel %vm1115, %v1079, 0
    %v1555 = vsel %vm1115, %v1080, 0
    %v1558 = vsel %vm1115, %v1081, 0
    %vm1560 = vcmask 1040384
    %v1561 = vsel 0, 4294967295, 65535
    %v1562 = vsel %vm1560, %v1561, 0
    %v1564 = vand.u32 %v1109, %v1562
    %1566 = vmatprep.subr.bf16.mxu0 0
    %1567 = vmatpush1.bf16.msra.mxu0 0
    %1568 = vmatprep.subr.bf16.mxu0 0
    %1569 = vmatpush1.bf16.msra.mxu0 0
    %1570 = vmatprep.subr.bf16.mxu0 0
    %1571 = vmatpush1.bf16.msra.mxu0 %v1564
    %1572 = vmatprep.subr.bf16.mxu0 0
    %1573 = vmatpush1.bf16.msra.mxu0 %v1108
    %1574 = vmatprep.subr.bf16.mxu0 0
    %1575 = vmatpush1.bf16.msra.mxu0 %v1107
    %1576 = vmatprep.subr.bf16.mxu0 0
    %1577 = vmatpush1.bf16.msra.mxu0 %v1106
    %1578 = vmatprep.subr.bf16.mxu0 0
    %1579 = vmatpush1.bf16.msra.mxu0 %v1105
    %1580 = vmatprep.subr.bf16.mxu0 0
    %1581 = vmatpush1.bf16.msra.mxu0 %v1104
    %1582 = vmatprep.subr.bf16.mxu0 0
    %1583 = vmatpush2.bf16.msra.mxu0 0
    %1584 = vmatprep.subr.bf16.mxu0 0
    %1585 = vmatpush2.bf16.msra.mxu0 0
    %1586 = vmatprep.subr.bf16.mxu0 0
    %1587 = vmatpush2.bf16.msra.mxu0 0
    %1588 = vmatprep.subr.bf16.mxu0 0
    %1589 = vmatpush2.bf16.msra.mxu0 0
    %1590 = vmatprep.subr.bf16.mxu0 0
    %1591 = vmatpush2.bf16.msra.mxu0 0
    %1592 = vmatprep.subr.bf16.mxu0 0
    %1593 = vmatpush2.bf16.msra.mxu0 0
    %1594 = vmatprep.subr.bf16.mxu0 0
    %1595 = vmatpush2.bf16.msra.mxu0 0
    %1596 = vmatprep.subr.bf16.mxu0 0
    %1597 = vmatpush2.bf16.msra.mxu0 0
    %1598 = vmatprep.mubr.bf16.mxu0 0
    %1599 = vmatmul.mubr.bf16.gmra.mxu0 %v1117
    %v1600 = vpop.f32.mrf.mxu0
    %v1601 = vadd.f32 %v340, %v1600
    %v1602 = vpop.f32.mrf.mxu0
    %v1603 = vpop.f32.mrf.mxu0
    %v1604 = vadd.f32 %v340, %v1603
    %v1605 = vpop.f32.mrf.mxu0
    %1606 = vmatprep.mubr.bf16.mxu0 0
    %1607 = vmatmul.mubr.bf16.gmra.mxu0 %v1120
    %v1608 = vpop.f32.mrf.mxu0
    %v1609 = vadd.f32 %v340, %v1608
    %v1610 = vpop.f32.mrf.mxu0
    %v1611 = vpop.f32.mrf.mxu0
    %v1612 = vadd.f32 %v340, %v1611
    %v1613 = vpop.f32.mrf.mxu0
    %1614 = vmatprep.mubr.bf16.mxu0 0
    %1615 = vmatmul.mubr.bf16.gmra.mxu0 %v1123
    %v1616 = vpop.f32.mrf.mxu0
    %v1617 = vadd.f32 %v340, %v1616
    %v1618 = vpop.f32.mrf.mxu0
    %v1619 = vpop.f32.mrf.mxu0
    %v1620 = vadd.f32 %v340, %v1619
    %v1621 = vpop.f32.mrf.mxu0
    %1622 = vmatprep.mubr.bf16.mxu0 0
    %1623 = vmatmul.mubr.bf16.gmra.mxu0 %v1126
    %v1624 = vpop.f32.mrf.mxu0
    %v1625 = vadd.f32 %v340, %v1624
    %v1626 = vpop.f32.mrf.mxu0
    %v1627 = vpop.f32.mrf.mxu0
    %v1628 = vadd.f32 %v340, %v1627
    %v1629 = vpop.f32.mrf.mxu0
    %1630 = vmatprep.mubr.bf16.mxu0 0
    %1631 = vmatmul.mubr.bf16.gmra.mxu0 %v1129
    %v1632 = vpop.f32.mrf.mxu0
    %v1633 = vadd.f32 %v340, %v1632
    %v1634 = vpop.f32.mrf.mxu0
    %v1635 = vpop.f32.mrf.mxu0
    %v1636 = vadd.f32 %v340, %v1635
    %v1637 = vpop.f32.mrf.mxu0
    %1638 = vmatprep.mubr.bf16.mxu0 0
    %1639 = vmatmul.mubr.bf16.gmra.mxu0 %v1132
    %v1640 = vpop.f32.mrf.mxu0
    %v1641 = vadd.f32 %v340, %v1640
    %v1642 = vpop.f32.mrf.mxu0
    %v1643 = vpop.f32.mrf.mxu0
    %v1644 = vadd.f32 %v340, %v1643
    %v1645 = vpop.f32.mrf.mxu0
    %1646 = vmatprep.mubr.bf16.mxu0 0
    %1647 = vmatmul.mubr.bf16.gmra.mxu0 %v1135
    %v1648 = vpop.f32.mrf.mxu0
    %v1649 = vadd.f32 %v340, %v1648
    %v1650 = vpop.f32.mrf.mxu0
    %v1651 = vpop.f32.mrf.mxu0
    %v1652 = vadd.f32 %v340, %v1651
    %v1653 = vpop.f32.mrf.mxu0
    %1654 = vmatprep.mubr.bf16.mxu0 0
    %1655 = vmatmul.mubr.bf16.gmra.mxu0 %v1138
    %v1656 = vpop.f32.mrf.mxu0
    %v1657 = vadd.f32 %v340, %v1656
    %v1658 = vpop.f32.mrf.mxu0
    %v1659 = vpop.f32.mrf.mxu0
    %v1660 = vadd.f32 %v340, %v1659
    %v1661 = vpop.f32.mrf.mxu0
    %1662 = vmatprep.mubr.bf16.mxu0 0
    %1663 = vmatmul.mubr.bf16.gmra.mxu0 %v1141
    %v1664 = vpop.f32.mrf.mxu0
    %v1665 = vadd.f32 %v340, %v1664
    %v1666 = vpop.f32.mrf.mxu0
    %v1667 = vpop.f32.mrf.mxu0
    %v1668 = vadd.f32 %v340, %v1667
    %v1669 = vpop.f32.mrf.mxu0
    %1670 = vmatprep.mubr.bf16.mxu0 0
    %1671 = vmatmul.mubr.bf16.gmra.mxu0 %v1144
    %v1672 = vpop.f32.mrf.mxu0
    %v1673 = vadd.f32 %v340, %v1672
    %v1674 = vpop.f32.mrf.mxu0
    %v1675 = vpop.f32.mrf.mxu0
    %v1676 = vadd.f32 %v340, %v1675
    %v1677 = vpop.f32.mrf.mxu0
    %1678 = vmatprep.mubr.bf16.mxu0 0
    %1679 = vmatmul.mubr.bf16.gmra.mxu0 %v1147
    %v1680 = vpop.f32.mrf.mxu0
    %v1681 = vadd.f32 %v340, %v1680
    %v1682 = vpop.f32.mrf.mxu0
    %v1683 = vpop.f32.mrf.mxu0
    %v1684 = vadd.f32 %v340, %v1683
    %v1685 = vpop.f32.mrf.mxu0
    %1686 = vmatprep.mubr.bf16.mxu0 0
    %1687 = vmatmul.mubr.bf16.gmra.mxu0 %v1150
    %v1688 = vpop.f32.mrf.mxu0
    %v1689 = vadd.f32 %v340, %v1688
    %v1690 = vpop.f32.mrf.mxu0
    %v1691 = vpop.f32.mrf.mxu0
    %v1692 = vadd.f32 %v340, %v1691
    %v1693 = vpop.f32.mrf.mxu0
    %1694 = vmatprep.mubr.bf16.mxu0 0
    %1695 = vmatmul.mubr.bf16.gmra.mxu0 %v1153
    %v1696 = vpop.f32.mrf.mxu0
    %v1697 = vadd.f32 %v340, %v1696
    %v1698 = vpop.f32.mrf.mxu0
    %v1699 = vpop.f32.mrf.mxu0
    %v1700 = vadd.f32 %v340, %v1699
    %v1701 = vpop.f32.mrf.mxu0
    %1702 = vmatprep.mubr.bf16.mxu0 0
    %1703 = vmatmul.mubr.bf16.gmra.mxu0 %v1156
    %v1704 = vpop.f32.mrf.mxu0
    %v1705 = vadd.f32 %v340, %v1704
    %v1706 = vpop.f32.mrf.mxu0
    %v1707 = vpop.f32.mrf.mxu0
    %v1708 = vadd.f32 %v340, %v1707
    %v1709 = vpop.f32.mrf.mxu0
    %1710 = vmatprep.mubr.bf16.mxu0 0
    %1711 = vmatmul.mubr.bf16.gmra.mxu0 %v1159
    %v1712 = vpop.f32.mrf.mxu0
    %v1713 = vadd.f32 %v340, %v1712
    %v1714 = vpop.f32.mrf.mxu0
    %v1715 = vpop.f32.mrf.mxu0
    %v1716 = vadd.f32 %v340, %v1715
    %v1717 = vpop.f32.mrf.mxu0
    %1718 = vmatprep.mubr.bf16.mxu0 0
    %1719 = vmatmul.mubr.bf16.gmra.mxu0 %v1162
    %v1720 = vpop.f32.mrf.mxu0
    %v1721 = vadd.f32 %v340, %v1720
    %v1722 = vpop.f32.mrf.mxu0
    %v1723 = vpop.f32.mrf.mxu0
    %v1724 = vadd.f32 %v340, %v1723
    %v1725 = vpop.f32.mrf.mxu0
    %1726 = vmatprep.mubr.bf16.mxu0 0
    %1727 = vmatmul.mubr.bf16.gmra.mxu0 %v1165
    %v1728 = vpop.f32.mrf.mxu0
    %v1729 = vadd.f32 %v340, %v1728
    %v1730 = vpop.f32.mrf.mxu0
    %v1731 = vpop.f32.mrf.mxu0
    %v1732 = vadd.f32 %v340, %v1731
    %v1733 = vpop.f32.mrf.mxu0
    %1734 = vmatprep.mubr.bf16.mxu0 0
    %1735 = vmatmul.mubr.bf16.gmra.mxu0 %v1168
    %v1736 = vpop.f32.mrf.mxu0
    %v1737 = vadd.f32 %v340, %v1736
    %v1738 = vpop.f32.mrf.mxu0
    %v1739 = vpop.f32.mrf.mxu0
    %v1740 = vadd.f32 %v340, %v1739
    %v1741 = vpop.f32.mrf.mxu0
    %1742 = vmatprep.mubr.bf16.mxu0 0
    %1743 = vmatmul.mubr.bf16.gmra.mxu0 %v1171
    %v1744 = vpop.f32.mrf.mxu0
    %v1745 = vadd.f32 %v340, %v1744
    %v1746 = vpop.f32.mrf.mxu0
    %v1747 = vpop.f32.mrf.mxu0
    %v1748 = vadd.f32 %v340, %v1747
    %v1749 = vpop.f32.mrf.mxu0
    %1750 = vmatprep.mubr.bf16.mxu0 0
    %1751 = vmatmul.mubr.bf16.gmra.mxu0 %v1174
    %v1752 = vpop.f32.mrf.mxu0
    %v1753 = vadd.f32 %v340, %v1752
    %v1754 = vpop.f32.mrf.mxu0
    %v1755 = vpop.f32.mrf.mxu0
    %v1756 = vadd.f32 %v340, %v1755
    %v1757 = vpop.f32.mrf.mxu0
    %1758 = vmatprep.mubr.bf16.mxu0 0
    %1759 = vmatmul.mubr.bf16.gmra.mxu0 %v1177
    %v1760 = vpop.f32.mrf.mxu0
    %v1761 = vadd.f32 %v340, %v1760
    %v1762 = vpop.f32.mrf.mxu0
    %v1763 = vpop.f32.mrf.mxu0
    %v1764 = vadd.f32 %v340, %v1763
    %v1765 = vpop.f32.mrf.mxu0
    %1766 = vmatprep.mubr.bf16.mxu0 0
    %1767 = vmatmul.mubr.bf16.gmra.mxu0 %v1180
    %v1768 = vpop.f32.mrf.mxu0
    %v1769 = vadd.f32 %v340, %v1768
    %v1770 = vpop.f32.mrf.mxu0
    %v1771 = vpop.f32.mrf.mxu0
    %v1772 = vadd.f32 %v340, %v1771
    %v1773 = vpop.f32.mrf.mxu0
    %1774 = vmatprep.mubr.bf16.mxu0 0
    %1775 = vmatmul.mubr.bf16.gmra.mxu0 %v1183
    %v1776 = vpop.f32.mrf.mxu0
    %v1777 = vadd.f32 %v340, %v1776
    %v1778 = vpop.f32.mrf.mxu0
    %v1779 = vpop.f32.mrf.mxu0
    %v1780 = vadd.f32 %v340, %v1779
    %v1781 = vpop.f32.mrf.mxu0
    %1782 = vmatprep.mubr.bf16.mxu0 0
    %1783 = vmatmul.mubr.bf16.gmra.mxu0 %v1186
    %v1784 = vpop.f32.mrf.mxu0
    %v1785 = vadd.f32 %v340, %v1784
    %v1786 = vpop.f32.mrf.mxu0
    %v1787 = vpop.f32.mrf.mxu0
    %v1788 = vadd.f32 %v340, %v1787
    %v1789 = vpop.f32.mrf.mxu0
    %1790 = vmatprep.mubr.bf16.mxu0 0
    %1791 = vmatmul.mubr.bf16.gmra.mxu0 %v1189
    %v1792 = vpop.f32.mrf.mxu0
    %v1793 = vadd.f32 %v340, %v1792
    %v1794 = vpop.f32.mrf.mxu0
    %v1795 = vpop.f32.mrf.mxu0
    %v1796 = vadd.f32 %v340, %v1795
    %v1797 = vpop.f32.mrf.mxu0
    %1798 = vmatprep.mubr.bf16.mxu0 0
    %1799 = vmatmul.mubr.bf16.gmra.mxu0 %v1192
    %v1800 = vpop.f32.mrf.mxu0
    %v1801 = vadd.f32 %v340, %v1800
    %v1802 = vpop.f32.mrf.mxu0
    %v1803 = vpop.f32.mrf.mxu0
    %v1804 = vadd.f32 %v340, %v1803
    %v1805 = vpop.f32.mrf.mxu0
    %1806 = vmatprep.mubr.bf16.mxu0 0
    %1807 = vmatmul.mubr.bf16.gmra.mxu0 %v1195
    %v1808 = vpop.f32.mrf.mxu0
    %v1809 = vadd.f32 %v340, %v1808
    %v1810 = vpop.f32.mrf.mxu0
    %v1811 = vpop.f32.mrf.mxu0
    %v1812 = vadd.f32 %v340, %v1811
    %v1813 = vpop.f32.mrf.mxu0
    %1814 = vmatprep.mubr.bf16.mxu0 0
    %1815 = vmatmul.mubr.bf16.gmra.mxu0 %v1198
    %v1816 = vpop.f32.mrf.mxu0
    %v1817 = vadd.f32 %v340, %v1816
    %v1818 = vpop.f32.mrf.mxu0
    %v1819 = vpop.f32.mrf.mxu0
    %v1820 = vadd.f32 %v340, %v1819
    %v1821 = vpop.f32.mrf.mxu0
    %1822 = vmatprep.mubr.bf16.mxu0 0
    %1823 = vmatmul.mubr.bf16.gmra.mxu0 %v1201
    %v1824 = vpop.f32.mrf.mxu0
    %v1825 = vadd.f32 %v340, %v1824
    %v1826 = vpop.f32.mrf.mxu0
    %v1827 = vpop.f32.mrf.mxu0
    %v1828 = vadd.f32 %v340, %v1827
    %v1829 = vpop.f32.mrf.mxu0
    %1830 = vmatprep.mubr.bf16.mxu0 0
    %1831 = vmatmul.mubr.bf16.gmra.mxu0 %v1204
    %v1832 = vpop.f32.mrf.mxu0
    %v1833 = vadd.f32 %v340, %v1832
    %v1834 = vpop.f32.mrf.mxu0
    %v1835 = vpop.f32.mrf.mxu0
    %v1836 = vadd.f32 %v340, %v1835
    %v1837 = vpop.f32.mrf.mxu0
    %1838 = vmatprep.mubr.bf16.mxu0 0
    %1839 = vmatmul.mubr.bf16.gmra.mxu0 %v1207
    %v1840 = vpop.f32.mrf.mxu0
    %v1841 = vadd.f32 %v340, %v1840
    %v1842 = vpop.f32.mrf.mxu0
    %v1843 = vpop.f32.mrf.mxu0
    %v1844 = vadd.f32 %v340, %v1843
    %v1845 = vpop.f32.mrf.mxu0
    %1846 = vmatprep.mubr.bf16.mxu0 0
    %1847 = vmatmul.mubr.bf16.gmra.mxu0 %v1210
    %v1848 = vpop.f32.mrf.mxu0
    %v1849 = vadd.f32 %v340, %v1848
    %v1850 = vpop.f32.mrf.mxu0
    %v1851 = vpop.f32.mrf.mxu0
    %v1852 = vadd.f32 %v340, %v1851
    %v1853 = vpop.f32.mrf.mxu0
    %1854 = vmatprep.mubr.bf16.mxu0 0
    %1855 = vmatmul.mubr.bf16.gmra.mxu0 %v1213
    %v1856 = vpop.f32.mrf.mxu0
    %v1857 = vadd.f32 %v340, %v1856
    %v1858 = vpop.f32.mrf.mxu0
    %v1859 = vpop.f32.mrf.mxu0
    %v1860 = vadd.f32 %v340, %v1859
    %v1861 = vpop.f32.mrf.mxu0
    %1862 = vmatprep.mubr.bf16.mxu0 0
    %1863 = vmatmul.mubr.bf16.gmra.mxu0 %v1216
    %v1864 = vpop.f32.mrf.mxu0
    %v1865 = vadd.f32 %v340, %v1864
    %v1866 = vpop.f32.mrf.mxu0
    %v1867 = vpop.f32.mrf.mxu0
    %v1868 = vadd.f32 %v340, %v1867
    %v1869 = vpop.f32.mrf.mxu0
    %1870 = vmatprep.mubr.bf16.mxu0 0
    %1871 = vmatmul.mubr.bf16.gmra.mxu0 %v1219
    %v1872 = vpop.f32.mrf.mxu0
    %v1873 = vadd.f32 %v340, %v1872
    %v1874 = vpop.f32.mrf.mxu0
    %v1875 = vpop.f32.mrf.mxu0
    %v1876 = vadd.f32 %v340, %v1875
    %v1877 = vpop.f32.mrf.mxu0
    %1878 = vmatprep.mubr.bf16.mxu0 0
    %1879 = vmatmul.mubr.bf16.gmra.mxu0 %v1222
    %v1880 = vpop.f32.mrf.mxu0
    %v1881 = vadd.f32 %v340, %v1880
    %v1882 = vpop.f32.mrf.mxu0
    %v1883 = vpop.f32.mrf.mxu0
    %v1884 = vadd.f32 %v340, %v1883
    %v1885 = vpop.f32.mrf.mxu0
    %1886 = vmatprep.mubr.bf16.mxu0 0
    %1887 = vmatmul.mubr.bf16.gmra.mxu0 %v1225
    %v1888 = vpop.f32.mrf.mxu0
    %v1889 = vadd.f32 %v340, %v1888
    %v1890 = vpop.f32.mrf.mxu0
    %v1891 = vpop.f32.mrf.mxu0
    %v1892 = vadd.f32 %v340, %v1891
    %v1893 = vpop.f32.mrf.mxu0
    %1894 = vmatprep.mubr.bf16.mxu0 0
    %1895 = vmatmul.mubr.bf16.gmra.mxu0 %v1228
    %v1896 = vpop.f32.mrf.mxu0
    %v1897 = vadd.f32 %v340, %v1896
    %v1898 = vpop.f32.mrf.mxu0
    %v1899 = vpop.f32.mrf.mxu0
    %v1900 = vadd.f32 %v340, %v1899
    %v1901 = vpop.f32.mrf.mxu0
    %1902 = vmatprep.mubr.bf16.mxu0 0
    %1903 = vmatmul.mubr.bf16.gmra.mxu0 %v1231
    %v1904 = vpop.f32.mrf.mxu0
    %v1905 = vadd.f32 %v340, %v1904
    %v1906 = vpop.f32.mrf.mxu0
    %v1907 = vpop.f32.mrf.mxu0
    %v1908 = vadd.f32 %v340, %v1907
    %v1909 = vpop.f32.mrf.mxu0
    %1910 = vmatprep.mubr.bf16.mxu0 0
    %1911 = vmatmul.mubr.bf16.gmra.mxu0 %v1234
    %v1912 = vpop.f32.mrf.mxu0
    %v1913 = vadd.f32 %v340, %v1912
    %v1914 = vpop.f32.mrf.mxu0
    %v1915 = vpop.f32.mrf.mxu0
    %v1916 = vadd.f32 %v340, %v1915
    %v1917 = vpop.f32.mrf.mxu0
    %1918 = vmatprep.mubr.bf16.mxu0 0
    %1919 = vmatmul.mubr.bf16.gmra.mxu0 %v1237
    %v1920 = vpop.f32.mrf.mxu0
    %v1921 = vadd.f32 %v340, %v1920
    %v1922 = vpop.f32.mrf.mxu0
    %v1923 = vpop.f32.mrf.mxu0
    %v1924 = vadd.f32 %v340, %v1923
    %v1925 = vpop.f32.mrf.mxu0
    %1926 = vmatprep.mubr.bf16.mxu0 0
    %1927 = vmatmul.mubr.bf16.gmra.mxu0 %v1240
    %v1928 = vpop.f32.mrf.mxu0
    %v1929 = vadd.f32 %v340, %v1928
    %v1930 = vpop.f32.mrf.mxu0
    %v1931 = vpop.f32.mrf.mxu0
    %v1932 = vadd.f32 %v340, %v1931
    %v1933 = vpop.f32.mrf.mxu0
    %1934 = vmatprep.mubr.bf16.mxu0 0
    %1935 = vmatmul.mubr.bf16.gmra.mxu0 %v1243
    %v1936 = vpop.f32.mrf.mxu0
    %v1937 = vadd.f32 %v340, %v1936
    %v1938 = vpop.f32.mrf.mxu0
    %v1939 = vpop.f32.mrf.mxu0
    %v1940 = vadd.f32 %v340, %v1939
    %v1941 = vpop.f32.mrf.mxu0
    %1942 = vmatprep.mubr.bf16.mxu0 0
    %1943 = vmatmul.mubr.bf16.gmra.mxu0 %v1246
    %v1944 = vpop.f32.mrf.mxu0
    %v1945 = vadd.f32 %v340, %v1944
    %v1946 = vpop.f32.mrf.mxu0
    %v1947 = vpop.f32.mrf.mxu0
    %v1948 = vadd.f32 %v340, %v1947
    %v1949 = vpop.f32.mrf.mxu0
    %1950 = vmatprep.mubr.bf16.mxu0 0
    %1951 = vmatmul.mubr.bf16.gmra.mxu0 %v1249
    %v1952 = vpop.f32.mrf.mxu0
    %v1953 = vadd.f32 %v340, %v1952
    %v1954 = vpop.f32.mrf.mxu0
    %v1955 = vpop.f32.mrf.mxu0
    %v1956 = vadd.f32 %v340, %v1955
    %v1957 = vpop.f32.mrf.mxu0
    %1958 = vmatprep.mubr.bf16.mxu0 0
    %1959 = vmatmul.mubr.bf16.gmra.mxu0 %v1252
    %v1960 = vpop.f32.mrf.mxu0
    %v1961 = vadd.f32 %v340, %v1960
    %v1962 = vpop.f32.mrf.mxu0
    %v1963 = vpop.f32.mrf.mxu0
    %v1964 = vadd.f32 %v340, %v1963
    %v1965 = vpop.f32.mrf.mxu0
    %1966 = vmatprep.mubr.bf16.mxu0 0
    %1967 = vmatmul.mubr.bf16.gmra.mxu0 %v1255
    %v1968 = vpop.f32.mrf.mxu0
    %v1969 = vadd.f32 %v340, %v1968
    %v1970 = vpop.f32.mrf.mxu0
    %v1971 = vpop.f32.mrf.mxu0
    %v1972 = vadd.f32 %v340, %v1971
    %v1973 = vpop.f32.mrf.mxu0
    %1974 = vmatprep.mubr.bf16.mxu0 0
    %1975 = vmatmul.mubr.bf16.gmra.mxu0 %v1258
    %v1976 = vpop.f32.mrf.mxu0
    %v1977 = vadd.f32 %v340, %v1976
    %v1978 = vpop.f32.mrf.mxu0
    %v1979 = vpop.f32.mrf.mxu0
    %v1980 = vadd.f32 %v340, %v1979
    %v1981 = vpop.f32.mrf.mxu0
    %1982 = vmatprep.mubr.bf16.mxu0 0
    %1983 = vmatmul.mubr.bf16.gmra.mxu0 %v1261
    %v1984 = vpop.f32.mrf.mxu0
    %v1985 = vadd.f32 %v340, %v1984
    %v1986 = vpop.f32.mrf.mxu0
    %v1987 = vpop.f32.mrf.mxu0
    %v1988 = vadd.f32 %v340, %v1987
    %v1989 = vpop.f32.mrf.mxu0
    %1990 = vmatprep.mubr.bf16.mxu0 0
    %1991 = vmatmul.mubr.bf16.gmra.mxu0 %v1264
    %v1992 = vpop.f32.mrf.mxu0
    %v1993 = vadd.f32 %v340, %v1992
    %v1994 = vpop.f32.mrf.mxu0
    %v1995 = vpop.f32.mrf.mxu0
    %v1996 = vadd.f32 %v340, %v1995
    %v1997 = vpop.f32.mrf.mxu0
    %1998 = vmatprep.mubr.bf16.mxu0 0
    %1999 = vmatmul.mubr.bf16.gmra.mxu0 %v1267
    %v2000 = vpop.f32.mrf.mxu0
    %v2001 = vadd.f32 %v340, %v2000
    %v2002 = vpop.f32.mrf.mxu0
    %v2003 = vpop.f32.mrf.mxu0
    %v2004 = vadd.f32 %v340, %v2003
    %v2005 = vpop.f32.mrf.mxu0
    %2006 = vmatprep.mubr.bf16.mxu0 0
    %2007 = vmatmul.mubr.bf16.gmra.mxu0 %v1270
    %v2008 = vpop.f32.mrf.mxu0
    %v2009 = vadd.f32 %v340, %v2008
    %v2010 = vpop.f32.mrf.mxu0
    %v2011 = vpop.f32.mrf.mxu0
    %v2012 = vadd.f32 %v340, %v2011
    %v2013 = vpop.f32.mrf.mxu0
    %2014 = vmatprep.mubr.bf16.mxu0 0
    %2015 = vmatmul.mubr.bf16.gmra.mxu0 %v1273
    %v2016 = vpop.f32.mrf.mxu0
    %v2017 = vadd.f32 %v340, %v2016
    %v2018 = vpop.f32.mrf.mxu0
    %v2019 = vpop.f32.mrf.mxu0
    %v2020 = vadd.f32 %v340, %v2019
    %v2021 = vpop.f32.mrf.mxu0
    %2022 = vmatprep.mubr.bf16.mxu0 0
    %2023 = vmatmul.mubr.bf16.gmra.mxu0 %v1276
    %v2024 = vpop.f32.mrf.mxu0
    %v2025 = vadd.f32 %v340, %v2024
    %v2026 = vpop.f32.mrf.mxu0
    %v2027 = vpop.f32.mrf.mxu0
    %v2028 = vadd.f32 %v340, %v2027
    %v2029 = vpop.f32.mrf.mxu0
    %2030 = vmatprep.mubr.bf16.mxu0 0
    %2031 = vmatmul.mubr.bf16.gmra.mxu0 %v1279
    %v2032 = vpop.f32.mrf.mxu0
    %v2033 = vadd.f32 %v340, %v2032
    %v2034 = vpop.f32.mrf.mxu0
    %v2035 = vpop.f32.mrf.mxu0
    %v2036 = vadd.f32 %v340, %v2035
    %v2037 = vpop.f32.mrf.mxu0
    %2038 = vmatprep.mubr.bf16.mxu0 0
    %2039 = vmatmul.mubr.bf16.gmra.mxu0 %v1282
    %v2040 = vpop.f32.mrf.mxu0
    %v2041 = vadd.f32 %v340, %v2040
    %v2042 = vpop.f32.mrf.mxu0
    %v2043 = vpop.f32.mrf.mxu0
    %v2044 = vadd.f32 %v340, %v2043
    %v2045 = vpop.f32.mrf.mxu0
    %2046 = vmatprep.mubr.bf16.mxu0 0
    %2047 = vmatmul.mubr.bf16.gmra.mxu0 %v1285
    %v2048 = vpop.f32.mrf.mxu0
    %v2049 = vadd.f32 %v340, %v2048
    %v2050 = vpop.f32.mrf.mxu0
    %v2051 = vpop.f32.mrf.mxu0
    %v2052 = vadd.f32 %v340, %v2051
    %v2053 = vpop.f32.mrf.mxu0
    %2054 = vmatprep.mubr.bf16.mxu0 0
    %2055 = vmatmul.mubr.bf16.gmra.mxu0 %v1288
    %v2056 = vpop.f32.mrf.mxu0
    %v2057 = vadd.f32 %v340, %v2056
    %v2058 = vpop.f32.mrf.mxu0
    %v2059 = vpop.f32.mrf.mxu0
    %v2060 = vadd.f32 %v340, %v2059
    %v2061 = vpop.f32.mrf.mxu0
    %2062 = vmatprep.mubr.bf16.mxu0 0
    %2063 = vmatmul.mubr.bf16.gmra.mxu0 %v1291
    %v2064 = vpop.f32.mrf.mxu0
    %v2065 = vadd.f32 %v340, %v2064
    %v2066 = vpop.f32.mrf.mxu0
    %v2067 = vpop.f32.mrf.mxu0
    %v2068 = vadd.f32 %v340, %v2067
    %v2069 = vpop.f32.mrf.mxu0
    %2070 = vmatprep.mubr.bf16.mxu0 0
    %2071 = vmatmul.mubr.bf16.gmra.mxu0 %v1294
    %v2072 = vpop.f32.mrf.mxu0
    %v2073 = vadd.f32 %v340, %v2072
    %v2074 = vpop.f32.mrf.mxu0
    %v2075 = vpop.f32.mrf.mxu0
    %v2076 = vadd.f32 %v340, %v2075
    %v2077 = vpop.f32.mrf.mxu0
    %2078 = vmatprep.mubr.bf16.mxu0 0
    %2079 = vmatmul.mubr.bf16.gmra.mxu0 %v1297
    %v2080 = vpop.f32.mrf.mxu0
    %v2081 = vadd.f32 %v340, %v2080
    %v2082 = vpop.f32.mrf.mxu0
    %v2083 = vpop.f32.mrf.mxu0
    %v2084 = vadd.f32 %v340, %v2083
    %v2085 = vpop.f32.mrf.mxu0
    %2086 = vmatprep.mubr.bf16.mxu0 0
    %2087 = vmatmul.mubr.bf16.gmra.mxu0 %v1300
    %v2088 = vpop.f32.mrf.mxu0
    %v2089 = vadd.f32 %v340, %v2088
    %v2090 = vpop.f32.mrf.mxu0
    %v2091 = vpop.f32.mrf.mxu0
    %v2092 = vadd.f32 %v340, %v2091
    %v2093 = vpop.f32.mrf.mxu0
    %2094 = vmatprep.mubr.bf16.mxu0 0
    %2095 = vmatmul.mubr.bf16.gmra.mxu0 %v1303
    %v2096 = vpop.f32.mrf.mxu0
    %v2097 = vadd.f32 %v340, %v2096
    %v2098 = vpop.f32.mrf.mxu0
    %v2099 = vpop.f32.mrf.mxu0
    %v2100 = vadd.f32 %v340, %v2099
    %v2101 = vpop.f32.mrf.mxu0
    %2102 = vmatprep.mubr.bf16.mxu0 0
    %2103 = vmatmul.mubr.bf16.gmra.mxu0 %v1306
    %v2104 = vpop.f32.mrf.mxu0
    %v2105 = vadd.f32 %v340, %v2104
    %v2106 = vpop.f32.mrf.mxu0
    %v2107 = vpop.f32.mrf.mxu0
    %v2108 = vadd.f32 %v340, %v2107
    %v2109 = vpop.f32.mrf.mxu0
    %2110 = vmatprep.mubr.bf16.mxu0 0
    %2111 = vmatmul.mubr.bf16.gmra.mxu0 %v1309
    %v2112 = vpop.f32.mrf.mxu0
    %v2113 = vadd.f32 %v340, %v2112
    %v2114 = vpop.f32.mrf.mxu0
    %v2115 = vpop.f32.mrf.mxu0
    %v2116 = vadd.f32 %v340, %v2115
    %v2117 = vpop.f32.mrf.mxu0
    %2118 = vmatprep.mubr.bf16.mxu0 0
    %2119 = vmatmul.mubr.bf16.gmra.mxu0 %v1312
    %v2120 = vpop.f32.mrf.mxu0
    %v2121 = vadd.f32 %v340, %v2120
    %v2122 = vpop.f32.mrf.mxu0
    %v2123 = vpop.f32.mrf.mxu0
    %v2124 = vadd.f32 %v340, %v2123
    %v2125 = vpop.f32.mrf.mxu0
    %2126 = vmatprep.mubr.bf16.mxu0 0
    %2127 = vmatmul.mubr.bf16.gmra.mxu0 %v1315
    %v2128 = vpop.f32.mrf.mxu0
    %v2129 = vadd.f32 %v340, %v2128
    %v2130 = vpop.f32.mrf.mxu0
    %v2131 = vpop.f32.mrf.mxu0
    %v2132 = vadd.f32 %v340, %v2131
    %v2133 = vpop.f32.mrf.mxu0
    %2134 = vmatprep.mubr.bf16.mxu0 0
    %2135 = vmatmul.mubr.bf16.gmra.mxu0 %v1318
    %v2136 = vpop.f32.mrf.mxu0
    %v2137 = vadd.f32 %v340, %v2136
    %v2138 = vpop.f32.mrf.mxu0
    %v2139 = vpop.f32.mrf.mxu0
    %v2140 = vadd.f32 %v340, %v2139
    %v2141 = vpop.f32.mrf.mxu0
    %2142 = vmatprep.mubr.bf16.mxu0 0
    %2143 = vmatmul.mubr.bf16.gmra.mxu0 %v1321
    %v2144 = vpop.f32.mrf.mxu0
    %v2145 = vadd.f32 %v340, %v2144
    %v2146 = vpop.f32.mrf.mxu0
    %v2147 = vpop.f32.mrf.mxu0
    %v2148 = vadd.f32 %v340, %v2147
    %v2149 = vpop.f32.mrf.mxu0
    %2150 = vmatprep.mubr.bf16.mxu0 0
    %2151 = vmatmul.mubr.bf16.gmra.mxu0 %v1324
    %v2152 = vpop.f32.mrf.mxu0
    %v2153 = vadd.f32 %v340, %v2152
    %v2154 = vpop.f32.mrf.mxu0
    %v2155 = vpop.f32.mrf.mxu0
    %v2156 = vadd.f32 %v340, %v2155
    %v2157 = vpop.f32.mrf.mxu0
    %2158 = vmatprep.mubr.bf16.mxu0 0
    %2159 = vmatmul.mubr.bf16.gmra.mxu0 %v1327
    %v2160 = vpop.f32.mrf.mxu0
    %v2161 = vadd.f32 %v340, %v2160
    %v2162 = vpop.f32.mrf.mxu0
    %v2163 = vpop.f32.mrf.mxu0
    %v2164 = vadd.f32 %v340, %v2163
    %v2165 = vpop.f32.mrf.mxu0
    %2166 = vmatprep.mubr.bf16.mxu0 0
    %2167 = vmatmul.mubr.bf16.gmra.mxu0 %v1330
    %v2168 = vpop.f32.mrf.mxu0
    %v2169 = vadd.f32 %v340, %v2168
    %v2170 = vpop.f32.mrf.mxu0
    %v2171 = vpop.f32.mrf.mxu0
    %v2172 = vadd.f32 %v340, %v2171
    %v2173 = vpop.f32.mrf.mxu0
    %2174 = vmatprep.mubr.bf16.mxu0 0
    %2175 = vmatmul.mubr.bf16.gmra.mxu0 %v1333
    %v2176 = vpop.f32.mrf.mxu0
    %v2177 = vadd.f32 %v340, %v2176
    %v2178 = vpop.f32.mrf.mxu0
    %v2179 = vpop.f32.mrf.mxu0
    %v2180 = vadd.f32 %v340, %v2179
    %v2181 = vpop.f32.mrf.mxu0
    %2182 = vmatprep.mubr.bf16.mxu0 0
    %2183 = vmatmul.mubr.bf16.gmra.mxu0 %v1336
    %v2184 = vpop.f32.mrf.mxu0
    %v2185 = vadd.f32 %v340, %v2184
    %v2186 = vpop.f32.mrf.mxu0
    %v2187 = vpop.f32.mrf.mxu0
    %v2188 = vadd.f32 %v340, %v2187
    %v2189 = vpop.f32.mrf.mxu0
    %2190 = vmatprep.mubr.bf16.mxu0 0
    %2191 = vmatmul.mubr.bf16.gmra.mxu0 %v1339
    %v2192 = vpop.f32.mrf.mxu0
    %v2193 = vadd.f32 %v340, %v2192
    %v2194 = vpop.f32.mrf.mxu0
    %v2195 = vpop.f32.mrf.mxu0
    %v2196 = vadd.f32 %v340, %v2195
    %v2197 = vpop.f32.mrf.mxu0
    %2198 = vmatprep.mubr.bf16.mxu0 0
    %2199 = vmatmul.mubr.bf16.gmra.mxu0 %v1342
    %v2200 = vpop.f32.mrf.mxu0
    %v2201 = vadd.f32 %v340, %v2200
    %v2202 = vpop.f32.mrf.mxu0
    %v2203 = vpop.f32.mrf.mxu0
    %v2204 = vadd.f32 %v340, %v2203
    %v2205 = vpop.f32.mrf.mxu0
    %2206 = vmatprep.mubr.bf16.mxu0 0
    %2207 = vmatmul.mubr.bf16.gmra.mxu0 %v1345
    %v2208 = vpop.f32.mrf.mxu0
    %v2209 = vadd.f32 %v340, %v2208
    %v2210 = vpop.f32.mrf.mxu0
    %v2211 = vpop.f32.mrf.mxu0
    %v2212 = vadd.f32 %v340, %v2211
    %v2213 = vpop.f32.mrf.mxu0
    %2214 = vmatprep.mubr.bf16.mxu0 0
    %2215 = vmatmul.mubr.bf16.gmra.mxu0 %v1348
    %v2216 = vpop.f32.mrf.mxu0
    %v2217 = vadd.f32 %v340, %v2216
    %v2218 = vpop.f32.mrf.mxu0
    %v2219 = vpop.f32.mrf.mxu0
    %v2220 = vadd.f32 %v340, %v2219
    %v2221 = vpop.f32.mrf.mxu0
    %2222 = vmatprep.mubr.bf16.mxu0 0
    %2223 = vmatmul.mubr.bf16.gmra.mxu0 %v1351
    %v2224 = vpop.f32.mrf.mxu0
    %v2225 = vadd.f32 %v340, %v2224
    %v2226 = vpop.f32.mrf.mxu0
    %v2227 = vpop.f32.mrf.mxu0
    %v2228 = vadd.f32 %v340, %v2227
    %v2229 = vpop.f32.mrf.mxu0
    %2230 = vmatprep.mubr.bf16.mxu0 0
    %2231 = vmatmul.mubr.bf16.gmra.mxu0 %v1354
    %v2232 = vpop.f32.mrf.mxu0
    %v2233 = vadd.f32 %v340, %v2232
    %v2234 = vpop.f32.mrf.mxu0
    %v2235 = vpop.f32.mrf.mxu0
    %v2236 = vadd.f32 %v340, %v2235
    %v2237 = vpop.f32.mrf.mxu0
    %2238 = vmatprep.mubr.bf16.mxu0 0
    %2239 = vmatmul.mubr.bf16.gmra.mxu0 %v1357
    %v2240 = vpop.f32.mrf.mxu0
    %v2241 = vadd.f32 %v340, %v2240
    %v2242 = vpop.f32.mrf.mxu0
    %v2243 = vpop.f32.mrf.mxu0
    %v2244 = vadd.f32 %v340, %v2243
    %v2245 = vpop.f32.mrf.mxu0
    %2246 = vmatprep.mubr.bf16.mxu0 0
    %2247 = vmatmul.mubr.bf16.gmra.mxu0 %v1360
    %v2248 = vpop.f32.mrf.mxu0
    %v2249 = vadd.f32 %v340, %v2248
    %v2250 = vpop.f32.mrf.mxu0
    %v2251 = vpop.f32.mrf.mxu0
    %v2252 = vadd.f32 %v340, %v2251
    %v2253 = vpop.f32.mrf.mxu0
    %2254 = vmatprep.mubr.bf16.mxu0 0
    %2255 = vmatmul.mubr.bf16.gmra.mxu0 %v1363
    %v2256 = vpop.f32.mrf.mxu0
    %v2257 = vadd.f32 %v340, %v2256
    %v2258 = vpop.f32.mrf.mxu0
    %v2259 = vpop.f32.mrf.mxu0
    %v2260 = vadd.f32 %v340, %v2259
    %v2261 = vpop.f32.mrf.mxu0
    %2262 = vmatprep.mubr.bf16.mxu0 0
    %2263 = vmatmul.mubr.bf16.gmra.mxu0 %v1366
    %v2264 = vpop.f32.mrf.mxu0
    %v2265 = vadd.f32 %v340, %v2264
    %v2266 = vpop.f32.mrf.mxu0
    %v2267 = vpop.f32.mrf.mxu0
    %v2268 = vadd.f32 %v340, %v2267
    %v2269 = vpop.f32.mrf.mxu0
    %2270 = vmatprep.mubr.bf16.mxu0 0
    %2271 = vmatmul.mubr.bf16.gmra.mxu0 %v1369
    %v2272 = vpop.f32.mrf.mxu0
    %v2273 = vadd.f32 %v340, %v2272
    %v2274 = vpop.f32.mrf.mxu0
    %v2275 = vpop.f32.mrf.mxu0
    %v2276 = vadd.f32 %v340, %v2275
    %v2277 = vpop.f32.mrf.mxu0
    %2278 = vmatprep.mubr.bf16.mxu0 0
    %2279 = vmatmul.mubr.bf16.gmra.mxu0 %v1372
    %v2280 = vpop.f32.mrf.mxu0
    %v2281 = vadd.f32 %v340, %v2280
    %v2282 = vpop.f32.mrf.mxu0
    %v2283 = vpop.f32.mrf.mxu0
    %v2284 = vadd.f32 %v340, %v2283
    %v2285 = vpop.f32.mrf.mxu0
    %2286 = vmatprep.mubr.bf16.mxu0 0
    %2287 = vmatmul.mubr.bf16.gmra.mxu0 %v1375
    %v2288 = vpop.f32.mrf.mxu0
    %v2289 = vadd.f32 %v340, %v2288
    %v2290 = vpop.f32.mrf.mxu0
    %v2291 = vpop.f32.mrf.mxu0
    %v2292 = vadd.f32 %v340, %v2291
    %v2293 = vpop.f32.mrf.mxu0
    %2294 = vmatprep.mubr.bf16.mxu0 0
    %2295 = vmatmul.mubr.bf16.gmra.mxu0 %v1378
    %v2296 = vpop.f32.mrf.mxu0
    %v2297 = vadd.f32 %v340, %v2296
    %v2298 = vpop.f32.mrf.mxu0
    %v2299 = vpop.f32.mrf.mxu0
    %v2300 = vadd.f32 %v340, %v2299
    %v2301 = vpop.f32.mrf.mxu0
    %2302 = vmatprep.mubr.bf16.mxu0 0
    %2303 = vmatmul.mubr.bf16.gmra.mxu0 %v1381
    %v2304 = vpop.f32.mrf.mxu0
    %v2305 = vadd.f32 %v340, %v2304
    %v2306 = vpop.f32.mrf.mxu0
    %v2307 = vpop.f32.mrf.mxu0
    %v2308 = vadd.f32 %v340, %v2307
    %v2309 = vpop.f32.mrf.mxu0
    %2310 = vmatprep.mubr.bf16.mxu0 0
    %2311 = vmatmul.mubr.bf16.gmra.mxu0 %v1384
    %v2312 = vpop.f32.mrf.mxu0
    %v2313 = vadd.f32 %v340, %v2312
    %v2314 = vpop.f32.mrf.mxu0
    %v2315 = vpop.f32.mrf.mxu0
    %v2316 = vadd.f32 %v340, %v2315
    %v2317 = vpop.f32.mrf.mxu0
    %2318 = vmatprep.mubr.bf16.mxu0 0
    %2319 = vmatmul.mubr.bf16.gmra.mxu0 %v1387
    %v2320 = vpop.f32.mrf.mxu0
    %v2321 = vadd.f32 %v340, %v2320
    %v2322 = vpop.f32.mrf.mxu0
    %v2323 = vpop.f32.mrf.mxu0
    %v2324 = vadd.f32 %v340, %v2323
    %v2325 = vpop.f32.mrf.mxu0
    %2326 = vmatprep.mubr.bf16.mxu0 0
    %2327 = vmatmul.mubr.bf16.gmra.mxu0 %v1390
    %v2328 = vpop.f32.mrf.mxu0
    %v2329 = vadd.f32 %v340, %v2328
    %v2330 = vpop.f32.mrf.mxu0
    %v2331 = vpop.f32.mrf.mxu0
    %v2332 = vadd.f32 %v340, %v2331
    %v2333 = vpop.f32.mrf.mxu0
    %2334 = vmatprep.mubr.bf16.mxu0 0
    %2335 = vmatmul.mubr.bf16.gmra.mxu0 %v1393
    %v2336 = vpop.f32.mrf.mxu0
    %v2337 = vadd.f32 %v340, %v2336
    %v2338 = vpop.f32.mrf.mxu0
    %v2339 = vpop.f32.mrf.mxu0
    %v2340 = vadd.f32 %v340, %v2339
    %v2341 = vpop.f32.mrf.mxu0
    %2342 = vmatprep.mubr.bf16.mxu0 0
    %2343 = vmatmul.mubr.bf16.gmra.mxu0 %v1396
    %v2344 = vpop.f32.mrf.mxu0
    %v2345 = vadd.f32 %v340, %v2344
    %v2346 = vpop.f32.mrf.mxu0
    %v2347 = vpop.f32.mrf.mxu0
    %v2348 = vadd.f32 %v340, %v2347
    %v2349 = vpop.f32.mrf.mxu0
    %2350 = vmatprep.mubr.bf16.mxu0 0
    %2351 = vmatmul.mubr.bf16.gmra.mxu0 %v1399
    %v2352 = vpop.f32.mrf.mxu0
    %v2353 = vadd.f32 %v340, %v2352
    %v2354 = vpop.f32.mrf.mxu0
    %v2355 = vpop.f32.mrf.mxu0
    %v2356 = vadd.f32 %v340, %v2355
    %v2357 = vpop.f32.mrf.mxu0
    %2358 = vmatprep.mubr.bf16.mxu0 0
    %2359 = vmatmul.mubr.bf16.gmra.mxu0 %v1402
    %v2360 = vpop.f32.mrf.mxu0
    %v2361 = vadd.f32 %v340, %v2360
    %v2362 = vpop.f32.mrf.mxu0
    %v2363 = vpop.f32.mrf.mxu0
    %v2364 = vadd.f32 %v340, %v2363
    %v2365 = vpop.f32.mrf.mxu0
    %2366 = vmatprep.mubr.bf16.mxu0 0
    %2367 = vmatmul.mubr.bf16.gmra.mxu0 %v1405
    %v2368 = vpop.f32.mrf.mxu0
    %v2369 = vadd.f32 %v340, %v2368
    %v2370 = vpop.f32.mrf.mxu0
    %v2371 = vpop.f32.mrf.mxu0
    %v2372 = vadd.f32 %v340, %v2371
    %v2373 = vpop.f32.mrf.mxu0
    %2374 = vmatprep.mubr.bf16.mxu0 0
    %2375 = vmatmul.mubr.bf16.gmra.mxu0 %v1408
    %v2376 = vpop.f32.mrf.mxu0
    %v2377 = vadd.f32 %v340, %v2376
    %v2378 = vpop.f32.mrf.mxu0
    %v2379 = vpop.f32.mrf.mxu0
    %v2380 = vadd.f32 %v340, %v2379
    %v2381 = vpop.f32.mrf.mxu0
    %2382 = vmatprep.mubr.bf16.mxu0 0
    %2383 = vmatmul.mubr.bf16.gmra.mxu0 %v1411
    %v2384 = vpop.f32.mrf.mxu0
    %v2385 = vadd.f32 %v340, %v2384
    %v2386 = vpop.f32.mrf.mxu0
    %v2387 = vpop.f32.mrf.mxu0
    %v2388 = vadd.f32 %v340, %v2387
    %v2389 = vpop.f32.mrf.mxu0
    %2390 = vmatprep.mubr.bf16.mxu0 0
    %2391 = vmatmul.mubr.bf16.gmra.mxu0 %v1414
    %v2392 = vpop.f32.mrf.mxu0
    %v2393 = vadd.f32 %v340, %v2392
    %v2394 = vpop.f32.mrf.mxu0
    %v2395 = vpop.f32.mrf.mxu0
    %v2396 = vadd.f32 %v340, %v2395
    %v2397 = vpop.f32.mrf.mxu0
    %2398 = vmatprep.mubr.bf16.mxu0 0
    %2399 = vmatmul.mubr.bf16.gmra.mxu0 %v1417
    %v2400 = vpop.f32.mrf.mxu0
    %v2401 = vadd.f32 %v340, %v2400
    %v2402 = vpop.f32.mrf.mxu0
    %v2403 = vpop.f32.mrf.mxu0
    %v2404 = vadd.f32 %v340, %v2403
    %v2405 = vpop.f32.mrf.mxu0
    %2406 = vmatprep.mubr.bf16.mxu0 0
    %2407 = vmatmul.mubr.bf16.gmra.mxu0 %v1420
    %v2408 = vpop.f32.mrf.mxu0
    %v2409 = vadd.f32 %v340, %v2408
    %v2410 = vpop.f32.mrf.mxu0
    %v2411 = vpop.f32.mrf.mxu0
    %v2412 = vadd.f32 %v340, %v2411
    %v2413 = vpop.f32.mrf.mxu0
    %2414 = vmatprep.mubr.bf16.mxu0 0
    %2415 = vmatmul.mubr.bf16.gmra.mxu0 %v1423
    %v2416 = vpop.f32.mrf.mxu0
    %v2417 = vadd.f32 %v340, %v2416
    %v2418 = vpop.f32.mrf.mxu0
    %v2419 = vpop.f32.mrf.mxu0
    %v2420 = vadd.f32 %v340, %v2419
    %v2421 = vpop.f32.mrf.mxu0
    %2422 = vmatprep.mubr.bf16.mxu0 0
    %2423 = vmatmul.mubr.bf16.gmra.mxu0 %v1426
    %v2424 = vpop.f32.mrf.mxu0
    %v2425 = vadd.f32 %v340, %v2424
    %v2426 = vpop.f32.mrf.mxu0
    %v2427 = vpop.f32.mrf.mxu0
    %v2428 = vadd.f32 %v340, %v2427
    %v2429 = vpop.f32.mrf.mxu0
    %2430 = vmatprep.mubr.bf16.mxu0 0
    %2431 = vmatmul.mubr.bf16.gmra.mxu0 %v1429
    %v2432 = vpop.f32.mrf.mxu0
    %v2433 = vadd.f32 %v340, %v2432
    %v2434 = vpop.f32.mrf.mxu0
    %v2435 = vpop.f32.mrf.mxu0
    %v2436 = vadd.f32 %v340, %v2435
    %v2437 = vpop.f32.mrf.mxu0
    %2438 = vmatprep.mubr.bf16.mxu0 0
    %2439 = vmatmul.mubr.bf16.gmra.mxu0 %v1432
    %v2440 = vpop.f32.mrf.mxu0
    %v2441 = vadd.f32 %v340, %v2440
    %v2442 = vpop.f32.mrf.mxu0
    %v2443 = vpop.f32.mrf.mxu0
    %v2444 = vadd.f32 %v340, %v2443
    %v2445 = vpop.f32.mrf.mxu0
    %2446 = vmatprep.mubr.bf16.mxu0 0
    %2447 = vmatmul.mubr.bf16.gmra.mxu0 %v1435
    %v2448 = vpop.f32.mrf.mxu0
    %v2449 = vadd.f32 %v340, %v2448
    %v2450 = vpop.f32.mrf.mxu0
    %v2451 = vpop.f32.mrf.mxu0
    %v2452 = vadd.f32 %v340, %v2451
    %v2453 = vpop.f32.mrf.mxu0
    %2454 = vmatprep.mubr.bf16.mxu0 0
    %2455 = vmatmul.mubr.bf16.gmra.mxu0 %v1438
    %v2456 = vpop.f32.mrf.mxu0
    %v2457 = vadd.f32 %v340, %v2456
    %v2458 = vpop.f32.mrf.mxu0
    %v2459 = vpop.f32.mrf.mxu0
    %v2460 = vadd.f32 %v340, %v2459
    %v2461 = vpop.f32.mrf.mxu0
    %2462 = vmatprep.mubr.bf16.mxu0 0
    %2463 = vmatmul.mubr.bf16.gmra.mxu0 %v1441
    %v2464 = vpop.f32.mrf.mxu0
    %v2465 = vadd.f32 %v340, %v2464
    %v2466 = vpop.f32.mrf.mxu0
    %v2467 = vpop.f32.mrf.mxu0
    %v2468 = vadd.f32 %v340, %v2467
    %v2469 = vpop.f32.mrf.mxu0
    %2470 = vmatprep.mubr.bf16.mxu0 0
    %2471 = vmatmul.mubr.bf16.gmra.mxu0 %v1444
    %v2472 = vpop.f32.mrf.mxu0
    %v2473 = vadd.f32 %v340, %v2472
    %v2474 = vpop.f32.mrf.mxu0
    %v2475 = vpop.f32.mrf.mxu0
    %v2476 = vadd.f32 %v340, %v2475
    %v2477 = vpop.f32.mrf.mxu0
    %2478 = vmatprep.mubr.bf16.mxu0 0
    %2479 = vmatmul.mubr.bf16.gmra.mxu0 %v1447
    %v2480 = vpop.f32.mrf.mxu0
    %v2481 = vadd.f32 %v340, %v2480
    %v2482 = vpop.f32.mrf.mxu0
    %v2483 = vpop.f32.mrf.mxu0
    %v2484 = vadd.f32 %v340, %v2483
    %v2485 = vpop.f32.mrf.mxu0
    %2486 = vmatprep.mubr.bf16.mxu0 0
    %2487 = vmatmul.mubr.bf16.gmra.mxu0 %v1450
    %v2488 = vpop.f32.mrf.mxu0
    %v2489 = vadd.f32 %v340, %v2488
    %v2490 = vpop.f32.mrf.mxu0
    %v2491 = vpop.f32.mrf.mxu0
    %v2492 = vadd.f32 %v340, %v2491
    %v2493 = vpop.f32.mrf.mxu0
    %2494 = vmatprep.mubr.bf16.mxu0 0
    %2495 = vmatmul.mubr.bf16.gmra.mxu0 %v1453
    %v2496 = vpop.f32.mrf.mxu0
    %v2497 = vadd.f32 %v340, %v2496
    %v2498 = vpop.f32.mrf.mxu0
    %v2499 = vpop.f32.mrf.mxu0
    %v2500 = vadd.f32 %v340, %v2499
    %v2501 = vpop.f32.mrf.mxu0
    %2502 = vmatprep.mubr.bf16.mxu0 0
    %2503 = vmatmul.mubr.bf16.gmra.mxu0 %v1456
    %v2504 = vpop.f32.mrf.mxu0
    %v2505 = vadd.f32 %v340, %v2504
    %v2506 = vpop.f32.mrf.mxu0
    %v2507 = vpop.f32.mrf.mxu0
    %v2508 = vadd.f32 %v340, %v2507
    %v2509 = vpop.f32.mrf.mxu0
    %2510 = vmatprep.mubr.bf16.mxu0 0
    %2511 = vmatmul.mubr.bf16.gmra.mxu0 %v1459
    %v2512 = vpop.f32.mrf.mxu0
    %v2513 = vadd.f32 %v340, %v2512
    %v2514 = vpop.f32.mrf.mxu0
    %v2515 = vpop.f32.mrf.mxu0
    %v2516 = vadd.f32 %v340, %v2515
    %v2517 = vpop.f32.mrf.mxu0
    %2518 = vmatprep.mubr.bf16.mxu0 0
    %2519 = vmatmul.mubr.bf16.gmra.mxu0 %v1462
    %v2520 = vpop.f32.mrf.mxu0
    %v2521 = vadd.f32 %v340, %v2520
    %v2522 = vpop.f32.mrf.mxu0
    %v2523 = vpop.f32.mrf.mxu0
    %v2524 = vadd.f32 %v340, %v2523
    %v2525 = vpop.f32.mrf.mxu0
    %2526 = vmatprep.mubr.bf16.mxu0 0
    %2527 = vmatmul.mubr.bf16.gmra.mxu0 %v1465
    %v2528 = vpop.f32.mrf.mxu0
    %v2529 = vadd.f32 %v340, %v2528
    %v2530 = vpop.f32.mrf.mxu0
    %v2531 = vpop.f32.mrf.mxu0
    %v2532 = vadd.f32 %v340, %v2531
    %v2533 = vpop.f32.mrf.mxu0
    %2534 = vmatprep.mubr.bf16.mxu0 0
    %2535 = vmatmul.mubr.bf16.gmra.mxu0 %v1468
    %v2536 = vpop.f32.mrf.mxu0
    %v2537 = vadd.f32 %v340, %v2536
    %v2538 = vpop.f32.mrf.mxu0
    %v2539 = vpop.f32.mrf.mxu0
    %v2540 = vadd.f32 %v340, %v2539
    %v2541 = vpop.f32.mrf.mxu0
    %2542 = vmatprep.mubr.bf16.mxu0 0
    %2543 = vmatmul.mubr.bf16.gmra.mxu0 %v1471
    %v2544 = vpop.f32.mrf.mxu0
    %v2545 = vadd.f32 %v340, %v2544
    %v2546 = vpop.f32.mrf.mxu0
    %v2547 = vpop.f32.mrf.mxu0
    %v2548 = vadd.f32 %v340, %v2547
    %v2549 = vpop.f32.mrf.mxu0
    %2550 = vmatprep.mubr.bf16.mxu0 0
    %2551 = vmatmul.mubr.bf16.gmra.mxu0 %v1474
    %v2552 = vpop.f32.mrf.mxu0
    %v2553 = vadd.f32 %v340, %v2552
    %v2554 = vpop.f32.mrf.mxu0
    %v2555 = vpop.f32.mrf.mxu0
    %v2556 = vadd.f32 %v340, %v2555
    %v2557 = vpop.f32.mrf.mxu0
    %2558 = vmatprep.mubr.bf16.mxu0 0
    %2559 = vmatmul.mubr.bf16.gmra.mxu0 %v1477
    %v2560 = vpop.f32.mrf.mxu0
    %v2561 = vadd.f32 %v340, %v2560
    %v2562 = vpop.f32.mrf.mxu0
    %v2563 = vpop.f32.mrf.mxu0
    %v2564 = vadd.f32 %v340, %v2563
    %v2565 = vpop.f32.mrf.mxu0
    %2566 = vmatprep.mubr.bf16.mxu0 0
    %2567 = vmatmul.mubr.bf16.gmra.mxu0 %v1480
    %v2568 = vpop.f32.mrf.mxu0
    %v2569 = vadd.f32 %v340, %v2568
    %v2570 = vpop.f32.mrf.mxu0
    %v2571 = vpop.f32.mrf.mxu0
    %v2572 = vadd.f32 %v340, %v2571
    %v2573 = vpop.f32.mrf.mxu0
    %2574 = vmatprep.mubr.bf16.mxu0 0
    %2575 = vmatmul.mubr.bf16.gmra.mxu0 %v1483
    %v2576 = vpop.f32.mrf.mxu0
    %v2577 = vadd.f32 %v340, %v2576
    %v2578 = vpop.f32.mrf.mxu0
    %v2579 = vpop.f32.mrf.mxu0
    %v2580 = vadd.f32 %v340, %v2579
    %v2581 = vpop.f32.mrf.mxu0
    %2582 = vmatprep.mubr.bf16.mxu0 0
    %2583 = vmatmul.mubr.bf16.gmra.mxu0 %v1486
    %v2584 = vpop.f32.mrf.mxu0
    %v2585 = vadd.f32 %v340, %v2584
    %v2586 = vpop.f32.mrf.mxu0
    %v2587 = vpop.f32.mrf.mxu0
    %v2588 = vadd.f32 %v340, %v2587
    %v2589 = vpop.f32.mrf.mxu0
    %2590 = vmatprep.mubr.bf16.mxu0 0
    %2591 = vmatmul.mubr.bf16.gmra.mxu0 %v1489
    %v2592 = vpop.f32.mrf.mxu0
    %v2593 = vadd.f32 %v340, %v2592
    %v2594 = vpop.f32.mrf.mxu0
    %v2595 = vpop.f32.mrf.mxu0
    %v2596 = vadd.f32 %v340, %v2595
    %v2597 = vpop.f32.mrf.mxu0
    %2598 = vmatprep.mubr.bf16.mxu0 0
    %2599 = vmatmul.mubr.bf16.gmra.mxu0 %v1492
    %v2600 = vpop.f32.mrf.mxu0
    %v2601 = vadd.f32 %v340, %v2600
    %v2602 = vpop.f32.mrf.mxu0
    %v2603 = vpop.f32.mrf.mxu0
    %v2604 = vadd.f32 %v340, %v2603
    %v2605 = vpop.f32.mrf.mxu0
    %2606 = vmatprep.mubr.bf16.mxu0 0
    %2607 = vmatmul.mubr.bf16.gmra.mxu0 %v1495
    %v2608 = vpop.f32.mrf.mxu0
    %v2609 = vadd.f32 %v340, %v2608
    %v2610 = vpop.f32.mrf.mxu0
    %v2611 = vpop.f32.mrf.mxu0
    %v2612 = vadd.f32 %v340, %v2611
    %v2613 = vpop.f32.mrf.mxu0
    %2614 = vmatprep.mubr.bf16.mxu0 0
    %2615 = vmatmul.mubr.bf16.gmra.mxu0 %v1498
    %v2616 = vpop.f32.mrf.mxu0
    %v2617 = vadd.f32 %v340, %v2616
    %v2618 = vpop.f32.mrf.mxu0
    %v2619 = vpop.f32.mrf.mxu0
    %v2620 = vadd.f32 %v340, %v2619
    %v2621 = vpop.f32.mrf.mxu0
    %2622 = vmatprep.mubr.bf16.mxu0 0
    %2623 = vmatmul.mubr.bf16.gmra.mxu0 %v1501
    %v2624 = vpop.f32.mrf.mxu0
    %v2625 = vadd.f32 %v340, %v2624
    %v2626 = vpop.f32.mrf.mxu0
    %v2627 = vpop.f32.mrf.mxu0
    %v2628 = vadd.f32 %v340, %v2627
    %v2629 = vpop.f32.mrf.mxu0
    %2630 = vmatprep.mubr.bf16.mxu0 0
    %2631 = vmatmul.mubr.bf16.gmra.mxu0 %v1504
    %v2632 = vpop.f32.mrf.mxu0
    %v2633 = vadd.f32 %v340, %v2632
    %v2634 = vpop.f32.mrf.mxu0
    %v2635 = vpop.f32.mrf.mxu0
    %v2636 = vadd.f32 %v340, %v2635
    %v2637 = vpop.f32.mrf.mxu0
    %2638 = vmatprep.mubr.bf16.mxu0 0
    %2639 = vmatmul.mubr.bf16.gmra.mxu0 %v1507
    %v2640 = vpop.f32.mrf.mxu0
    %v2641 = vadd.f32 %v340, %v2640
    %v2642 = vpop.f32.mrf.mxu0
    %v2643 = vpop.f32.mrf.mxu0
    %v2644 = vadd.f32 %v340, %v2643
    %v2645 = vpop.f32.mrf.mxu0
    %2646 = vmatprep.mubr.bf16.mxu0 0
    %2647 = vmatmul.mubr.bf16.gmra.mxu0 %v1510
    %v2648 = vpop.f32.mrf.mxu0
    %v2649 = vadd.f32 %v340, %v2648
    %v2650 = vpop.f32.mrf.mxu0
    %v2651 = vpop.f32.mrf.mxu0
    %v2652 = vadd.f32 %v340, %v2651
    %v2653 = vpop.f32.mrf.mxu0
    %2654 = vmatprep.mubr.bf16.mxu0 0
    %2655 = vmatmul.mubr.bf16.gmra.mxu0 %v1513
    %v2656 = vpop.f32.mrf.mxu0
    %v2657 = vadd.f32 %v340, %v2656
    %v2658 = vpop.f32.mrf.mxu0
    %v2659 = vpop.f32.mrf.mxu0
    %v2660 = vadd.f32 %v340, %v2659
    %v2661 = vpop.f32.mrf.mxu0
    %2662 = vmatprep.mubr.bf16.mxu0 0
    %2663 = vmatmul.mubr.bf16.gmra.mxu0 %v1516
    %v2664 = vpop.f32.mrf.mxu0
    %v2665 = vadd.f32 %v340, %v2664
    %v2666 = vpop.f32.mrf.mxu0
    %v2667 = vpop.f32.mrf.mxu0
    %v2668 = vadd.f32 %v340, %v2667
    %v2669 = vpop.f32.mrf.mxu0
    %2670 = vmatprep.mubr.bf16.mxu0 0
    %2671 = vmatmul.mubr.bf16.gmra.mxu0 %v1519
    %v2672 = vpop.f32.mrf.mxu0
    %v2673 = vadd.f32 %v340, %v2672
    %v2674 = vpop.f32.mrf.mxu0
    %v2675 = vpop.f32.mrf.mxu0
    %v2676 = vadd.f32 %v340, %v2675
    %v2677 = vpop.f32.mrf.mxu0
    %2678 = vmatprep.mubr.bf16.mxu0 0
    %2679 = vmatmul.mubr.bf16.gmra.mxu0 %v1522
    %v2680 = vpop.f32.mrf.mxu0
    %v2681 = vadd.f32 %v340, %v2680
    %v2682 = vpop.f32.mrf.mxu0
    %v2683 = vpop.f32.mrf.mxu0
    %v2684 = vadd.f32 %v340, %v2683
    %v2685 = vpop.f32.mrf.mxu0
    %2686 = vmatprep.mubr.bf16.mxu0 0
    %2687 = vmatmul.mubr.bf16.gmra.mxu0 %v1525
    %v2688 = vpop.f32.mrf.mxu0
    %v2689 = vadd.f32 %v340, %v2688
    %v2690 = vpop.f32.mrf.mxu0
    %v2691 = vpop.f32.mrf.mxu0
    %v2692 = vadd.f32 %v340, %v2691
    %v2693 = vpop.f32.mrf.mxu0
    %2694 = vmatprep.mubr.bf16.mxu0 0
    %2695 = vmatmul.mubr.bf16.gmra.mxu0 %v1528
    %v2696 = vpop.f32.mrf.mxu0
    %v2697 = vadd.f32 %v340, %v2696
    %v2698 = vpop.f32.mrf.mxu0
    %v2699 = vpop.f32.mrf.mxu0
    %v2700 = vadd.f32 %v340, %v2699
    %v2701 = vpop.f32.mrf.mxu0
    %2702 = vmatprep.mubr.bf16.mxu0 0
    %2703 = vmatmul.mubr.bf16.gmra.mxu0 %v1531
    %v2704 = vpop.f32.mrf.mxu0
    %v2705 = vadd.f32 %v340, %v2704
    %v2706 = vpop.f32.mrf.mxu0
    %v2707 = vpop.f32.mrf.mxu0
    %v2708 = vadd.f32 %v340, %v2707
    %v2709 = vpop.f32.mrf.mxu0
    %2710 = vmatprep.mubr.bf16.mxu0 0
    %2711 = vmatmul.mubr.bf16.gmra.mxu0 %v1534
    %v2712 = vpop.f32.mrf.mxu0
    %v2713 = vadd.f32 %v340, %v2712
    %v2714 = vpop.f32.mrf.mxu0
    %v2715 = vpop.f32.mrf.mxu0
    %v2716 = vadd.f32 %v340, %v2715
    %v2717 = vpop.f32.mrf.mxu0
    %2718 = vmatprep.mubr.bf16.mxu0 0
    %2719 = vmatmul.mubr.bf16.gmra.mxu0 %v1537
    %v2720 = vpop.f32.mrf.mxu0
    %v2721 = vadd.f32 %v340, %v2720
    %v2722 = vpop.f32.mrf.mxu0
    %v2723 = vpop.f32.mrf.mxu0
    %v2724 = vadd.f32 %v340, %v2723
    %v2725 = vpop.f32.mrf.mxu0
    %2726 = vmatprep.mubr.bf16.mxu0 0
    %2727 = vmatmul.mubr.bf16.gmra.mxu0 %v1540
    %v2728 = vpop.f32.mrf.mxu0
    %v2729 = vadd.f32 %v340, %v2728
    %v2730 = vpop.f32.mrf.mxu0
    %v2731 = vpop.f32.mrf.mxu0
    %v2732 = vadd.f32 %v340, %v2731
    %v2733 = vpop.f32.mrf.mxu0
    %2734 = vmatprep.mubr.bf16.mxu0 0
    %2735 = vmatmul.mubr.bf16.gmra.mxu0 %v1543
    %v2736 = vpop.f32.mrf.mxu0
    %v2737 = vadd.f32 %v340, %v2736
    %v2738 = vpop.f32.mrf.mxu0
    %v2739 = vpop.f32.mrf.mxu0
    %v2740 = vadd.f32 %v340, %v2739
    %v2741 = vpop.f32.mrf.mxu0
    %2742 = vmatprep.mubr.bf16.mxu0 0
    %2743 = vmatmul.mubr.bf16.gmra.mxu0 %v1546
    %v2744 = vpop.f32.mrf.mxu0
    %v2745 = vadd.f32 %v340, %v2744
    %v2746 = vpop.f32.mrf.mxu0
    %v2747 = vpop.f32.mrf.mxu0
    %v2748 = vadd.f32 %v340, %v2747
    %v2749 = vpop.f32.mrf.mxu0
    %2750 = vmatprep.mubr.bf16.mxu0 0
    %2751 = vmatmul.mubr.bf16.gmra.mxu0 %v1549
    %v2752 = vpop.f32.mrf.mxu0
    %v2753 = vadd.f32 %v340, %v2752
    %v2754 = vpop.f32.mrf.mxu0
    %v2755 = vpop.f32.mrf.mxu0
    %v2756 = vadd.f32 %v340, %v2755
    %v2757 = vpop.f32.mrf.mxu0
    %2758 = vmatprep.mubr.bf16.mxu0 0
    %2759 = vmatmul.mubr.bf16.gmra.mxu0 %v1552
    %v2760 = vpop.f32.mrf.mxu0
    %v2761 = vadd.f32 %v340, %v2760
    %v2762 = vpop.f32.mrf.mxu0
    %v2763 = vpop.f32.mrf.mxu0
    %v2764 = vadd.f32 %v340, %v2763
    %v2765 = vpop.f32.mrf.mxu0
    %2766 = vmatprep.mubr.bf16.mxu0 0
    %2767 = vmatmul.mubr.bf16.gmra.mxu0 %v1555
    %v2768 = vpop.f32.mrf.mxu0
    %v2769 = vadd.f32 %v340, %v2768
    %v2770 = vpop.f32.mrf.mxu0
    %v2771 = vpop.f32.mrf.mxu0
    %v2772 = vadd.f32 %v340, %v2771
    %v2773 = vpop.f32.mrf.mxu0
    %2774 = vmatprep.mubr.bf16.mxu0 0
    %2775 = vmatmul.mubr.bf16.gmra.mxu0 %v1558
    %v2776 = vpop.f32.mrf.mxu0
    %v2777 = vadd.f32 %v340, %v2776
    %v2778 = vpop.f32.mrf.mxu0
    %v2779 = vpop.f32.mrf.mxu0
    %v2780 = vadd.f32 %v340, %v2779
    %v2781 = vpop.f32.mrf.mxu0
    %2782 = vdwg.mxu0
    %v2783 = vmax.f32 %v1601, 0.0
    %v2784 = vmax.f32 %v1604, 0.0
    %v2785 = vmax.f32 %v1609, 0.0
    %v2786 = vmax.f32 %v1612, 0.0
    %v2787 = vmax.f32 %v1617, 0.0
    %v2788 = vmax.f32 %v1620, 0.0
    %v2789 = vmax.f32 %v1625, 0.0
    %v2790 = vmax.f32 %v1628, 0.0
    %v2791 = vmax.f32 %v1633, 0.0
    %v2792 = vmax.f32 %v1636, 0.0
    %v2793 = vmax.f32 %v1641, 0.0
    %v2794 = vmax.f32 %v1644, 0.0
    %v2795 = vmax.f32 %v1649, 0.0
    %v2796 = vmax.f32 %v1652, 0.0
    %v2797 = vmax.f32 %v1657, 0.0
    %v2798 = vmax.f32 %v1660, 0.0
    %v2799 = vmax.f32 %v1665, 0.0
    %v2800 = vmax.f32 %v1668, 0.0
    %v2801 = vmax.f32 %v1673, 0.0
    %v2802 = vmax.f32 %v1676, 0.0
    %v2803 = vmax.f32 %v1681, 0.0
    %v2804 = vmax.f32 %v1684, 0.0
    %v2805 = vmax.f32 %v1689, 0.0
    %v2806 = vmax.f32 %v1692, 0.0
    %v2807 = vmax.f32 %v1697, 0.0
    %v2808 = vmax.f32 %v1700, 0.0
    %v2809 = vmax.f32 %v1705, 0.0
    %v2810 = vmax.f32 %v1708, 0.0
    %v2811 = vmax.f32 %v1713, 0.0
    %v2812 = vmax.f32 %v1716, 0.0
    %v2813 = vmax.f32 %v1721, 0.0
    %v2814 = vmax.f32 %v1724, 0.0
    %v2815 = vmax.f32 %v1729, 0.0
    %v2816 = vmax.f32 %v1732, 0.0
    %v2817 = vmax.f32 %v1737, 0.0
    %v2818 = vmax.f32 %v1740, 0.0
    %v2819 = vmax.f32 %v1745, 0.0
    %v2820 = vmax.f32 %v1748, 0.0
    %v2821 = vmax.f32 %v1753, 0.0
    %v2822 = vmax.f32 %v1756, 0.0
    %v2823 = vmax.f32 %v1761, 0.0
    %v2824 = vmax.f32 %v1764, 0.0
    %v2825 = vmax.f32 %v1769, 0.0
    %v2826 = vmax.f32 %v1772, 0.0
    %v2827 = vmax.f32 %v1777, 0.0
    %v2828 = vmax.f32 %v1780, 0.0
    %v2829 = vmax.f32 %v1785, 0.0
    %v2830 = vmax.f32 %v1788, 0.0
    %v2831 = vmax.f32 %v1793, 0.0
    %v2832 = vmax.f32 %v1796, 0.0
    %v2833 = vmax.f32 %v1801, 0.0
    %v2834 = vmax.f32 %v1804, 0.0
    %v2835 = vmax.f32 %v1809, 0.0
    %v2836 = vmax.f32 %v1812, 0.0
    %v2837 = vmax.f32 %v1817, 0.0
    %v2838 = vmax.f32 %v1820, 0.0
    %v2839 = vmax.f32 %v1825, 0.0
    %v2840 = vmax.f32 %v1828, 0.0
    %v2841 = vmax.f32 %v1833, 0.0
    %v2842 = vmax.f32 %v1836, 0.0
    %v2843 = vmax.f32 %v1841, 0.0
    %v2844 = vmax.f32 %v1844, 0.0
    %v2845 = vmax.f32 %v1849, 0.0
    %v2846 = vmax.f32 %v1852, 0.0
    %v2847 = vmax.f32 %v1857, 0.0
    %v2848 = vmax.f32 %v1860, 0.0
    %v2849 = vmax.f32 %v1865, 0.0
    %v2850 = vmax.f32 %v1868, 0.0
    %v2851 = vmax.f32 %v1873, 0.0
    %v2852 = vmax.f32 %v1876, 0.0
    %v2853 = vmax.f32 %v1881, 0.0
    %v2854 = vmax.f32 %v1884, 0.0
    %v2855 = vmax.f32 %v1889, 0.0
    %v2856 = vmax.f32 %v1892, 0.0
    %v2857 = vmax.f32 %v1897, 0.0
    %v2858 = vmax.f32 %v1900, 0.0
    %v2859 = vmax.f32 %v1905, 0.0
    %v2860 = vmax.f32 %v1908, 0.0
    %v2861 = vmax.f32 %v1913, 0.0
    %v2862 = vmax.f32 %v1916, 0.0
    %v2863 = vmax.f32 %v1921, 0.0
    %v2864 = vmax.f32 %v1924, 0.0
    %v2865 = vmax.f32 %v1929, 0.0
    %v2866 = vmax.f32 %v1932, 0.0
    %v2867 = vmax.f32 %v1937, 0.0
    %v2868 = vmax.f32 %v1940, 0.0
    %v2869 = vmax.f32 %v1945, 0.0
    %v2870 = vmax.f32 %v1948, 0.0
    %v2871 = vmax.f32 %v1953, 0.0
    %v2872 = vmax.f32 %v1956, 0.0
    %v2873 = vmax.f32 %v1961, 0.0
    %v2874 = vmax.f32 %v1964, 0.0
    %v2875 = vmax.f32 %v1969, 0.0
    %v2876 = vmax.f32 %v1972, 0.0
    %v2877 = vmax.f32 %v1977, 0.0
    %v2878 = vmax.f32 %v1980, 0.0
    %v2879 = vmax.f32 %v1985, 0.0
    %v2880 = vmax.f32 %v1988, 0.0
    %v2881 = vmax.f32 %v1993, 0.0
    %v2882 = vmax.f32 %v1996, 0.0
    %v2883 = vmax.f32 %v2001, 0.0
    %v2884 = vmax.f32 %v2004, 0.0
    %v2885 = vmax.f32 %v2009, 0.0
    %v2886 = vmax.f32 %v2012, 0.0
    %v2887 = vmax.f32 %v2017, 0.0
    %v2888 = vmax.f32 %v2020, 0.0
    %v2889 = vmax.f32 %v2025, 0.0
    %v2890 = vmax.f32 %v2028, 0.0
    %v2891 = vmax.f32 %v2033, 0.0
    %v2892 = vmax.f32 %v2036, 0.0
    %v2893 = vmax.f32 %v2041, 0.0
    %v2894 = vmax.f32 %v2044, 0.0
    %v2895 = vmax.f32 %v2049, 0.0
    %v2896 = vmax.f32 %v2052, 0.0
    %v2897 = vmax.f32 %v2057, 0.0
    %v2898 = vmax.f32 %v2060, 0.0
    %v2899 = vmax.f32 %v2065, 0.0
    %v2900 = vmax.f32 %v2068, 0.0
    %v2901 = vmax.f32 %v2073, 0.0
    %v2902 = vmax.f32 %v2076, 0.0
    %v2903 = vmax.f32 %v2081, 0.0
    %v2904 = vmax.f32 %v2084, 0.0
    %v2905 = vmax.f32 %v2089, 0.0
    %v2906 = vmax.f32 %v2092, 0.0
    %v2907 = vmax.f32 %v2097, 0.0
    %v2908 = vmax.f32 %v2100, 0.0
    %v2909 = vmax.f32 %v2105, 0.0
    %v2910 = vmax.f32 %v2108, 0.0
    %v2911 = vmax.f32 %v2113, 0.0
    %v2912 = vmax.f32 %v2116, 0.0
    %v2913 = vmax.f32 %v2121, 0.0
    %v2914 = vmax.f32 %v2124, 0.0
    %v2915 = vmax.f32 %v2129, 0.0
    %v2916 = vmax.f32 %v2132, 0.0
    %v2917 = vmax.f32 %v2137, 0.0
    %v2918 = vmax.f32 %v2140, 0.0
    %v2919 = vmax.f32 %v2145, 0.0
    %v2920 = vmax.f32 %v2148, 0.0
    %v2921 = vmax.f32 %v2153, 0.0
    %v2922 = vmax.f32 %v2156, 0.0
    %v2923 = vmax.f32 %v2161, 0.0
    %v2924 = vmax.f32 %v2164, 0.0
    %v2925 = vmax.f32 %v2169, 0.0
    %v2926 = vmax.f32 %v2172, 0.0
    %v2927 = vmax.f32 %v2177, 0.0
    %v2928 = vmax.f32 %v2180, 0.0
    %v2929 = vmax.f32 %v2185, 0.0
    %v2930 = vmax.f32 %v2188, 0.0
    %v2931 = vmax.f32 %v2193, 0.0
    %v2932 = vmax.f32 %v2196, 0.0
    %v2933 = vmax.f32 %v2201, 0.0
    %v2934 = vmax.f32 %v2204, 0.0
    %v2935 = vmax.f32 %v2209, 0.0
    %v2936 = vmax.f32 %v2212, 0.0
    %v2937 = vmax.f32 %v2217, 0.0
    %v2938 = vmax.f32 %v2220, 0.0
    %v2939 = vmax.f32 %v2225, 0.0
    %v2940 = vmax.f32 %v2228, 0.0
    %v2941 = vmax.f32 %v2233, 0.0
    %v2942 = vmax.f32 %v2236, 0.0
    %v2943 = vmax.f32 %v2241, 0.0
    %v2944 = vmax.f32 %v2244, 0.0
    %v2945 = vmax.f32 %v2249, 0.0
    %v2946 = vmax.f32 %v2252, 0.0
    %v2947 = vmax.f32 %v2257, 0.0
    %v2948 = vmax.f32 %v2260, 0.0
    %v2949 = vmax.f32 %v2265, 0.0
    %v2950 = vmax.f32 %v2268, 0.0
    %v2951 = vmax.f32 %v2273, 0.0
    %v2952 = vmax.f32 %v2276, 0.0
    %v2953 = vmax.f32 %v2281, 0.0
    %v2954 = vmax.f32 %v2284, 0.0
    %v2955 = vmax.f32 %v2289, 0.0
    %v2956 = vmax.f32 %v2292, 0.0
    %v2957 = vmax.f32 %v2297, 0.0
    %v2958 = vmax.f32 %v2300, 0.0
    %v2959 = vmax.f32 %v2305, 0.0
    %v2960 = vmax.f32 %v2308, 0.0
    %v2961 = vmax.f32 %v2313, 0.0
    %v2962 = vmax.f32 %v2316, 0.0
    %v2963 = vmax.f32 %v2321, 0.0
    %v2964 = vmax.f32 %v2324, 0.0
    %v2965 = vmax.f32 %v2329, 0.0
    %v2966 = vmax.f32 %v2332, 0.0
    %v2967 = vmax.f32 %v2337, 0.0
    %v2968 = vmax.f32 %v2340, 0.0
    %v2969 = vmax.f32 %v2345, 0.0
    %v2970 = vmax.f32 %v2348, 0.0
    %v2971 = vmax.f32 %v2353, 0.0
    %v2972 = vmax.f32 %v2356, 0.0
    %v2973 = vmax.f32 %v2361, 0.0
    %v2974 = vmax.f32 %v2364, 0.0
    %v2975 = vmax.f32 %v2369, 0.0
    %v2976 = vmax.f32 %v2372, 0.0
    %v2977 = vmax.f32 %v2377, 0.0
    %v2978 = vmax.f32 %v2380, 0.0
    %v2979 = vmax.f32 %v2385, 0.0
    %v2980 = vmax.f32 %v2388, 0.0
    %v2981 = vmax.f32 %v2393, 0.0
    %v2982 = vmax.f32 %v2396, 0.0
    %v2983 = vmax.f32 %v2401, 0.0
    %v2984 = vmax.f32 %v2404, 0.0
    %v2985 = vmax.f32 %v2409, 0.0
    %v2986 = vmax.f32 %v2412, 0.0
    %v2987 = vmax.f32 %v2417, 0.0
    %v2988 = vmax.f32 %v2420, 0.0
    %v2989 = vmax.f32 %v2425, 0.0
    %v2990 = vmax.f32 %v2428, 0.0
    %v2991 = vmax.f32 %v2433, 0.0
    %v2992 = vmax.f32 %v2436, 0.0
    %v2993 = vmax.f32 %v2441, 0.0
    %v2994 = vmax.f32 %v2444, 0.0
    %v2995 = vmax.f32 %v2449, 0.0
    %v2996 = vmax.f32 %v2452, 0.0
    %v2997 = vmax.f32 %v2457, 0.0
    %v2998 = vmax.f32 %v2460, 0.0
    %v2999 = vmax.f32 %v2465, 0.0
    %v3000 = vmax.f32 %v2468, 0.0
    %v3001 = vmax.f32 %v2473, 0.0
    %v3002 = vmax.f32 %v2476, 0.0
    %v3003 = vmax.f32 %v2481, 0.0
    %v3004 = vmax.f32 %v2484, 0.0
    %v3005 = vmax.f32 %v2489, 0.0
    %v3006 = vmax.f32 %v2492, 0.0
    %v3007 = vmax.f32 %v2497, 0.0
    %v3008 = vmax.f32 %v2500, 0.0
    %v3009 = vmax.f32 %v2505, 0.0
    %v3010 = vmax.f32 %v2508, 0.0
    %v3011 = vmax.f32 %v2513, 0.0
    %v3012 = vmax.f32 %v2516, 0.0
    %v3013 = vmax.f32 %v2521, 0.0
    %v3014 = vmax.f32 %v2524, 0.0
    %v3015 = vmax.f32 %v2529, 0.0
    %v3016 = vmax.f32 %v2532, 0.0
    %v3017 = vmax.f32 %v2537, 0.0
    %v3018 = vmax.f32 %v2540, 0.0
    %v3019 = vmax.f32 %v2545, 0.0
    %v3020 = vmax.f32 %v2548, 0.0
    %v3021 = vmax.f32 %v2553, 0.0
    %v3022 = vmax.f32 %v2556, 0.0
    %v3023 = vmax.f32 %v2561, 0.0
    %v3024 = vmax.f32 %v2564, 0.0
    %v3025 = vmax.f32 %v2569, 0.0
    %v3026 = vmax.f32 %v2572, 0.0
    %v3027 = vmax.f32 %v2577, 0.0
    %v3028 = vmax.f32 %v2580, 0.0
    %v3029 = vmax.f32 %v2585, 0.0
    %v3030 = vmax.f32 %v2588, 0.0
    %v3031 = vmax.f32 %v2593, 0.0
    %v3032 = vmax.f32 %v2596, 0.0
    %v3033 = vmax.f32 %v2601, 0.0
    %v3034 = vmax.f32 %v2604, 0.0
    %v3035 = vmax.f32 %v2609, 0.0
    %v3036 = vmax.f32 %v2612, 0.0
    %v3037 = vmax.f32 %v2617, 0.0
    %v3038 = vmax.f32 %v2620, 0.0
    %v3039 = vmax.f32 %v2625, 0.0
    %v3040 = vmax.f32 %v2628, 0.0
    %v3041 = vmax.f32 %v2633, 0.0
    %v3042 = vmax.f32 %v2636, 0.0
    %v3043 = vmax.f32 %v2641, 0.0
    %v3044 = vmax.f32 %v2644, 0.0
    %v3045 = vmax.f32 %v2649, 0.0
    %v3046 = vmax.f32 %v2652, 0.0
    %v3047 = vmax.f32 %v2657, 0.0
    %v3048 = vmax.f32 %v2660, 0.0
    %v3049 = vmax.f32 %v2665, 0.0
    %v3050 = vmax.f32 %v2668, 0.0
    %v3051 = vmax.f32 %v2673, 0.0
    %v3052 = vmax.f32 %v2676, 0.0
    %v3053 = vmax.f32 %v2681, 0.0
    %v3054 = vmax.f32 %v2684, 0.0
    %v3055 = vmax.f32 %v2689, 0.0
    %v3056 = vmax.f32 %v2692, 0.0
    %v3057 = vmax.f32 %v2697, 0.0
    %v3058 = vmax.f32 %v2700, 0.0
    %v3059 = vmax.f32 %v2705, 0.0
    %v3060 = vmax.f32 %v2708, 0.0
    %v3061 = vmax.f32 %v2713, 0.0
    %v3062 = vmax.f32 %v2716, 0.0
    %v3063 = vmax.f32 %v2721, 0.0
    %v3064 = vmax.f32 %v2724, 0.0
    %v3065 = vmax.f32 %v2729, 0.0
    %v3066 = vmax.f32 %v2732, 0.0
    %v3067 = vmax.f32 %v2737, 0.0
    %v3068 = vmax.f32 %v2740, 0.0
    %v3069 = vmax.f32 %v2745, 0.0
    %v3070 = vmax.f32 %v2748, 0.0
    %v3071 = vmax.f32 %v2753, 0.0
    %v3072 = vmax.f32 %v2756, 0.0
    %v3073 = vmax.f32 %v2761, 0.0
    %v3074 = vmax.f32 %v2764, 0.0
    %v3075 = vmax.f32 %v2769, 0.0
    %v3076 = vmax.f32 %v2772, 0.0
    %v3077 = vmax.f32 %v2777, 0.0
    %v3078 = vmax.f32 %v2780, 0.0
    %v3079 = vld [vmem:[#allocation2] sm:$0x3]
    %vm3080 = vcmask 523264
    %v3081 = vsel %vm3080, %v2783, 0.0
    %v3082 = vsel %vm3080, %v2784, 0.0
    %v3083 = vadd.f32 %v3081, %v3082
    %v3084 = vsel %vm3080, %v2785, 0.0
    %v3085 = vadd.f32 %v3083, %v3084
    %v3086 = vsel %vm3080, %v2786, 0.0
    %v3087 = vadd.f32 %v3085, %v3086
    %v3088 = vsel %vm3080, %v2787, 0.0
    %v3089 = vadd.f32 %v3087, %v3088
    %v3090 = vsel %vm3080, %v2788, 0.0
    %v3091 = vadd.f32 %v3089, %v3090
    %v3092 = vsel %vm3080, %v2789, 0.0
    %v3093 = vadd.f32 %v3091, %v3092
    %v3094 = vsel %vm3080, %v2790, 0.0
    %v3095 = vadd.f32 %v3093, %v3094
    %v3096 = vsel %vm3080, %v2791, 0.0
    %v3097 = vadd.f32 %v3095, %v3096
    %v3098 = vsel %vm3080, %v2792, 0.0
    %v3099 = vadd.f32 %v3097, %v3098
    %v3100 = vsel %vm3080, %v2793, 0.0
    %v3101 = vadd.f32 %v3099, %v3100
    %v3102 = vsel %vm3080, %v2794, 0.0
    %v3103 = vadd.f32 %v3101, %v3102
    %v3104 = vsel %vm3080, %v2795, 0.0
    %v3105 = vadd.f32 %v3103, %v3104
    %v3106 = vsel %vm3080, %v2796, 0.0
    %v3107 = vadd.f32 %v3105, %v3106
    %v3108 = vsel %vm3080, %v2797, 0.0
    %v3109 = vadd.f32 %v3107, %v3108
    %v3110 = vsel %vm3080, %v2798, 0.0
    %v3111 = vadd.f32 %v3109, %v3110
    %v3112 = vsel %vm3080, %v2799, 0.0
    %v3113 = vadd.f32 %v3111, %v3112
    %v3114 = vsel %vm3080, %v2800, 0.0
    %v3115 = vadd.f32 %v3113, %v3114
    %v3116 = vsel %vm3080, %v2801, 0.0
    %v3117 = vadd.f32 %v3115, %v3116
    %v3118 = vsel %vm3080, %v2802, 0.0
    %v3119 = vadd.f32 %v3117, %v3118
    %v3120 = vsel %vm3080, %v2803, 0.0
    %v3121 = vadd.f32 %v3119, %v3120
    %v3122 = vsel %vm3080, %v2804, 0.0
    %v3123 = vadd.f32 %v3121, %v3122
    %v3124 = vsel %vm3080, %v2805, 0.0
    %v3125 = vadd.f32 %v3123, %v3124
    %v3126 = vsel %vm3080, %v2806, 0.0
    %v3127 = vadd.f32 %v3125, %v3126
    %v3128 = vsel %vm3080, %v2807, 0.0
    %v3129 = vadd.f32 %v3127, %v3128
    %v3130 = vsel %vm3080, %v2808, 0.0
    %v3131 = vadd.f32 %v3129, %v3130
    %v3132 = vsel %vm3080, %v2809, 0.0
    %v3133 = vadd.f32 %v3131, %v3132
    %v3134 = vsel %vm3080, %v2810, 0.0
    %v3135 = vadd.f32 %v3133, %v3134
    %v3136 = vsel %vm3080, %v2811, 0.0
    %v3137 = vadd.f32 %v3135, %v3136
    %v3138 = vsel %vm3080, %v2812, 0.0
    %v3139 = vadd.f32 %v3137, %v3138
    %v3140 = vsel %vm3080, %v2813, 0.0
    %v3141 = vadd.f32 %v3139, %v3140
    %v3142 = vsel %vm3080, %v2814, 0.0
    %v3143 = vadd.f32 %v3141, %v3142
    %v3144 = vsel %vm3080, %v2815, 0.0
    %v3145 = vadd.f32 %v3143, %v3144
    %v3146 = vsel %vm3080, %v2816, 0.0
    %v3147 = vadd.f32 %v3145, %v3146
    %v3148 = vsel %vm3080, %v2817, 0.0
    %v3149 = vadd.f32 %v3147, %v3148
    %v3150 = vsel %vm3080, %v2818, 0.0
    %v3151 = vadd.f32 %v3149, %v3150
    %v3152 = vsel %vm3080, %v2819, 0.0
    %v3153 = vadd.f32 %v3151, %v3152
    %v3154 = vsel %vm3080, %v2820, 0.0
    %v3155 = vadd.f32 %v3153, %v3154
    %v3156 = vsel %vm3080, %v2821, 0.0
    %v3157 = vadd.f32 %v3155, %v3156
    %v3158 = vsel %vm3080, %v2822, 0.0
    %v3159 = vadd.f32 %v3157, %v3158
    %v3160 = vsel %vm3080, %v2823, 0.0
    %v3161 = vadd.f32 %v3159, %v3160
    %v3162 = vsel %vm3080, %v2824, 0.0
    %v3163 = vadd.f32 %v3161, %v3162
    %v3164 = vsel %vm3080, %v2825, 0.0
    %v3165 = vadd.f32 %v3163, %v3164
    %v3166 = vsel %vm3080, %v2826, 0.0
    %v3167 = vadd.f32 %v3165, %v3166
    %v3168 = vsel %vm3080, %v2827, 0.0
    %v3169 = vadd.f32 %v3167, %v3168
    %v3170 = vsel %vm3080, %v2828, 0.0
    %v3171 = vadd.f32 %v3169, %v3170
    %v3172 = vsel %vm3080, %v2829, 0.0
    %v3173 = vadd.f32 %v3171, %v3172
    %v3174 = vsel %vm3080, %v2830, 0.0
    %v3175 = vadd.f32 %v3173, %v3174
    %v3176 = vsel %vm3080, %v2831, 0.0
    %v3177 = vadd.f32 %v3175, %v3176
    %v3178 = vsel %vm3080, %v2832, 0.0
    %v3179 = vadd.f32 %v3177, %v3178
    %v3180 = vsel %vm3080, %v2833, 0.0
    %v3181 = vadd.f32 %v3179, %v3180
    %v3182 = vsel %vm3080, %v2834, 0.0
    %v3183 = vadd.f32 %v3181, %v3182
    %v3184 = vsel %vm3080, %v2835, 0.0
    %v3185 = vadd.f32 %v3183, %v3184
    %v3186 = vsel %vm3080, %v2836, 0.0
    %v3187 = vadd.f32 %v3185, %v3186
    %v3188 = vsel %vm3080, %v2837, 0.0
    %v3189 = vadd.f32 %v3187, %v3188
    %v3190 = vsel %vm3080, %v2838, 0.0
    %v3191 = vadd.f32 %v3189, %v3190
    %v3192 = vsel %vm3080, %v2839, 0.0
    %v3193 = vadd.f32 %v3191, %v3192
    %v3194 = vsel %vm3080, %v2840, 0.0
    %v3195 = vadd.f32 %v3193, %v3194
    %v3196 = vsel %vm3080, %v2841, 0.0
    %v3197 = vadd.f32 %v3195, %v3196
    %v3198 = vsel %vm3080, %v2842, 0.0
    %v3199 = vadd.f32 %v3197, %v3198
    %v3200 = vsel %vm3080, %v2843, 0.0
    %v3201 = vadd.f32 %v3199, %v3200
    %v3202 = vsel %vm3080, %v2844, 0.0
    %v3203 = vadd.f32 %v3201, %v3202
    %v3204 = vsel %vm3080, %v2845, 0.0
    %v3205 = vadd.f32 %v3203, %v3204
    %v3206 = vsel %vm3080, %v2846, 0.0
    %v3207 = vadd.f32 %v3205, %v3206
    %v3208 = vsel %vm3080, %v2847, 0.0
    %v3209 = vadd.f32 %v3207, %v3208
    %v3210 = vsel %vm3080, %v2848, 0.0
    %v3211 = vadd.f32 %v3209, %v3210
    %v3212 = vsel %vm3080, %v2849, 0.0
    %v3213 = vadd.f32 %v3211, %v3212
    %v3214 = vsel %vm3080, %v2850, 0.0
    %v3215 = vadd.f32 %v3213, %v3214
    %v3216 = vsel %vm3080, %v2851, 0.0
    %v3217 = vadd.f32 %v3215, %v3216
    %v3218 = vsel %vm3080, %v2852, 0.0
    %v3219 = vadd.f32 %v3217, %v3218
    %v3220 = vsel %vm3080, %v2853, 0.0
    %v3221 = vadd.f32 %v3219, %v3220
    %v3222 = vsel %vm3080, %v2854, 0.0
    %v3223 = vadd.f32 %v3221, %v3222
    %v3224 = vsel %vm3080, %v2855, 0.0
    %v3225 = vadd.f32 %v3223, %v3224
    %v3226 = vsel %vm3080, %v2856, 0.0
    %v3227 = vadd.f32 %v3225, %v3226
    %v3228 = vsel %vm3080, %v2857, 0.0
    %v3229 = vadd.f32 %v3227, %v3228
    %v3230 = vsel %vm3080, %v2858, 0.0
    %v3231 = vadd.f32 %v3229, %v3230
    %v3232 = vsel %vm3080, %v2859, 0.0
    %v3233 = vadd.f32 %v3231, %v3232
    %v3234 = vsel %vm3080, %v2860, 0.0
    %v3235 = vadd.f32 %v3233, %v3234
    %v3236 = vsel %vm3080, %v2861, 0.0
    %v3237 = vadd.f32 %v3235, %v3236
    %v3238 = vsel %vm3080, %v2862, 0.0
    %v3239 = vadd.f32 %v3237, %v3238
    %v3240 = vsel %vm3080, %v2863, 0.0
    %v3241 = vadd.f32 %v3239, %v3240
    %v3242 = vsel %vm3080, %v2864, 0.0
    %v3243 = vadd.f32 %v3241, %v3242
    %v3244 = vsel %vm3080, %v2865, 0.0
    %v3245 = vadd.f32 %v3243, %v3244
    %v3246 = vsel %vm3080, %v2866, 0.0
    %v3247 = vadd.f32 %v3245, %v3246
    %v3248 = vsel %vm3080, %v2867, 0.0
    %v3249 = vadd.f32 %v3247, %v3248
    %v3250 = vsel %vm3080, %v2868, 0.0
    %v3251 = vadd.f32 %v3249, %v3250
    %v3252 = vsel %vm3080, %v2869, 0.0
    %v3253 = vadd.f32 %v3251, %v3252
    %v3254 = vsel %vm3080, %v2870, 0.0
    %v3255 = vadd.f32 %v3253, %v3254
    %v3256 = vsel %vm3080, %v2871, 0.0
    %v3257 = vadd.f32 %v3255, %v3256
    %v3258 = vsel %vm3080, %v2872, 0.0
    %v3259 = vadd.f32 %v3257, %v3258
    %v3260 = vsel %vm3080, %v2873, 0.0
    %v3261 = vadd.f32 %v3259, %v3260
    %v3262 = vsel %vm3080, %v2874, 0.0
    %v3263 = vadd.f32 %v3261, %v3262
    %v3264 = vsel %vm3080, %v2875, 0.0
    %v3265 = vadd.f32 %v3263, %v3264
    %v3266 = vsel %vm3080, %v2876, 0.0
    %v3267 = vadd.f32 %v3265, %v3266
    %v3268 = vsel %vm3080, %v2877, 0.0
    %v3269 = vadd.f32 %v3267, %v3268
    %v3270 = vsel %vm3080, %v2878, 0.0
    %v3271 = vadd.f32 %v3269, %v3270
    %v3272 = vsel %vm3080, %v2879, 0.0
    %v3273 = vadd.f32 %v3271, %v3272
    %v3274 = vsel %vm3080, %v2880, 0.0
    %v3275 = vadd.f32 %v3273, %v3274
    %v3276 = vsel %vm3080, %v2881, 0.0
    %v3277 = vadd.f32 %v3275, %v3276
    %v3278 = vsel %vm3080, %v2882, 0.0
    %v3279 = vadd.f32 %v3277, %v3278
    %v3280 = vsel %vm3080, %v2883, 0.0
    %v3281 = vadd.f32 %v3279, %v3280
    %v3282 = vsel %vm3080, %v2884, 0.0
    %v3283 = vadd.f32 %v3281, %v3282
    %v3284 = vsel %vm3080, %v2885, 0.0
    %v3285 = vadd.f32 %v3283, %v3284
    %v3286 = vsel %vm3080, %v2886, 0.0
    %v3287 = vadd.f32 %v3285, %v3286
    %v3288 = vsel %vm3080, %v2887, 0.0
    %v3289 = vadd.f32 %v3287, %v3288
    %v3290 = vsel %vm3080, %v2888, 0.0
    %v3291 = vadd.f32 %v3289, %v3290
    %v3292 = vsel %vm3080, %v2889, 0.0
    %v3293 = vadd.f32 %v3291, %v3292
    %v3294 = vsel %vm3080, %v2890, 0.0
    %v3295 = vadd.f32 %v3293, %v3294
    %v3296 = vsel %vm3080, %v2891, 0.0
    %v3297 = vadd.f32 %v3295, %v3296
    %v3298 = vsel %vm3080, %v2892, 0.0
    %v3299 = vadd.f32 %v3297, %v3298
    %v3300 = vsel %vm3080, %v2893, 0.0
    %v3301 = vadd.f32 %v3299, %v3300
    %v3302 = vsel %vm3080, %v2894, 0.0
    %v3303 = vadd.f32 %v3301, %v3302
    %v3304 = vsel %vm3080, %v2895, 0.0
    %v3305 = vadd.f32 %v3303, %v3304
    %v3306 = vsel %vm3080, %v2896, 0.0
    %v3307 = vadd.f32 %v3305, %v3306
    %v3308 = vsel %vm3080, %v2897, 0.0
    %v3309 = vadd.f32 %v3307, %v3308
    %v3310 = vsel %vm3080, %v2898, 0.0
    %v3311 = vadd.f32 %v3309, %v3310
    %v3312 = vsel %vm3080, %v2899, 0.0
    %v3313 = vadd.f32 %v3311, %v3312
    %v3314 = vsel %vm3080, %v2900, 0.0
    %v3315 = vadd.f32 %v3313, %v3314
    %v3316 = vsel %vm3080, %v2901, 0.0
    %v3317 = vadd.f32 %v3315, %v3316
    %v3318 = vsel %vm3080, %v2902, 0.0
    %v3319 = vadd.f32 %v3317, %v3318
    %v3320 = vsel %vm3080, %v2903, 0.0
    %v3321 = vadd.f32 %v3319, %v3320
    %v3322 = vsel %vm3080, %v2904, 0.0
    %v3323 = vadd.f32 %v3321, %v3322
    %v3324 = vsel %vm3080, %v2905, 0.0
    %v3325 = vadd.f32 %v3323, %v3324
    %v3326 = vsel %vm3080, %v2906, 0.0
    %v3327 = vadd.f32 %v3325, %v3326
    %v3328 = vsel %vm3080, %v2907, 0.0
    %v3329 = vadd.f32 %v3327, %v3328
    %v3330 = vsel %vm3080, %v2908, 0.0
    %v3331 = vadd.f32 %v3329, %v3330
    %v3332 = vsel %vm3080, %v2909, 0.0
    %v3333 = vadd.f32 %v3331, %v3332
    %v3334 = vsel %vm3080, %v2910, 0.0
    %v3335 = vadd.f32 %v3333, %v3334
    %v3336 = vsel %vm3080, %v2911, 0.0
    %v3337 = vadd.f32 %v3335, %v3336
    %v3338 = vsel %vm3080, %v2912, 0.0
    %v3339 = vadd.f32 %v3337, %v3338
    %v3340 = vsel %vm3080, %v2913, 0.0
    %v3341 = vadd.f32 %v3339, %v3340
    %v3342 = vsel %vm3080, %v2914, 0.0
    %v3343 = vadd.f32 %v3341, %v3342
    %v3344 = vsel %vm3080, %v2915, 0.0
    %v3345 = vadd.f32 %v3343, %v3344
    %v3346 = vsel %vm3080, %v2916, 0.0
    %v3347 = vadd.f32 %v3345, %v3346
    %v3348 = vsel %vm3080, %v2917, 0.0
    %v3349 = vadd.f32 %v3347, %v3348
    %v3350 = vsel %vm3080, %v2918, 0.0
    %v3351 = vadd.f32 %v3349, %v3350
    %v3352 = vsel %vm3080, %v2919, 0.0
    %v3353 = vadd.f32 %v3351, %v3352
    %v3354 = vsel %vm3080, %v2920, 0.0
    %v3355 = vadd.f32 %v3353, %v3354
    %v3356 = vsel %vm3080, %v2921, 0.0
    %v3357 = vadd.f32 %v3355, %v3356
    %v3358 = vsel %vm3080, %v2922, 0.0
    %v3359 = vadd.f32 %v3357, %v3358
    %v3360 = vsel %vm3080, %v2923, 0.0
    %v3361 = vadd.f32 %v3359, %v3360
    %v3362 = vsel %vm3080, %v2924, 0.0
    %v3363 = vadd.f32 %v3361, %v3362
    %v3364 = vsel %vm3080, %v2925, 0.0
    %v3365 = vadd.f32 %v3363, %v3364
    %v3366 = vsel %vm3080, %v2926, 0.0
    %v3367 = vadd.f32 %v3365, %v3366
    %v3368 = vsel %vm3080, %v2927, 0.0
    %v3369 = vadd.f32 %v3367, %v3368
    %v3370 = vsel %vm3080, %v2928, 0.0
    %v3371 = vadd.f32 %v3369, %v3370
    %v3372 = vsel %vm3080, %v2929, 0.0
    %v3373 = vadd.f32 %v3371, %v3372
    %v3374 = vsel %vm3080, %v2930, 0.0
    %v3375 = vadd.f32 %v3373, %v3374
    %v3376 = vrot.slane %v3375, 4
    %v3377 = vadd.f32 %v3375, %v3376
    %v3378 = vrot.slane %v3377, 2
    %v3379 = vadd.f32 %v3377, %v3378
    %v3380 = vrot.slane %v3379, 1
    %v3381 = vadd.f32 %v3379, %v3380
    %v3382 = vsel %vm3080, %v2931, 0.0
    %v3383 = vsel %vm3080, %v2932, 0.0
    %v3384 = vadd.f32 %v3382, %v3383
    %v3385 = vsel %vm3080, %v2933, 0.0
    %v3386 = vadd.f32 %v3384, %v3385
    %v3387 = vsel %vm3080, %v2934, 0.0
    %v3388 = vadd.f32 %v3386, %v3387
    %v3389 = vsel %vm3080, %v2935, 0.0
    %v3390 = vadd.f32 %v3388, %v3389
    %v3391 = vsel %vm3080, %v2936, 0.0
    %v3392 = vadd.f32 %v3390, %v3391
    %v3393 = vsel %vm3080, %v2937, 0.0
    %v3394 = vadd.f32 %v3392, %v3393
    %v3395 = vsel %vm3080, %v2938, 0.0
    %v3396 = vadd.f32 %v3394, %v3395
    %v3397 = vsel %vm3080, %v2939, 0.0
    %v3398 = vadd.f32 %v3396, %v3397
    %v3399 = vsel %vm3080, %v2940, 0.0
    %v3400 = vadd.f32 %v3398, %v3399
    %v3401 = vsel %vm3080, %v2941, 0.0
    %v3402 = vadd.f32 %v3400, %v3401
    %v3403 = vsel %vm3080, %v2942, 0.0
    %v3404 = vadd.f32 %v3402, %v3403
    %v3405 = vsel %vm3080, %v2943, 0.0
    %v3406 = vadd.f32 %v3404, %v3405
    %v3407 = vsel %vm3080, %v2944, 0.0
    %v3408 = vadd.f32 %v3406, %v3407
    %v3409 = vsel %vm3080, %v2945, 0.0
    %v3410 = vadd.f32 %v3408, %v3409
    %v3411 = vsel %vm3080, %v2946, 0.0
    %v3412 = vadd.f32 %v3410, %v3411
    %v3413 = vsel %vm3080, %v2947, 0.0
    %v3414 = vadd.f32 %v3412, %v3413
    %v3415 = vsel %vm3080, %v2948, 0.0
    %v3416 = vadd.f32 %v3414, %v3415
    %v3417 = vsel %vm3080, %v2949, 0.0
    %v3418 = vadd.f32 %v3416, %v3417
    %v3419 = vsel %vm3080, %v2950, 0.0
    %v3420 = vadd.f32 %v3418, %v3419
    %v3421 = vsel %vm3080, %v2951, 0.0
    %v3422 = vadd.f32 %v3420, %v3421
    %v3423 = vsel %vm3080, %v2952, 0.0
    %v3424 = vadd.f32 %v3422, %v3423
    %v3425 = vsel %vm3080, %v2953, 0.0
    %v3426 = vadd.f32 %v3424, %v3425
    %v3427 = vsel %vm3080, %v2954, 0.0
    %v3428 = vadd.f32 %v3426, %v3427
    %v3429 = vsel %vm3080, %v2955, 0.0
    %v3430 = vadd.f32 %v3428, %v3429
    %v3431 = vsel %vm3080, %v2956, 0.0
    %v3432 = vadd.f32 %v3430, %v3431
    %v3433 = vsel %vm3080, %v2957, 0.0
    %v3434 = vadd.f32 %v3432, %v3433
    %v3435 = vsel %vm3080, %v2958, 0.0
    %v3436 = vadd.f32 %v3434, %v3435
    %v3437 = vsel %vm3080, %v2959, 0.0
    %v3438 = vadd.f32 %v3436, %v3437
    %v3439 = vsel %vm3080, %v2960, 0.0
    %v3440 = vadd.f32 %v3438, %v3439
    %v3441 = vsel %vm3080, %v2961, 0.0
    %v3442 = vadd.f32 %v3440, %v3441
    %v3443 = vsel %vm3080, %v2962, 0.0
    %v3444 = vadd.f32 %v3442, %v3443
    %v3445 = vsel %vm3080, %v2963, 0.0
    %v3446 = vadd.f32 %v3444, %v3445
    %v3447 = vsel %vm3080, %v2964, 0.0
    %v3448 = vadd.f32 %v3446, %v3447
    %v3449 = vsel %vm3080, %v2965, 0.0
    %v3450 = vadd.f32 %v3448, %v3449
    %v3451 = vsel %vm3080, %v2966, 0.0
    %v3452 = vadd.f32 %v3450, %v3451
    %v3453 = vsel %vm3080, %v2967, 0.0
    %v3454 = vadd.f32 %v3452, %v3453
    %v3455 = vsel %vm3080, %v2968, 0.0
    %v3456 = vadd.f32 %v3454, %v3455
    %v3457 = vsel %vm3080, %v2969, 0.0
    %v3458 = vadd.f32 %v3456, %v3457
    %v3459 = vsel %vm3080, %v2970, 0.0
    %v3460 = vadd.f32 %v3458, %v3459
    %v3461 = vsel %vm3080, %v2971, 0.0
    %v3462 = vadd.f32 %v3460, %v3461
    %v3463 = vsel %vm3080, %v2972, 0.0
    %v3464 = vadd.f32 %v3462, %v3463
    %v3465 = vsel %vm3080, %v2973, 0.0
    %v3466 = vadd.f32 %v3464, %v3465
    %v3467 = vsel %vm3080, %v2974, 0.0
    %v3468 = vadd.f32 %v3466, %v3467
    %v3469 = vsel %vm3080, %v2975, 0.0
    %v3470 = vadd.f32 %v3468, %v3469
    %v3471 = vsel %vm3080, %v2976, 0.0
    %v3472 = vadd.f32 %v3470, %v3471
    %v3473 = vsel %vm3080, %v2977, 0.0
    %v3474 = vadd.f32 %v3472, %v3473
    %v3475 = vsel %vm3080, %v2978, 0.0
    %v3476 = vadd.f32 %v3474, %v3475
    %v3477 = vsel %vm3080, %v2979, 0.0
    %v3478 = vadd.f32 %v3476, %v3477
    %v3479 = vsel %vm3080, %v2980, 0.0
    %v3480 = vadd.f32 %v3478, %v3479
    %v3481 = vsel %vm3080, %v2981, 0.0
    %v3482 = vadd.f32 %v3480, %v3481
    %v3483 = vsel %vm3080, %v2982, 0.0
    %v3484 = vadd.f32 %v3482, %v3483
    %v3485 = vsel %vm3080, %v2983, 0.0
    %v3486 = vadd.f32 %v3484, %v3485
    %v3487 = vsel %vm3080, %v2984, 0.0
    %v3488 = vadd.f32 %v3486, %v3487
    %v3489 = vsel %vm3080, %v2985, 0.0
    %v3490 = vadd.f32 %v3488, %v3489
    %v3491 = vsel %vm3080, %v2986, 0.0
    %v3492 = vadd.f32 %v3490, %v3491
    %v3493 = vsel %vm3080, %v2987, 0.0
    %v3494 = vadd.f32 %v3492, %v3493
    %v3495 = vsel %vm3080, %v2988, 0.0
    %v3496 = vadd.f32 %v3494, %v3495
    %v3497 = vsel %vm3080, %v2989, 0.0
    %v3498 = vadd.f32 %v3496, %v3497
    %v3499 = vsel %vm3080, %v2990, 0.0
    %v3500 = vadd.f32 %v3498, %v3499
    %v3501 = vsel %vm3080, %v2991, 0.0
    %v3502 = vadd.f32 %v3500, %v3501
    %v3503 = vsel %vm3080, %v2992, 0.0
    %v3504 = vadd.f32 %v3502, %v3503
    %v3505 = vsel %vm3080, %v2993, 0.0
    %v3506 = vadd.f32 %v3504, %v3505
    %v3507 = vsel %vm3080, %v2994, 0.0
    %v3508 = vadd.f32 %v3506, %v3507
    %v3509 = vsel %vm3080, %v2995, 0.0
    %v3510 = vadd.f32 %v3508, %v3509
    %v3511 = vsel %vm3080, %v2996, 0.0
    %v3512 = vadd.f32 %v3510, %v3511
    %v3513 = vsel %vm3080, %v2997, 0.0
    %v3514 = vadd.f32 %v3512, %v3513
    %v3515 = vsel %vm3080, %v2998, 0.0
    %v3516 = vadd.f32 %v3514, %v3515
    %v3517 = vsel %vm3080, %v2999, 0.0
    %v3518 = vadd.f32 %v3516, %v3517
    %v3519 = vsel %vm3080, %v3000, 0.0
    %v3520 = vadd.f32 %v3518, %v3519
    %v3521 = vsel %vm3080, %v3001, 0.0
    %v3522 = vadd.f32 %v3520, %v3521
    %v3523 = vsel %vm3080, %v3002, 0.0
    %v3524 = vadd.f32 %v3522, %v3523
    %v3525 = vsel %vm3080, %v3003, 0.0
    %v3526 = vadd.f32 %v3524, %v3525
    %v3527 = vsel %vm3080, %v3004, 0.0
    %v3528 = vadd.f32 %v3526, %v3527
    %v3529 = vsel %vm3080, %v3005, 0.0
    %v3530 = vadd.f32 %v3528, %v3529
    %v3531 = vsel %vm3080, %v3006, 0.0
    %v3532 = vadd.f32 %v3530, %v3531
    %v3533 = vsel %vm3080, %v3007, 0.0
    %v3534 = vadd.f32 %v3532, %v3533
    %v3535 = vsel %vm3080, %v3008, 0.0
    %v3536 = vadd.f32 %v3534, %v3535
    %v3537 = vsel %vm3080, %v3009, 0.0
    %v3538 = vadd.f32 %v3536, %v3537
    %v3539 = vsel %vm3080, %v3010, 0.0
    %v3540 = vadd.f32 %v3538, %v3539
    %v3541 = vsel %vm3080, %v3011, 0.0
    %v3542 = vadd.f32 %v3540, %v3541
    %v3543 = vsel %vm3080, %v3012, 0.0
    %v3544 = vadd.f32 %v3542, %v3543
    %v3545 = vsel %vm3080, %v3013, 0.0
    %v3546 = vadd.f32 %v3544, %v3545
    %v3547 = vsel %vm3080, %v3014, 0.0
    %v3548 = vadd.f32 %v3546, %v3547
    %v3549 = vsel %vm3080, %v3015, 0.0
    %v3550 = vadd.f32 %v3548, %v3549
    %v3551 = vsel %vm3080, %v3016, 0.0
    %v3552 = vadd.f32 %v3550, %v3551
    %v3553 = vsel %vm3080, %v3017, 0.0
    %v3554 = vadd.f32 %v3552, %v3553
    %v3555 = vsel %vm3080, %v3018, 0.0
    %v3556 = vadd.f32 %v3554, %v3555
    %v3557 = vsel %vm3080, %v3019, 0.0
    %v3558 = vadd.f32 %v3556, %v3557
    %v3559 = vsel %vm3080, %v3020, 0.0
    %v3560 = vadd.f32 %v3558, %v3559
    %v3561 = vsel %vm3080, %v3021, 0.0
    %v3562 = vadd.f32 %v3560, %v3561
    %v3563 = vsel %vm3080, %v3022, 0.0
    %v3564 = vadd.f32 %v3562, %v3563
    %v3565 = vsel %vm3080, %v3023, 0.0
    %v3566 = vadd.f32 %v3564, %v3565
    %v3567 = vsel %vm3080, %v3024, 0.0
    %v3568 = vadd.f32 %v3566, %v3567
    %v3569 = vsel %vm3080, %v3025, 0.0
    %v3570 = vadd.f32 %v3568, %v3569
    %v3571 = vsel %vm3080, %v3026, 0.0
    %v3572 = vadd.f32 %v3570, %v3571
    %v3573 = vsel %vm3080, %v3027, 0.0
    %v3574 = vadd.f32 %v3572, %v3573
    %v3575 = vsel %vm3080, %v3028, 0.0
    %v3576 = vadd.f32 %v3574, %v3575
    %v3577 = vsel %vm3080, %v3029, 0.0
    %v3578 = vadd.f32 %v3576, %v3577
    %v3579 = vsel %vm3080, %v3030, 0.0
    %v3580 = vadd.f32 %v3578, %v3579
    %v3581 = vsel %vm3080, %v3031, 0.0
    %v3582 = vadd.f32 %v3580, %v3581
    %v3583 = vsel %vm3080, %v3032, 0.0
    %v3584 = vadd.f32 %v3582, %v3583
    %v3585 = vsel %vm3080, %v3033, 0.0
    %v3586 = vadd.f32 %v3584, %v3585
    %v3587 = vsel %vm3080, %v3034, 0.0
    %v3588 = vadd.f32 %v3586, %v3587
    %v3589 = vsel %vm3080, %v3035, 0.0
    %v3590 = vadd.f32 %v3588, %v3589
    %v3591 = vsel %vm3080, %v3036, 0.0
    %v3592 = vadd.f32 %v3590, %v3591
    %v3593 = vsel %vm3080, %v3037, 0.0
    %v3594 = vadd.f32 %v3592, %v3593
    %v3595 = vsel %vm3080, %v3038, 0.0
    %v3596 = vadd.f32 %v3594, %v3595
    %v3597 = vsel %vm3080, %v3039, 0.0
    %v3598 = vadd.f32 %v3596, %v3597
    %v3599 = vsel %vm3080, %v3040, 0.0
    %v3600 = vadd.f32 %v3598, %v3599
    %v3601 = vsel %vm3080, %v3041, 0.0
    %v3602 = vadd.f32 %v3600, %v3601
    %v3603 = vsel %vm3080, %v3042, 0.0
    %v3604 = vadd.f32 %v3602, %v3603
    %v3605 = vsel %vm3080, %v3043, 0.0
    %v3606 = vadd.f32 %v3604, %v3605
    %v3607 = vsel %vm3080, %v3044, 0.0
    %v3608 = vadd.f32 %v3606, %v3607
    %v3609 = vsel %vm3080, %v3045, 0.0
    %v3610 = vadd.f32 %v3608, %v3609
    %v3611 = vsel %vm3080, %v3046, 0.0
    %v3612 = vadd.f32 %v3610, %v3611
    %v3613 = vsel %vm3080, %v3047, 0.0
    %v3614 = vadd.f32 %v3612, %v3613
    %v3615 = vsel %vm3080, %v3048, 0.0
    %v3616 = vadd.f32 %v3614, %v3615
    %v3617 = vsel %vm3080, %v3049, 0.0
    %v3618 = vadd.f32 %v3616, %v3617
    %v3619 = vsel %vm3080, %v3050, 0.0
    %v3620 = vadd.f32 %v3618, %v3619
    %v3621 = vsel %vm3080, %v3051, 0.0
    %v3622 = vadd.f32 %v3620, %v3621
    %v3623 = vsel %vm3080, %v3052, 0.0
    %v3624 = vadd.f32 %v3622, %v3623
    %v3625 = vsel %vm3080, %v3053, 0.0
    %v3626 = vadd.f32 %v3624, %v3625
    %v3627 = vsel %vm3080, %v3054, 0.0
    %v3628 = vadd.f32 %v3626, %v3627
    %v3629 = vsel %vm3080, %v3055, 0.0
    %v3630 = vadd.f32 %v3628, %v3629
    %v3631 = vsel %vm3080, %v3056, 0.0
    %v3632 = vadd.f32 %v3630, %v3631
    %v3633 = vsel %vm3080, %v3057, 0.0
    %v3634 = vadd.f32 %v3632, %v3633
    %v3635 = vsel %vm3080, %v3058, 0.0
    %v3636 = vadd.f32 %v3634, %v3635
    %v3637 = vsel %vm3080, %v3059, 0.0
    %v3638 = vadd.f32 %v3636, %v3637
    %v3639 = vsel %vm3080, %v3060, 0.0
    %v3640 = vadd.f32 %v3638, %v3639
    %v3641 = vsel %vm3080, %v3061, 0.0
    %v3642 = vadd.f32 %v3640, %v3641
    %v3643 = vsel %vm3080, %v3062, 0.0
    %v3644 = vadd.f32 %v3642, %v3643
    %v3645 = vsel %vm3080, %v3063, 0.0
    %v3646 = vadd.f32 %v3644, %v3645
    %v3647 = vsel %vm3080, %v3064, 0.0
    %v3648 = vadd.f32 %v3646, %v3647
    %v3649 = vsel %vm3080, %v3065, 0.0
    %v3650 = vadd.f32 %v3648, %v3649
    %v3651 = vsel %vm3080, %v3066, 0.0
    %v3652 = vadd.f32 %v3650, %v3651
    %v3653 = vsel %vm3080, %v3067, 0.0
    %v3654 = vadd.f32 %v3652, %v3653
    %v3655 = vsel %vm3080, %v3068, 0.0
    %v3656 = vadd.f32 %v3654, %v3655
    %v3657 = vsel %vm3080, %v3069, 0.0
    %v3658 = vadd.f32 %v3656, %v3657
    %v3659 = vsel %vm3080, %v3070, 0.0
    %v3660 = vadd.f32 %v3658, %v3659
    %v3661 = vsel %vm3080, %v3071, 0.0
    %v3662 = vadd.f32 %v3660, %v3661
    %v3663 = vsel %vm3080, %v3072, 0.0
    %v3664 = vadd.f32 %v3662, %v3663
    %v3665 = vsel %vm3080, %v3073, 0.0
    %v3666 = vadd.f32 %v3664, %v3665
    %v3667 = vsel %vm3080, %v3074, 0.0
    %v3668 = vadd.f32 %v3666, %v3667
    %v3669 = vsel %vm3080, %v3075, 0.0
    %v3670 = vadd.f32 %v3668, %v3669
    %v3671 = vsel %vm3080, %v3076, 0.0
    %v3672 = vadd.f32 %v3670, %v3671
    %v3673 = vsel %vm3080, %v3077, 0.0
    %v3674 = vadd.f32 %v3672, %v3673
    %v3675 = vsel %vm3080, %v3078, 0.0
    %v3676 = vadd.f32 %v3674, %v3675
    %v3677 = vrot.slane %v3676, 4
    %v3678 = vadd.f32 %v3676, %v3677
    %v3679 = vrot.slane %v3678, 2
    %v3680 = vadd.f32 %v3678, %v3679
    %v3681 = vrot.slane %v3680, 1
    %v3682 = vadd.f32 %v3680, %v3681
    %vm3685 = vcmask 1041409
    %v3686 = vsel %vm3685, %v3682, %v3381
    %v3688 = vadd.f32 %v3079, %v3686
    %vm3689 = vcmask 517120
    %3690 = vst.msk [vmem:[#allocation2] sm:$0x3] %vm3689, %v3688
    // Predicated region
    $region26: #{tpu_custom_call.1} parent=1 // pred_check
      %p3691 = pneg %p22
    $region27: #{tpu_custom_call.1} parent=1 // pred_check_branch
      %3693 = sbr.rel (%p3691) target = $region29
    $region28: #{tpu_custom_call.1} parent=1 // pred_region
      %v3694 = vld [vmem:[#allocation2] sm:$0x3]
      %v3695 = vld [vmem:[%s2] sm:$0x1]
      %v3696 = vmax.f32 %v3695, 0.0
      %v3697 = vmul.f32 %v3696, 8.0
      %v3699 = vlaneseq
      %v3700 = vshrl.u32 %v3699, 7
      %v3701 = vsub.s32 0, %v3700
      %v3702 = vrot.slane %v3697, %v3701
      %v3704 = vsub.f32 %v3694, %v3702
      %v3705 = vmul.f32 %v3704, 0.0008503401
      %v3706 = vld [vmem:[%s3] sm:$0xff]
      %v3707 = vld [vmem:[%s3 + $0x8] sm:$0xff]
      %v3708 = vld [vmem:[%s3 + $0x10] sm:$0xff]
      %v3709 = vld [vmem:[%s3 + $0x18] sm:$0xff]
      %v3710 = vld [vmem:[%s3 + $0x20] sm:$0xff]
      %v3711 = vld [vmem:[%s3 + $0x28] sm:$0xff]
      %v3712 = vld [vmem:[%s3 + $0x30] sm:$0xff]
      %v3713 = vld [vmem:[%s3 + $0x38] sm:$0xff]
      %v3714 = vld [vmem:[%s3 + $0x40] sm:$0xff]
      %v3715 = vld [vmem:[%s3 + $0x48] sm:$0xff]
      %v3716 = vld [vmem:[%s3 + $0x50] sm:$0xff]
      %v3717 = vld [vmem:[%s3 + $0x58] sm:$0xff]
      %v3718 = vld [vmem:[%s3 + $0x60] sm:$0xff]
      %v3719 = vld [vmem:[%s3 + $0x68] sm:$0xff]
      %v3720 = vld [vmem:[%s3 + $0x70] sm:$0xff]
      %v3721 = vld [vmem:[%s3 + $0x78] sm:$0xff]
      %v3722 = vld [vmem:[%s3 + $0x80] sm:$0xff]
      %v3723 = vld [vmem:[%s3 + $0x88] sm:$0xff]
      %v3724 = vld [vmem:[%s3 + $0x90] sm:$0xff]
      %v3725 = vld [vmem:[%s3 + $0x98] sm:$0xff]
      %v3726 = vld [vmem:[%s3 + $0xa0] sm:$0xff]
      %v3727 = vld [vmem:[%s3 + $0xa8] sm:$0xff]
      %v3728 = vld [vmem:[%s3 + $0xb0] sm:$0xff]
      %v3729 = vld [vmem:[%s3 + $0xb8] sm:$0xff]
      %v3730 = vld [vmem:[%s3 + $0xc0] sm:$0xff]
      %v3731 = vld [vmem:[%s3 + $0xc8] sm:$0xff]
      %v3732 = vld [vmem:[%s3 + $0xd0] sm:$0xff]
      %v3733 = vld [vmem:[%s3 + $0xd8] sm:$0xff]
      %v3734 = vld [vmem:[%s3 + $0xe0] sm:$0xff]
      %v3735 = vld [vmem:[%s3 + $0xe8] sm:$0xff]
      %v3736 = vld [vmem:[%s3 + $0xf0] sm:$0xff]
      %v3737 = vld [vmem:[%s3 + $0xf8] sm:$0xff]
      %v3738 = vld [vmem:[%s4] sm:$0xf]
      %v3740 = vlaneseq
      %v3741 = vshrl.u32 %v3740, 7
      %v3742 = vsub.s32 0, %v3741
      %v3743 = vrot.slane %v3738, %v3742
      %v3744 = vlaneseq
      %v3745 = vshrl.u32 %v3744, 7
      %v3746 = vsub.s32 1, %v3745
      %v3747 = vrot.slane %v3738, %v3746
      %v3748 = vlaneseq
      %v3749 = vshrl.u32 %v3748, 7
      %v3750 = vsub.s32 2, %v3749
      %v3751 = vrot.slane %v3738, %v3750
      %v3752 = vlaneseq
      %v3753 = vshrl.u32 %v3752, 7
      %v3754 = vsub.s32 3, %v3753
      %v3755 = vrot.slane %v3738, %v3754
      %v3761 = vsel %vm3080, %v3705, 0
      %3763 = vmatprep.subr.mxu0 0.0
      %3764 = vmatpush1.msra.mxu0 0.0
      %3765 = vmatprep.subr.mxu0 0.0
      %3766 = vmatpush1.msra.mxu0 0.0
      %3767 = vmatprep.subr.mxu0 0.0
      %3768 = vmatpush1.msra.mxu0 0.0
      %3769 = vmatprep.subr.mxu0 0.0
      %3770 = vmatpush1.msra.mxu0 0.0
      %3771 = vmatprep.subr.mxu0 0.0
      %3772 = vmatpush1.msra.mxu0 0.0
      %3773 = vmatprep.subr.mxu0 0.0
      %3774 = vmatpush1.msra.mxu0 0.0
      %3775 = vmatprep.subr.mxu0 0.0
      %3776 = vmatpush1.msra.mxu0 0.0
      %3777 = vmatprep.subr.mxu0 0.0
      %3778 = vmatpush1.msra.mxu0 0.0
      %3779 = vmatprep.subr.mxu0 %v3735
      %3780 = vmatpush1.msra.mxu0 %v3734
      %3781 = vmatprep.subr.mxu0 %v3731
      %3782 = vmatpush1.msra.mxu0 %v3730
      %3783 = vmatprep.subr.mxu0 %v3727
      %3784 = vmatpush1.msra.mxu0 %v3726
      %3785 = vmatprep.subr.mxu0 %v3723
      %3786 = vmatpush1.msra.mxu0 %v3722
      %3787 = vmatprep.subr.mxu0 %v3719
      %3788 = vmatpush1.msra.mxu0 %v3718
      %3789 = vmatprep.subr.mxu0 %v3715
      %3790 = vmatpush1.msra.mxu0 %v3714
      %3791 = vmatprep.subr.mxu0 %v3711
      %3792 = vmatpush1.msra.mxu0 %v3710
      %3793 = vmatprep.subr.mxu0 %v3707
      %3794 = vmatpush1.msra.mxu0 %v3706
      %3795 = vmatprep.subr.mxu0 0.0
      %3796 = vmatpush2.msra.mxu0 0.0
      %3797 = vmatprep.subr.mxu0 0.0
      %3798 = vmatpush2.msra.mxu0 0.0
      %3799 = vmatprep.subr.mxu0 0.0
      %3800 = vmatpush2.msra.mxu0 0.0
      %3801 = vmatprep.subr.mxu0 0.0
      %3802 = vmatpush2.msra.mxu0 0.0
      %3803 = vmatprep.subr.mxu0 0.0
      %3804 = vmatpush2.msra.mxu0 0.0
      %3805 = vmatprep.subr.mxu0 0.0
      %3806 = vmatpush2.msra.mxu0 0.0
      %3807 = vmatprep.subr.mxu0 0.0
      %3808 = vmatpush2.msra.mxu0 0.0
      %3809 = vmatprep.subr.mxu0 0.0
      %3810 = vmatpush2.msra.mxu0 0.0
      %3811 = vmatprep.subr.mxu0 0.0
      %3812 = vmatpush2.msra.mxu0 0.0
      %3813 = vmatprep.subr.mxu0 0.0
      %3814 = vmatpush2.msra.mxu0 0.0
      %3815 = vmatprep.subr.mxu0 0.0
      %3816 = vmatpush2.msra.mxu0 0.0
      %3817 = vmatprep.subr.mxu0 0.0
      %3818 = vmatpush2.msra.mxu0 0.0
      %3819 = vmatprep.subr.mxu0 0.0
      %3820 = vmatpush2.msra.mxu0 0.0
      %3821 = vmatprep.subr.mxu0 0.0
      %3822 = vmatpush2.msra.mxu0 0.0
      %3823 = vmatprep.subr.mxu0 0.0
      %3824 = vmatpush2.msra.mxu0 0.0
      %3825 = vmatprep.subr.mxu0 0.0
      %3826 = vmatpush2.msra.mxu0 0.0
      %3827 = vmatprep.mubr.f32.mxu0 0.0
      %3828 = vmatmul.mubr.f32.gmra.mxu0 %v3761
      %v3829 = vpop.f32.mrf.mxu0
      %v3830 = vadd.f32 %v3743, %v3829
      %v3831 = vpop.f32.mrf.mxu0
      %v3832 = vadd.f32 %v3747, %v3831
      %3833 = vdwg.mxu0
      %3834 = vmatprep.subr.mxu0 0.0
      %3835 = vmatpush1.msra.mxu0 0.0
      %3836 = vmatprep.subr.mxu0 0.0
      %3837 = vmatpush1.msra.mxu0 0.0
      %3838 = vmatprep.subr.mxu0 0.0
      %3839 = vmatpush1.msra.mxu0 0.0
      %3840 = vmatprep.subr.mxu0 0.0
      %3841 = vmatpush1.msra.mxu0 0.0
      %3842 = vmatprep.subr.mxu0 0.0
      %3843 = vmatpush1.msra.mxu0 0.0
      %3844 = vmatprep.subr.mxu0 0.0
      %3845 = vmatpush1.msra.mxu0 0.0
      %3846 = vmatprep.subr.mxu0 0.0
      %3847 = vmatpush1.msra.mxu0 0.0
      %3848 = vmatprep.subr.mxu0 0.0
      %3849 = vmatpush1.msra.mxu0 0.0
      %3850 = vmatprep.subr.mxu0 %v3737
      %3851 = vmatpush1.msra.mxu0 %v3736
      %3852 = vmatprep.subr.mxu0 %v3733
      %3853 = vmatpush1.msra.mxu0 %v3732
      %3854 = vmatprep.subr.mxu0 %v3729
      %3855 = vmatpush1.msra.mxu0 %v3728
      %3856 = vmatprep.subr.mxu0 %v3725
      %3857 = vmatpush1.msra.mxu0 %v3724
      %3858 = vmatprep.subr.mxu0 %v3721
      %3859 = vmatpush1.msra.mxu0 %v3720
      %3860 = vmatprep.subr.mxu0 %v3717
      %3861 = vmatpush1.msra.mxu0 %v3716
      %3862 = vmatprep.subr.mxu0 %v3713
      %3863 = vmatpush1.msra.mxu0 %v3712
      %3864 = vmatprep.subr.mxu0 %v3709
      %3865 = vmatpush1.msra.mxu0 %v3708
      %3866 = vmatprep.subr.mxu0 0.0
      %3867 = vmatpush2.msra.mxu0 0.0
      %3868 = vmatprep.subr.mxu0 0.0
      %3869 = vmatpush2.msra.mxu0 0.0
      %3870 = vmatprep.subr.mxu0 0.0
      %3871 = vmatpush2.msra.mxu0 0.0
      %3872 = vmatprep.subr.mxu0 0.0
      %3873 = vmatpush2.msra.mxu0 0.0
      %3874 = vmatprep.subr.mxu0 0.0
      %3875 = vmatpush2.msra.mxu0 0.0
      %3876 = vmatprep.subr.mxu0 0.0
      %3877 = vmatpush2.msra.mxu0 0.0
      %3878 = vmatprep.subr.mxu0 0.0
      %3879 = vmatpush2.msra.mxu0 0.0
      %3880 = vmatprep.subr.mxu0 0.0
      %3881 = vmatpush2.msra.mxu0 0.0
      %3882 = vmatprep.subr.mxu0 0.0
      %3883 = vmatpush2.msra.mxu0 0.0
      %3884 = vmatprep.subr.mxu0 0.0
      %3885 = vmatpush2.msra.mxu0 0.0
      %3886 = vmatprep.subr.mxu0 0.0
      %3887 = vmatpush2.msra.mxu0 0.0
      %3888 = vmatprep.subr.mxu0 0.0
      %3889 = vmatpush2.msra.mxu0 0.0
      %3890 = vmatprep.subr.mxu0 0.0
      %3891 = vmatpush2.msra.mxu0 0.0
      %3892 = vmatprep.subr.mxu0 0.0
      %3893 = vmatpush2.msra.mxu0 0.0
      %3894 = vmatprep.subr.mxu0 0.0
      %3895 = vmatpush2.msra.mxu0 0.0
      %3896 = vmatprep.subr.mxu0 0.0
      %3897 = vmatpush2.msra.mxu0 0.0
      %3898 = vmatprep.mubr.f32.mxu0 0.0
      %3899 = vmatmul.mubr.f32.gmra.mxu0 %v3761
      %v3900 = vpop.f32.mrf.mxu0
      %v3901 = vadd.f32 %v3751, %v3900
      %v3902 = vpop.f32.mrf.mxu0
      %v3903 = vadd.f32 %v3755, %v3902
      %3904 = vdwg.mxu0
      %v3909 = vcombine.low %v3830, %v3832
      %v3910 = vcombine.low %v3901, %v3903
      %v3912 = vunpack.c.l.s4 1983009808
      %v3913 = vunpack.c.0.s8 %v3912
      %v3914 = vlaneseq
      %v3915 = vshrl.u32 %v3914, 7
      %v3916 = vsub.s32 %v3913, %v3915
      %v3917 = vrot.slane %v3909, %v3916
      %v3919 = vunpack.c.l.s4 1983009808
      %v3920 = vunpack.c.0.s8 %v3919
      %v3921 = vlaneseq
      %v3922 = vshrl.u32 %v3921, 7
      %v3923 = vsub.s32 %v3920, %v3922
      %v3924 = vrot.slane %v3910, %v3923
      %v3925 = vcombine.low %v3917, %v3924
      %3927 = vst [vmem:[#allocation3] sm:$0xff] %v3925
    $region29: #{tpu_custom_call.1} parent=1 // pred_fallthru
      _
    // Predicated region
    $region30: #{tpu_custom_call.1} parent=1 // pred_check
      _
    $region31: #{tpu_custom_call.1} parent=1 // pred_check_branch
      %3929 = sbr.rel (0) target = $region33
    $region32: #{tpu_custom_call.1} parent=1 // pred_region
      %s3931 = ssub.s32 128, 128
      %3932 = vsyncadd [#allocation4], %s3931
      %s3934 = sshll.u32 [#allocation3], 4
      %s3935 = int_to_ptr.vmem [resolvable:$true] %s3934
      %3937 = dma.vmem_to_hbm [thread:$0]  %s3935, 128, %s5, [#allocation4]
    $region33: #{tpu_custom_call.1} parent=1 // pred_fallthru
      _
    // Predicated region
    $region34: #{tpu_custom_call.1} parent=1 // pred_check
      _
    $region35: #{tpu_custom_call.1} parent=1 // pred_check_branch
      %3939 = sbr.rel (0) target = $region37
    $region36: #{tpu_custom_call.1} parent=1 // pred_region
      %3940 = dma.done [#allocation4], 128
    $region37: #{tpu_custom_call.1} parent=1 // pred_fallthru
      _
    %3941 = vsyncpa [#allocation4], 1

</llo_original>
